<compile_context>
chip_gen: v6e
topology: v6e:2x2x1
jax: 0.10.0
libtpu: 0.0.40
codegen_flags: <defaults>
</compile_context>

<pallas_src>
import jax
import jax.numpy as jnp
from jax.experimental import pallas as pl
from jax.experimental.pallas import tpu as pltpu

T = 8        # sequence length (x.shape[0] in the torch forward)
B = 660      # batch size, forced by x.reshape(x.shape[0], 660) with hidden_size=1
B_PAD = 768  # 6 * 128, lane-aligned batch
IN = 4       # LSTM input_size
HID1 = 128   # first Linear width


def net_kernel(x_ref, lp_ref, w_fc1_hbm, hp_ref,      # inputs
               out_ref,                                # output
               w_fc1_vmem, dma_sem, h_ref, z_scr):     # scratch
    # Kick off the big fc1-weight DMA immediately; it overlaps the serial
    # recurrence and is only waited on right before the MXU matmul.
    fc1_cp = pltpu.make_async_copy(w_fc1_hbm, w_fc1_vmem, dma_sem)
    fc1_cp.start()

    Tn = x_ref.shape[0]

    # Packed, gate-pre-scaled parameters (built in net_forward).  Wave row
    # order is interleaved [i1, i0, f1, f0, g1, g0, o1, o0]  ("1" = layer-1
    # cell at step t-1, "0" = layer-0 cell at step t).  Sigmoid rows carry a
    # 0.5 pre-scale so sigmoid(z) = 0.5*tanh(z_scaled)+0.5; g rows carry
    # scale 1 so tanh(z_scaled) is the g gate directly.
    lp = lp_ref[...]                       # (8, 11)
    proj_w    = lp[:, 0:4]                 # layer-0 input weights (layer-1 rows are 0)
    proj_b    = lp[:, 4:5]                 # biases: layer-1 rows = b1, layer-0 rows = b0
    w_h1c     = lp[:, 5:6]                 # per-wave coefficient of h1(t-2)
    w_h0c     = lp[:, 6:7]                 # per-wave coefficient of h0(t-1)
    e_wih1    = lp[0:4, 7:8]               # epilogue (layer-1 only), [i,f,g,o] order
    e_whh1    = lp[0:4, 8:9]
    e_b1      = lp[0:4, 9:10]
    proj_b_t0 = lp[:, 10:11]               # proj_b with the layer-1 g-row zeroed (t=0 peel)

    # ---- hoisted layer-0 input projection (off the serial chain) -----------
    # z_scr[t] = state-independent part of the wave-t gate pre-activations:
    # layer-1 rows = b1, layer-0 rows = b0 + W_ih0 @ x_t (all pre-scaled).
    for t in range(Tn):
        xt = x_ref[t]                                        # (4, B_PAD)
        pb = proj_b_t0 if t == 0 else proj_b
        z = (pb
             + proj_w[:, 0:1] * xt[0:1, :]
             + proj_w[:, 1:2] * xt[1:2, :]
             + proj_w[:, 2:3] * xt[2:3, :]
             + proj_w[:, 3:4] * xt[3:4, :])
        z_scr[t] = z                                         # (8, B_PAD)

    def gates(zz):
        # One EUP push yields both the sigmoid gates (0.5*tanh+0.5 on the
        # pre-scaled rows) and the tanh g gates (raw rows).
        tt = jnp.tanh(zz)
        return 0.5 * tt + 0.5, tt

    # ---- wave 0 (peeled): layer-0 cell at t=0; all previous state is zero ---
    # The layer-1 half of this wave has its g-row pre-activation zeroed (via
    # proj_b_t0), so it produces exactly h1 = c1 = 0.
    s, tt = gates(z_scr[0])
    c_pair = s[0:2, :] * tt[4:6, :]                 # i * g        rows = [c1, c0]
    h_pair = s[6:8, :] * jnp.tanh(c_pair)           # o * tanh(c)  rows = [h1, h0]

    # ---- waves 1..T-1: layer-1 cell at t=w-1  +  layer-0 cell at t=w --------
    for w in range(1, Tn):
        zz = z_scr[w] + w_h1c * h_pair[0:1, :] + w_h0c * h_pair[1:2, :]
        s, tt = gates(zz)                                       # one (8,B) tanh push
        c_pair = s[2:4, :] * c_pair + s[0:2, :] * tt[4:6, :]    # f*c_prev + i*g
        h_pair = s[6:8, :] * jnp.tanh(c_pair)                   # one shared tanh(c) push
        h_ref[w - 1:w, :] = h_pair[0:1, :]                      # h1(w-1)

    # ---- epilogue: layer-1 cell at t=T-1 ------------------------------------
    z1 = e_b1 + e_wih1 * h_pair[1:2, :] + e_whh1 * h_pair[0:1, :]
    tt1 = jnp.tanh(z1)
    s1 = 0.5 * tt1 + 0.5
    c1 = s1[1:2, :] * c_pair[0:1, :] + s1[0:1, :] * tt1[2:3, :]
    h_ref[Tn - 1:Tn, :] = s1[3:4, :] * jnp.tanh(c1)

    # ---- MLP head: Linear(660,128) -> ReLU -> Linear(128,1) -----------------
    fc1_cp.wait()                          # fc1 weights have landed in VMEM
    H = h_ref[...]                         # (T, B_PAD); padded lanes killed by zero w rows
    y = jnp.dot(H, w_fc1_vmem[...], preferred_element_type=jnp.float32)
    y = jnp.maximum(y + hp_ref[0:1, :], 0.0)                    # + b_fc1, ReLU
    out = jnp.sum(y * hp_ref[1:2, :], axis=1, keepdims=True)    # Linear(128,1) on VPU/XLU
    out = out + hp_ref[2:3, 0:1]                                # + b_fc2
    out_ref[...] = out.astype(out_ref.dtype)


def _interleave(l1, l0):
    """Interleave layer-1 / layer-0 gate rows: (4,k),(4,k) -> (8,k) = [a0,b0,a1,b1,...]."""
    return jnp.stack([l1, l0], axis=1).reshape(8, l1.shape[1])


def net_forward(x, params):
    """x: (T, B, 4) float32, PyTorch nn.LSTM default (seq, batch, feature) layout."""
    Tn, Bn, Fn = x.shape
    assert Bn == B and Fn == IN, "reshape(T, 660) in the torch model forces batch==660"

    # (T, B, 4) -> (T, 4, B) -> lane-pad to (T, 4, 768) with zeros.
    x_k = jnp.transpose(x.astype(jnp.float32), (0, 2, 1))
    x_k = jnp.pad(x_k, ((0, 0), (0, 0), (0, B_PAD - Bn)))

    # Per-gate pre-scale for the tanh-only gate evaluation:
    # sigmoid(z) = 0.5*tanh(0.5*z)+0.5 -> i/f/o rows scaled by 0.5, g row by 1.
    gs = jnp.array([[0.5], [0.5], [1.0], [0.5]], jnp.float32)   # torch gate order i,f,g,o
    z41 = jnp.zeros((4, 1), jnp.float32)
    z44 = jnp.zeros((4, 4), jnp.float32)

    proj_w = _interleave(z44, gs * params["w_ih_l0"])                       # (8, 4)
    proj_b = _interleave(gs * params["b_l1"], gs * params["b_l0"])          # (8, 1)
    w_h1c = _interleave(gs * params["w_hh_l1"], z41)                        # multiplies h1(t-2)
    w_h0c = _interleave(gs * params["w_ih_l1"], gs * params["w_hh_l0"])     # multiplies h0(t-1)
    e_wih1 = jnp.concatenate([gs * params["w_ih_l1"], z41], axis=0)         # epilogue params
    e_whh1 = jnp.concatenate([gs * params["w_hh_l1"], z41], axis=0)
    e_b1 = jnp.concatenate([gs * params["b_l1"], z41], axis=0)
    # t=0 peel: zero the layer-1 g-row bias so the (unused) layer-1 half of
    # wave 0 yields exactly h1 = c1 = 0.
    g1_kill = jnp.array([1., 1., 1., 1., 0., 1., 1., 1.], jnp.float32).reshape(8, 1)
    proj_b_t0 = proj_b * g1_kill

    lstm_p = jnp.concatenate(
        [proj_w, proj_b, w_h1c, w_h0c, e_wih1, e_whh1, e_b1, proj_b_t0], axis=1)  # (8, 11)

    # fc1 weight (660,128) -> zero-pad rows to (768,128): padded lanes of H
    # contribute nothing to the matmul.
    w_fc1_pad = jnp.pad(params["w_fc1"], ((0, B_PAD - Bn), (0, 0)))

    # Packed fc-head params: row0 = b_fc1, row1 = w_fc2 (as (1,128)), row2[0] = b_fc2.
    head_p = jnp.concatenate(
        [params["b_fc1"],
         params["w_fc2"].reshape(1, HID1),
         jnp.pad(params["b_fc2"], ((0, 0), (0, HID1 - 1)))], axis=0)   # (3, 128)

    return pl.pallas_call(
        net_kernel,
        out_shape=jax.ShapeDtypeStruct((Tn, 1), jnp.float32),
        in_specs=[pl.BlockSpec(memory_space=pltpu.MemorySpace.VMEM),   # x
                  pl.BlockSpec(memory_space=pltpu.MemorySpace.VMEM),   # packed LSTM params
                  pl.BlockSpec(memory_space=pl.ANY),                   # fc1 weight (manual DMA)
                  pl.BlockSpec(memory_space=pltpu.MemorySpace.VMEM)],  # packed head params
        out_specs=pl.BlockSpec(memory_space=pltpu.MemorySpace.VMEM),
        scratch_shapes=[pltpu.VMEM((B_PAD, HID1), jnp.float32),        # fc1 weight landing buf
                        pltpu.SemaphoreType.DMA(()),                   # its completion sem
                        pltpu.VMEM((Tn, B_PAD), jnp.float32),          # per-step layer-1 hidden
                        pltpu.VMEM((Tn, 8, B_PAD), jnp.float32)],      # hoisted gate pre-activations
    )(x_k, lstm_p, w_fc1_pad, head_p)


def init_params(key):
    """Deterministic synthetic parameters mirroring the nn.Module shapes."""
    ks = jax.random.split(key, 12)

    def u(k, shape, scale):
        return jax.random.uniform(k, shape, jnp.float32, -scale, scale)

    s_lstm = 1.0  # 1/sqrt(hidden_size=1)
    # LSTM layer 0: weight_ih (4,4), weight_hh (4,1), bias_ih + bias_hh combined (4,1)
    w_ih_l0 = u(ks[0], (4, 4), s_lstm)
    w_hh_l0 = u(ks[1], (4, 1), s_lstm)
    b_l0 = u(ks[2], (4, 1), s_lstm) + u(ks[3], (4, 1), s_lstm)
    # LSTM layer 1: weight_ih (4,1), weight_hh (4,1), combined bias (4,1)
    w_ih_l1 = u(ks[4], (4, 1), s_lstm)
    w_hh_l1 = u(ks[5], (4, 1), s_lstm)
    b_l1 = u(ks[6], (4, 1), s_lstm) + u(ks[7], (4, 1), s_lstm)
    # Linear(660, 128): torch weight (128,660) stored transposed as (660,128)
    s1 = 1.0 / (660.0 ** 0.5)
    w_fc1 = u(ks[8], (660, HID1), s1)
    b_fc1 = u(ks[9], (1, HID1), s1)
    # Linear(128, 1): torch weight (1,128) stored transposed as (128,1)
    s2 = 1.0 / (128.0 ** 0.5)
    w_fc2 = u(ks[10], (HID1, 1), s2)
    b_fc2 = u(ks[11], (1, 1), s2)

    return dict(w_ih_l0=w_ih_l0, w_hh_l0=w_hh_l0, b_l0=b_l0,
                w_ih_l1=w_ih_l1, w_hh_l1=w_hh_l1, b_l1=b_l1,
                w_fc1=w_fc1, b_fc1=b_fc1, w_fc2=w_fc2, b_fc2=b_fc2)


def net_reference(x, params):
    """Pure-JAX forward matching the PyTorch module (validation only)."""
    def cell(x_in, h, c, w_ih, w_hh, b):
        z = x_in @ w_ih.T + h @ w_hh.T + b.T            # (B, 4), gate order i,f,g,o
        i = jax.nn.sigmoid(z[:, 0:1])
        f = jax.nn.sigmoid(z[:, 1:2])
        g = jnp.tanh(z[:, 2:3])
        o = jax.nn.sigmoid(z[:, 3:4])
        c = f * c + i * g
        return o * jnp.tanh(c), c

    Tn, Bn, _ = x.shape
    h0 = c0 = h1 = c1 = jnp.zeros((Bn, 1), jnp.float32)
    rows = []
    for t in range(Tn):
        h0, c0 = cell(x[t], h0, c0, params["w_ih_l0"], params["w_hh_l0"], params["b_l0"])
        h1, c1 = cell(h0, h1, c1, params["w_ih_l1"], params["w_hh_l1"], params["b_l1"])
        rows.append(h1[:, 0])
    H = jnp.stack(rows, axis=0)                          # (T, B) == torch reshape(T, 660)
    y = jnp.maximum(jnp.dot(H, params["w_fc1"], preferred_element_type=jnp.float32)
                    + params["b_fc1"], 0.0)
    return jnp.dot(y, params["w_fc2"]) + params["b_fc2"]


if __name__ == "__main__":
    key = jax.random.PRNGKey(0)
    kx, kp = jax.random.split(key)
    params = init_params(kp)
    # Input in the PyTorch layout expected by nn.LSTM: (seq=T, batch=660, features=4)
    x = jax.random.normal(kx, (T, B, IN), jnp.float32)

    out = net_forward(x, params)
    jax.block_until_ready(out)
    assert out.shape == (T, 1) and out.dtype == jnp.float32

    ref = net_reference(x, params)
    assert float(jnp.max(jnp.abs(out - ref))) < 5e-3, "kernel deviates from reference"
    print("KERNEL_OK")
</pallas_src>

<mosaic_0001>
module attributes {stable_mosaic.version = 11 : i64} {
  func.func @net_kernel(%arg0: memref<8x4x768xf32, #tpu.memory_space<vmem>>, %arg1: memref<8x11xf32, #tpu.memory_space<vmem>>, %arg2: memref<768x128xf32, #tpu.memory_space<any>>, %arg3: memref<3x128xf32, #tpu.memory_space<vmem>>, %arg4: memref<8x1xf32, #tpu.memory_space<vmem>>, %arg5: memref<768x128xf32, #tpu.memory_space<vmem>>, %arg6: memref<!tpu.dma_semaphore, #tpu.memory_space<semaphore_mem>>, %arg7: memref<8x768xf32, #tpu.memory_space<vmem>>, %arg8: memref<8x8x768xf32, #tpu.memory_space<vmem>>) attributes {dimension_semantics = [], scalar_prefetch = 0 : i64, scratch_operands = 4 : i64, tpu.core_type = #tpu.core_type<tc>} {
    tpu.enqueue_dma source(%arg2 : memref<768x128xf32, #tpu.memory_space<any>>) target(%arg5 : memref<768x128xf32, #tpu.memory_space<vmem>>) target_semaphore(%arg6 : memref<!tpu.dma_semaphore, #tpu.memory_space<semaphore_mem>>)
    %c0 = arith.constant 0 : index
    %c0_0 = arith.constant 0 : index
    %0 = vector.load %arg1[%c0, %c0_0] : memref<8x11xf32, #tpu.memory_space<vmem>>, vector<8x11xf32>
    %1 = vector.extract_strided_slice %0 {offsets = [0, 0], sizes = [8, 4], strides = [1, 1]} : vector<8x11xf32> to vector<8x4xf32>
    %2 = vector.extract_strided_slice %0 {offsets = [0, 4], sizes = [8, 1], strides = [1, 1]} : vector<8x11xf32> to vector<8x1xf32>
    %3 = vector.extract_strided_slice %0 {offsets = [0, 5], sizes = [8, 1], strides = [1, 1]} : vector<8x11xf32> to vector<8x1xf32>
    %4 = vector.extract_strided_slice %0 {offsets = [0, 6], sizes = [8, 1], strides = [1, 1]} : vector<8x11xf32> to vector<8x1xf32>
    %5 = vector.extract_strided_slice %0 {offsets = [0, 7], sizes = [4, 1], strides = [1, 1]} : vector<8x11xf32> to vector<4x1xf32>
    %6 = vector.extract_strided_slice %0 {offsets = [0, 8], sizes = [4, 1], strides = [1, 1]} : vector<8x11xf32> to vector<4x1xf32>
    %7 = vector.extract_strided_slice %0 {offsets = [0, 9], sizes = [4, 1], strides = [1, 1]} : vector<8x11xf32> to vector<4x1xf32>
    %8 = vector.extract_strided_slice %0 {offsets = [0, 10], sizes = [8, 1], strides = [1, 1]} : vector<8x11xf32> to vector<8x1xf32>
    %c0_1 = arith.constant 0 : index
    %c0_2 = arith.constant 0 : index
    %c0_3 = arith.constant 0 : index
    %9 = vector.load %arg0[%c0_1, %c0_2, %c0_3] : memref<8x4x768xf32, #tpu.memory_space<vmem>>, vector<1x4x768xf32>
    %10 = vector.shape_cast %9 : vector<1x4x768xf32> to vector<4x768xf32>
    %11 = vector.extract_strided_slice %1 {offsets = [0, 0], sizes = [8, 1], strides = [1, 1]} : vector<8x4xf32> to vector<8x1xf32>
    %12 = vector.extract_strided_slice %10 {offsets = [0, 0], sizes = [1, 768], strides = [1, 1]} : vector<4x768xf32> to vector<1x768xf32>
    %13 = vector.broadcast %11 : vector<8x1xf32> to vector<8x768xf32>
    %14 = vector.broadcast %12 : vector<1x768xf32> to vector<8x768xf32>
    %15 = arith.mulf %13, %14 : vector<8x768xf32>
    %16 = vector.broadcast %8 : vector<8x1xf32> to vector<8x768xf32>
    %17 = arith.addf %16, %15 : vector<8x768xf32>
    %18 = vector.extract_strided_slice %1 {offsets = [0, 1], sizes = [8, 1], strides = [1, 1]} : vector<8x4xf32> to vector<8x1xf32>
    %19 = vector.extract_strided_slice %10 {offsets = [1, 0], sizes = [1, 768], strides = [1, 1]} : vector<4x768xf32> to vector<1x768xf32>
    %20 = vector.broadcast %18 : vector<8x1xf32> to vector<8x768xf32>
    %21 = vector.broadcast %19 : vector<1x768xf32> to vector<8x768xf32>
    %22 = arith.mulf %20, %21 : vector<8x768xf32>
    %23 = arith.addf %17, %22 : vector<8x768xf32>
    %24 = vector.extract_strided_slice %1 {offsets = [0, 2], sizes = [8, 1], strides = [1, 1]} : vector<8x4xf32> to vector<8x1xf32>
    %25 = vector.extract_strided_slice %10 {offsets = [2, 0], sizes = [1, 768], strides = [1, 1]} : vector<4x768xf32> to vector<1x768xf32>
    %26 = vector.broadcast %24 : vector<8x1xf32> to vector<8x768xf32>
    %27 = vector.broadcast %25 : vector<1x768xf32> to vector<8x768xf32>
    %28 = arith.mulf %26, %27 : vector<8x768xf32>
    %29 = arith.addf %23, %28 : vector<8x768xf32>
    %30 = vector.extract_strided_slice %1 {offsets = [0, 3], sizes = [8, 1], strides = [1, 1]} : vector<8x4xf32> to vector<8x1xf32>
    %31 = vector.extract_strided_slice %10 {offsets = [3, 0], sizes = [1, 768], strides = [1, 1]} : vector<4x768xf32> to vector<1x768xf32>
    %32 = vector.broadcast %30 : vector<8x1xf32> to vector<8x768xf32>
    %33 = vector.broadcast %31 : vector<1x768xf32> to vector<8x768xf32>
    %34 = arith.mulf %32, %33 : vector<8x768xf32>
    %35 = arith.addf %29, %34 : vector<8x768xf32>
    %c0_4 = arith.constant 0 : index
    %c0_5 = arith.constant 0 : index
    %c0_6 = arith.constant 0 : index
    %36 = vector.load %arg8[%c0_4, %c0_5, %c0_6] : memref<8x8x768xf32, #tpu.memory_space<vmem>>, vector<1x8x768xf32>
    %37 = vector.shape_cast %36 : vector<1x8x768xf32> to vector<8x768xf32>
    %38 = vector.shape_cast %35 : vector<8x768xf32> to vector<1x8x768xf32>
    tpu.vector_store %arg8[%c0_4, %c0_5, %c0_6], %38 {strides = array<i32>} : memref<8x8x768xf32, #tpu.memory_space<vmem>>, vector<1x8x768xf32>,
    %c1 = arith.constant 1 : index
    %c0_7 = arith.constant 0 : index
    %c0_8 = arith.constant 0 : index
    %39 = vector.load %arg0[%c1, %c0_7, %c0_8] : memref<8x4x768xf32, #tpu.memory_space<vmem>>, vector<1x4x768xf32>
    %40 = vector.shape_cast %39 : vector<1x4x768xf32> to vector<4x768xf32>
    %41 = vector.extract_strided_slice %1 {offsets = [0, 0], sizes = [8, 1], strides = [1, 1]} : vector<8x4xf32> to vector<8x1xf32>
    %42 = vector.extract_strided_slice %40 {offsets = [0, 0], sizes = [1, 768], strides = [1, 1]} : vector<4x768xf32> to vector<1x768xf32>
    %43 = vector.broadcast %41 : vector<8x1xf32> to vector<8x768xf32>
    %44 = vector.broadcast %42 : vector<1x768xf32> to vector<8x768xf32>
    %45 = arith.mulf %43, %44 : vector<8x768xf32>
    %46 = vector.broadcast %2 : vector<8x1xf32> to vector<8x768xf32>
    %47 = arith.addf %46, %45 : vector<8x768xf32>
    %48 = vector.extract_strided_slice %1 {offsets = [0, 1], sizes = [8, 1], strides = [1, 1]} : vector<8x4xf32> to vector<8x1xf32>
    %49 = vector.extract_strided_slice %40 {offsets = [1, 0], sizes = [1, 768], strides = [1, 1]} : vector<4x768xf32> to vector<1x768xf32>
    %50 = vector.broadcast %48 : vector<8x1xf32> to vector<8x768xf32>
    %51 = vector.broadcast %49 : vector<1x768xf32> to vector<8x768xf32>
    %52 = arith.mulf %50, %51 : vector<8x768xf32>
    %53 = arith.addf %47, %52 : vector<8x768xf32>
    %54 = vector.extract_strided_slice %1 {offsets = [0, 2], sizes = [8, 1], strides = [1, 1]} : vector<8x4xf32> to vector<8x1xf32>
    %55 = vector.extract_strided_slice %40 {offsets = [2, 0], sizes = [1, 768], strides = [1, 1]} : vector<4x768xf32> to vector<1x768xf32>
    %56 = vector.broadcast %54 : vector<8x1xf32> to vector<8x768xf32>
    %57 = vector.broadcast %55 : vector<1x768xf32> to vector<8x768xf32>
    %58 = arith.mulf %56, %57 : vector<8x768xf32>
    %59 = arith.addf %53, %58 : vector<8x768xf32>
    %60 = vector.extract_strided_slice %1 {offsets = [0, 3], sizes = [8, 1], strides = [1, 1]} : vector<8x4xf32> to vector<8x1xf32>
    %61 = vector.extract_strided_slice %40 {offsets = [3, 0], sizes = [1, 768], strides = [1, 1]} : vector<4x768xf32> to vector<1x768xf32>
    %62 = vector.broadcast %60 : vector<8x1xf32> to vector<8x768xf32>
    %63 = vector.broadcast %61 : vector<1x768xf32> to vector<8x768xf32>
    %64 = arith.mulf %62, %63 : vector<8x768xf32>
    %65 = arith.addf %59, %64 : vector<8x768xf32>
    %c1_9 = arith.constant 1 : index
    %c0_10 = arith.constant 0 : index
    %c0_11 = arith.constant 0 : index
    %66 = vector.load %arg8[%c1_9, %c0_10, %c0_11] : memref<8x8x768xf32, #tpu.memory_space<vmem>>, vector<1x8x768xf32>
    %67 = vector.shape_cast %66 : vector<1x8x768xf32> to vector<8x768xf32>
    %68 = vector.shape_cast %65 : vector<8x768xf32> to vector<1x8x768xf32>
    tpu.vector_store %arg8[%c1_9, %c0_10, %c0_11], %68 {strides = array<i32>} : memref<8x8x768xf32, #tpu.memory_space<vmem>>, vector<1x8x768xf32>,
    %c2 = arith.constant 2 : index
    %c0_12 = arith.constant 0 : index
    %c0_13 = arith.constant 0 : index
    %69 = vector.load %arg0[%c2, %c0_12, %c0_13] : memref<8x4x768xf32, #tpu.memory_space<vmem>>, vector<1x4x768xf32>
    %70 = vector.shape_cast %69 : vector<1x4x768xf32> to vector<4x768xf32>
    %71 = vector.extract_strided_slice %1 {offsets = [0, 0], sizes = [8, 1], strides = [1, 1]} : vector<8x4xf32> to vector<8x1xf32>
    %72 = vector.extract_strided_slice %70 {offsets = [0, 0], sizes = [1, 768], strides = [1, 1]} : vector<4x768xf32> to vector<1x768xf32>
    %73 = vector.broadcast %71 : vector<8x1xf32> to vector<8x768xf32>
    %74 = vector.broadcast %72 : vector<1x768xf32> to vector<8x768xf32>
    %75 = arith.mulf %73, %74 : vector<8x768xf32>
    %76 = vector.broadcast %2 : vector<8x1xf32> to vector<8x768xf32>
    %77 = arith.addf %76, %75 : vector<8x768xf32>
    %78 = vector.extract_strided_slice %1 {offsets = [0, 1], sizes = [8, 1], strides = [1, 1]} : vector<8x4xf32> to vector<8x1xf32>
    %79 = vector.extract_strided_slice %70 {offsets = [1, 0], sizes = [1, 768], strides = [1, 1]} : vector<4x768xf32> to vector<1x768xf32>
    %80 = vector.broadcast %78 : vector<8x1xf32> to vector<8x768xf32>
    %81 = vector.broadcast %79 : vector<1x768xf32> to vector<8x768xf32>
    %82 = arith.mulf %80, %81 : vector<8x768xf32>
    %83 = arith.addf %77, %82 : vector<8x768xf32>
    %84 = vector.extract_strided_slice %1 {offsets = [0, 2], sizes = [8, 1], strides = [1, 1]} : vector<8x4xf32> to vector<8x1xf32>
    %85 = vector.extract_strided_slice %70 {offsets = [2, 0], sizes = [1, 768], strides = [1, 1]} : vector<4x768xf32> to vector<1x768xf32>
    %86 = vector.broadcast %84 : vector<8x1xf32> to vector<8x768xf32>
    %87 = vector.broadcast %85 : vector<1x768xf32> to vector<8x768xf32>
    %88 = arith.mulf %86, %87 : vector<8x768xf32>
    %89 = arith.addf %83, %88 : vector<8x768xf32>
    %90 = vector.extract_strided_slice %1 {offsets = [0, 3], sizes = [8, 1], strides = [1, 1]} : vector<8x4xf32> to vector<8x1xf32>
    %91 = vector.extract_strided_slice %70 {offsets = [3, 0], sizes = [1, 768], strides = [1, 1]} : vector<4x768xf32> to vector<1x768xf32>
    %92 = vector.broadcast %90 : vector<8x1xf32> to vector<8x768xf32>
    %93 = vector.broadcast %91 : vector<1x768xf32> to vector<8x768xf32>
    %94 = arith.mulf %92, %93 : vector<8x768xf32>
    %95 = arith.addf %89, %94 : vector<8x768xf32>
    %c2_14 = arith.constant 2 : index
    %c0_15 = arith.constant 0 : index
    %c0_16 = arith.constant 0 : index
    %96 = vector.load %arg8[%c2_14, %c0_15, %c0_16] : memref<8x8x768xf32, #tpu.memory_space<vmem>>, vector<1x8x768xf32>
    %97 = vector.shape_cast %96 : vector<1x8x768xf32> to vector<8x768xf32>
    %98 = vector.shape_cast %95 : vector<8x768xf32> to vector<1x8x768xf32>
    tpu.vector_store %arg8[%c2_14, %c0_15, %c0_16], %98 {strides = array<i32>} : memref<8x8x768xf32, #tpu.memory_space<vmem>>, vector<1x8x768xf32>,
    %c3 = arith.constant 3 : index
    %c0_17 = arith.constant 0 : index
    %c0_18 = arith.constant 0 : index
    %99 = vector.load %arg0[%c3, %c0_17, %c0_18] : memref<8x4x768xf32, #tpu.memory_space<vmem>>, vector<1x4x768xf32>
    %100 = vector.shape_cast %99 : vector<1x4x768xf32> to vector<4x768xf32>
    %101 = vector.extract_strided_slice %1 {offsets = [0, 0], sizes = [8, 1], strides = [1, 1]} : vector<8x4xf32> to vector<8x1xf32>
    %102 = vector.extract_strided_slice %100 {offsets = [0, 0], sizes = [1, 768], strides = [1, 1]} : vector<4x768xf32> to vector<1x768xf32>
    %103 = vector.broadcast %101 : vector<8x1xf32> to vector<8x768xf32>
    %104 = vector.broadcast %102 : vector<1x768xf32> to vector<8x768xf32>
    %105 = arith.mulf %103, %104 : vector<8x768xf32>
    %106 = vector.broadcast %2 : vector<8x1xf32> to vector<8x768xf32>
    %107 = arith.addf %106, %105 : vector<8x768xf32>
    %108 = vector.extract_strided_slice %1 {offsets = [0, 1], sizes = [8, 1], strides = [1, 1]} : vector<8x4xf32> to vector<8x1xf32>
    %109 = vector.extract_strided_slice %100 {offsets = [1, 0], sizes = [1, 768], strides = [1, 1]} : vector<4x768xf32> to vector<1x768xf32>
    %110 = vector.broadcast %108 : vector<8x1xf32> to vector<8x768xf32>
    %111 = vector.broadcast %109 : vector<1x768xf32> to vector<8x768xf32>
    %112 = arith.mulf %110, %111 : vector<8x768xf32>
    %113 = arith.addf %107, %112 : vector<8x768xf32>
    %114 = vector.extract_strided_slice %1 {offsets = [0, 2], sizes = [8, 1], strides = [1, 1]} : vector<8x4xf32> to vector<8x1xf32>
    %115 = vector.extract_strided_slice %100 {offsets = [2, 0], sizes = [1, 768], strides = [1, 1]} : vector<4x768xf32> to vector<1x768xf32>
    %116 = vector.broadcast %114 : vector<8x1xf32> to vector<8x768xf32>
    %117 = vector.broadcast %115 : vector<1x768xf32> to vector<8x768xf32>
    %118 = arith.mulf %116, %117 : vector<8x768xf32>
    %119 = arith.addf %113, %118 : vector<8x768xf32>
    %120 = vector.extract_strided_slice %1 {offsets = [0, 3], sizes = [8, 1], strides = [1, 1]} : vector<8x4xf32> to vector<8x1xf32>
    %121 = vector.extract_strided_slice %100 {offsets = [3, 0], sizes = [1, 768], strides = [1, 1]} : vector<4x768xf32> to vector<1x768xf32>
    %122 = vector.broadcast %120 : vector<8x1xf32> to vector<8x768xf32>
    %123 = vector.broadcast %121 : vector<1x768xf32> to vector<8x768xf32>
    %124 = arith.mulf %122, %123 : vector<8x768xf32>
    %125 = arith.addf %119, %124 : vector<8x768xf32>
    %c3_19 = arith.constant 3 : index
    %c0_20 = arith.constant 0 : index
    %c0_21 = arith.constant 0 : index
    %126 = vector.load %arg8[%c3_19, %c0_20, %c0_21] : memref<8x8x768xf32, #tpu.memory_space<vmem>>, vector<1x8x768xf32>
    %127 = vector.shape_cast %126 : vector<1x8x768xf32> to vector<8x768xf32>
    %128 = vector.shape_cast %125 : vector<8x768xf32> to vector<1x8x768xf32>
    tpu.vector_store %arg8[%c3_19, %c0_20, %c0_21], %128 {strides = array<i32>} : memref<8x8x768xf32, #tpu.memory_space<vmem>>, vector<1x8x768xf32>,
    %c4 = arith.constant 4 : index
    %c0_22 = arith.constant 0 : index
    %c0_23 = arith.constant 0 : index
    %129 = vector.load %arg0[%c4, %c0_22, %c0_23] : memref<8x4x768xf32, #tpu.memory_space<vmem>>, vector<1x4x768xf32>
    %130 = vector.shape_cast %129 : vector<1x4x768xf32> to vector<4x768xf32>
    %131 = vector.extract_strided_slice %1 {offsets = [0, 0], sizes = [8, 1], strides = [1, 1]} : vector<8x4xf32> to vector<8x1xf32>
    %132 = vector.extract_strided_slice %130 {offsets = [0, 0], sizes = [1, 768], strides = [1, 1]} : vector<4x768xf32> to vector<1x768xf32>
    %133 = vector.broadcast %131 : vector<8x1xf32> to vector<8x768xf32>
    %134 = vector.broadcast %132 : vector<1x768xf32> to vector<8x768xf32>
    %135 = arith.mulf %133, %134 : vector<8x768xf32>
    %136 = vector.broadcast %2 : vector<8x1xf32> to vector<8x768xf32>
    %137 = arith.addf %136, %135 : vector<8x768xf32>
    %138 = vector.extract_strided_slice %1 {offsets = [0, 1], sizes = [8, 1], strides = [1, 1]} : vector<8x4xf32> to vector<8x1xf32>
    %139 = vector.extract_strided_slice %130 {offsets = [1, 0], sizes = [1, 768], strides = [1, 1]} : vector<4x768xf32> to vector<1x768xf32>
    %140 = vector.broadcast %138 : vector<8x1xf32> to vector<8x768xf32>
    %141 = vector.broadcast %139 : vector<1x768xf32> to vector<8x768xf32>
    %142 = arith.mulf %140, %141 : vector<8x768xf32>
    %143 = arith.addf %137, %142 : vector<8x768xf32>
    %144 = vector.extract_strided_slice %1 {offsets = [0, 2], sizes = [8, 1], strides = [1, 1]} : vector<8x4xf32> to vector<8x1xf32>
    %145 = vector.extract_strided_slice %130 {offsets = [2, 0], sizes = [1, 768], strides = [1, 1]} : vector<4x768xf32> to vector<1x768xf32>
    %146 = vector.broadcast %144 : vector<8x1xf32> to vector<8x768xf32>
    %147 = vector.broadcast %145 : vector<1x768xf32> to vector<8x768xf32>
    %148 = arith.mulf %146, %147 : vector<8x768xf32>
    %149 = arith.addf %143, %148 : vector<8x768xf32>
    %150 = vector.extract_strided_slice %1 {offsets = [0, 3], sizes = [8, 1], strides = [1, 1]} : vector<8x4xf32> to vector<8x1xf32>
    %151 = vector.extract_strided_slice %130 {offsets = [3, 0], sizes = [1, 768], strides = [1, 1]} : vector<4x768xf32> to vector<1x768xf32>
    %152 = vector.broadcast %150 : vector<8x1xf32> to vector<8x768xf32>
    %153 = vector.broadcast %151 : vector<1x768xf32> to vector<8x768xf32>
    %154 = arith.mulf %152, %153 : vector<8x768xf32>
    %155 = arith.addf %149, %154 : vector<8x768xf32>
    %c4_24 = arith.constant 4 : index
    %c0_25 = arith.constant 0 : index
    %c0_26 = arith.constant 0 : index
    %156 = vector.load %arg8[%c4_24, %c0_25, %c0_26] : memref<8x8x768xf32, #tpu.memory_space<vmem>>, vector<1x8x768xf32>
    %157 = vector.shape_cast %156 : vector<1x8x768xf32> to vector<8x768xf32>
    %158 = vector.shape_cast %155 : vector<8x768xf32> to vector<1x8x768xf32>
    tpu.vector_store %arg8[%c4_24, %c0_25, %c0_26], %158 {strides = array<i32>} : memref<8x8x768xf32, #tpu.memory_space<vmem>>, vector<1x8x768xf32>,
    %c5 = arith.constant 5 : index
    %c0_27 = arith.constant 0 : index
    %c0_28 = arith.constant 0 : index
    %159 = vector.load %arg0[%c5, %c0_27, %c0_28] : memref<8x4x768xf32, #tpu.memory_space<vmem>>, vector<1x4x768xf32>
    %160 = vector.shape_cast %159 : vector<1x4x768xf32> to vector<4x768xf32>
    %161 = vector.extract_strided_slice %1 {offsets = [0, 0], sizes = [8, 1], strides = [1, 1]} : vector<8x4xf32> to vector<8x1xf32>
    %162 = vector.extract_strided_slice %160 {offsets = [0, 0], sizes = [1, 768], strides = [1, 1]} : vector<4x768xf32> to vector<1x768xf32>
    %163 = vector.broadcast %161 : vector<8x1xf32> to vector<8x768xf32>
    %164 = vector.broadcast %162 : vector<1x768xf32> to vector<8x768xf32>
    %165 = arith.mulf %163, %164 : vector<8x768xf32>
    %166 = vector.broadcast %2 : vector<8x1xf32> to vector<8x768xf32>
    %167 = arith.addf %166, %165 : vector<8x768xf32>
    %168 = vector.extract_strided_slice %1 {offsets = [0, 1], sizes = [8, 1], strides = [1, 1]} : vector<8x4xf32> to vector<8x1xf32>
    %169 = vector.extract_strided_slice %160 {offsets = [1, 0], sizes = [1, 768], strides = [1, 1]} : vector<4x768xf32> to vector<1x768xf32>
    %170 = vector.broadcast %168 : vector<8x1xf32> to vector<8x768xf32>
    %171 = vector.broadcast %169 : vector<1x768xf32> to vector<8x768xf32>
    %172 = arith.mulf %170, %171 : vector<8x768xf32>
    %173 = arith.addf %167, %172 : vector<8x768xf32>
    %174 = vector.extract_strided_slice %1 {offsets = [0, 2], sizes = [8, 1], strides = [1, 1]} : vector<8x4xf32> to vector<8x1xf32>
    %175 = vector.extract_strided_slice %160 {offsets = [2, 0], sizes = [1, 768], strides = [1, 1]} : vector<4x768xf32> to vector<1x768xf32>
    %176 = vector.broadcast %174 : vector<8x1xf32> to vector<8x768xf32>
    %177 = vector.broadcast %175 : vector<1x768xf32> to vector<8x768xf32>
    %178 = arith.mulf %176, %177 : vector<8x768xf32>
    %179 = arith.addf %173, %178 : vector<8x768xf32>
    %180 = vector.extract_strided_slice %1 {offsets = [0, 3], sizes = [8, 1], strides = [1, 1]} : vector<8x4xf32> to vector<8x1xf32>
    %181 = vector.extract_strided_slice %160 {offsets = [3, 0], sizes = [1, 768], strides = [1, 1]} : vector<4x768xf32> to vector<1x768xf32>
    %182 = vector.broadcast %180 : vector<8x1xf32> to vector<8x768xf32>
    %183 = vector.broadcast %181 : vector<1x768xf32> to vector<8x768xf32>
    %184 = arith.mulf %182, %183 : vector<8x768xf32>
    %185 = arith.addf %179, %184 : vector<8x768xf32>
    %c5_29 = arith.constant 5 : index
    %c0_30 = arith.constant 0 : index
    %c0_31 = arith.constant 0 : index
    %186 = vector.load %arg8[%c5_29, %c0_30, %c0_31] : memref<8x8x768xf32, #tpu.memory_space<vmem>>, vector<1x8x768xf32>
    %187 = vector.shape_cast %186 : vector<1x8x768xf32> to vector<8x768xf32>
    %188 = vector.shape_cast %185 : vector<8x768xf32> to vector<1x8x768xf32>
    tpu.vector_store %arg8[%c5_29, %c0_30, %c0_31], %188 {strides = array<i32>} : memref<8x8x768xf32, #tpu.memory_space<vmem>>, vector<1x8x768xf32>,
    %c6 = arith.constant 6 : index
    %c0_32 = arith.constant 0 : index
    %c0_33 = arith.constant 0 : index
    %189 = vector.load %arg0[%c6, %c0_32, %c0_33] : memref<8x4x768xf32, #tpu.memory_space<vmem>>, vector<1x4x768xf32>
    %190 = vector.shape_cast %189 : vector<1x4x768xf32> to vector<4x768xf32>
    %191 = vector.extract_strided_slice %1 {offsets = [0, 0], sizes = [8, 1], strides = [1, 1]} : vector<8x4xf32> to vector<8x1xf32>
    %192 = vector.extract_strided_slice %190 {offsets = [0, 0], sizes = [1, 768], strides = [1, 1]} : vector<4x768xf32> to vector<1x768xf32>
    %193 = vector.broadcast %191 : vector<8x1xf32> to vector<8x768xf32>
    %194 = vector.broadcast %192 : vector<1x768xf32> to vector<8x768xf32>
    %195 = arith.mulf %193, %194 : vector<8x768xf32>
    %196 = vector.broadcast %2 : vector<8x1xf32> to vector<8x768xf32>
    %197 = arith.addf %196, %195 : vector<8x768xf32>
    %198 = vector.extract_strided_slice %1 {offsets = [0, 1], sizes = [8, 1], strides = [1, 1]} : vector<8x4xf32> to vector<8x1xf32>
    %199 = vector.extract_strided_slice %190 {offsets = [1, 0], sizes = [1, 768], strides = [1, 1]} : vector<4x768xf32> to vector<1x768xf32>
    %200 = vector.broadcast %198 : vector<8x1xf32> to vector<8x768xf32>
    %201 = vector.broadcast %199 : vector<1x768xf32> to vector<8x768xf32>
    %202 = arith.mulf %200, %201 : vector<8x768xf32>
    %203 = arith.addf %197, %202 : vector<8x768xf32>
    %204 = vector.extract_strided_slice %1 {offsets = [0, 2], sizes = [8, 1], strides = [1, 1]} : vector<8x4xf32> to vector<8x1xf32>
    %205 = vector.extract_strided_slice %190 {offsets = [2, 0], sizes = [1, 768], strides = [1, 1]} : vector<4x768xf32> to vector<1x768xf32>
    %206 = vector.broadcast %204 : vector<8x1xf32> to vector<8x768xf32>
    %207 = vector.broadcast %205 : vector<1x768xf32> to vector<8x768xf32>
    %208 = arith.mulf %206, %207 : vector<8x768xf32>
    %209 = arith.addf %203, %208 : vector<8x768xf32>
    %210 = vector.extract_strided_slice %1 {offsets = [0, 3], sizes = [8, 1], strides = [1, 1]} : vector<8x4xf32> to vector<8x1xf32>
    %211 = vector.extract_strided_slice %190 {offsets = [3, 0], sizes = [1, 768], strides = [1, 1]} : vector<4x768xf32> to vector<1x768xf32>
    %212 = vector.broadcast %210 : vector<8x1xf32> to vector<8x768xf32>
    %213 = vector.broadcast %211 : vector<1x768xf32> to vector<8x768xf32>
    %214 = arith.mulf %212, %213 : vector<8x768xf32>
    %215 = arith.addf %209, %214 : vector<8x768xf32>
    %c6_34 = arith.constant 6 : index
    %c0_35 = arith.constant 0 : index
    %c0_36 = arith.constant 0 : index
    %216 = vector.load %arg8[%c6_34, %c0_35, %c0_36] : memref<8x8x768xf32, #tpu.memory_space<vmem>>, vector<1x8x768xf32>
    %217 = vector.shape_cast %216 : vector<1x8x768xf32> to vector<8x768xf32>
    %218 = vector.shape_cast %215 : vector<8x768xf32> to vector<1x8x768xf32>
    tpu.vector_store %arg8[%c6_34, %c0_35, %c0_36], %218 {strides = array<i32>} : memref<8x8x768xf32, #tpu.memory_space<vmem>>, vector<1x8x768xf32>,
    %c7 = arith.constant 7 : index
    %c0_37 = arith.constant 0 : index
    %c0_38 = arith.constant 0 : index
    %219 = vector.load %arg0[%c7, %c0_37, %c0_38] : memref<8x4x768xf32, #tpu.memory_space<vmem>>, vector<1x4x768xf32>
    %220 = vector.shape_cast %219 : vector<1x4x768xf32> to vector<4x768xf32>
    %221 = vector.extract_strided_slice %1 {offsets = [0, 0], sizes = [8, 1], strides = [1, 1]} : vector<8x4xf32> to vector<8x1xf32>
    %222 = vector.extract_strided_slice %220 {offsets = [0, 0], sizes = [1, 768], strides = [1, 1]} : vector<4x768xf32> to vector<1x768xf32>
    %223 = vector.broadcast %221 : vector<8x1xf32> to vector<8x768xf32>
    %224 = vector.broadcast %222 : vector<1x768xf32> to vector<8x768xf32>
    %225 = arith.mulf %223, %224 : vector<8x768xf32>
    %226 = vector.broadcast %2 : vector<8x1xf32> to vector<8x768xf32>
    %227 = arith.addf %226, %225 : vector<8x768xf32>
    %228 = vector.extract_strided_slice %1 {offsets = [0, 1], sizes = [8, 1], strides = [1, 1]} : vector<8x4xf32> to vector<8x1xf32>
    %229 = vector.extract_strided_slice %220 {offsets = [1, 0], sizes = [1, 768], strides = [1, 1]} : vector<4x768xf32> to vector<1x768xf32>
    %230 = vector.broadcast %228 : vector<8x1xf32> to vector<8x768xf32>
    %231 = vector.broadcast %229 : vector<1x768xf32> to vector<8x768xf32>
    %232 = arith.mulf %230, %231 : vector<8x768xf32>
    %233 = arith.addf %227, %232 : vector<8x768xf32>
    %234 = vector.extract_strided_slice %1 {offsets = [0, 2], sizes = [8, 1], strides = [1, 1]} : vector<8x4xf32> to vector<8x1xf32>
    %235 = vector.extract_strided_slice %220 {offsets = [2, 0], sizes = [1, 768], strides = [1, 1]} : vector<4x768xf32> to vector<1x768xf32>
    %236 = vector.broadcast %234 : vector<8x1xf32> to vector<8x768xf32>
    %237 = vector.broadcast %235 : vector<1x768xf32> to vector<8x768xf32>
    %238 = arith.mulf %236, %237 : vector<8x768xf32>
    %239 = arith.addf %233, %238 : vector<8x768xf32>
    %240 = vector.extract_strided_slice %1 {offsets = [0, 3], sizes = [8, 1], strides = [1, 1]} : vector<8x4xf32> to vector<8x1xf32>
    %241 = vector.extract_strided_slice %220 {offsets = [3, 0], sizes = [1, 768], strides = [1, 1]} : vector<4x768xf32> to vector<1x768xf32>
    %242 = vector.broadcast %240 : vector<8x1xf32> to vector<8x768xf32>
    %243 = vector.broadcast %241 : vector<1x768xf32> to vector<8x768xf32>
    %244 = arith.mulf %242, %243 : vector<8x768xf32>
    %245 = arith.addf %239, %244 : vector<8x768xf32>
    %c7_39 = arith.constant 7 : index
    %c0_40 = arith.constant 0 : index
    %c0_41 = arith.constant 0 : index
    %246 = vector.load %arg8[%c7_39, %c0_40, %c0_41] : memref<8x8x768xf32, #tpu.memory_space<vmem>>, vector<1x8x768xf32>
    %247 = vector.shape_cast %246 : vector<1x8x768xf32> to vector<8x768xf32>
    %248 = vector.shape_cast %245 : vector<8x768xf32> to vector<1x8x768xf32>
    tpu.vector_store %arg8[%c7_39, %c0_40, %c0_41], %248 {strides = array<i32>} : memref<8x8x768xf32, #tpu.memory_space<vmem>>, vector<1x8x768xf32>,
    %c0_42 = arith.constant 0 : index
    %c0_43 = arith.constant 0 : index
    %c0_44 = arith.constant 0 : index
    %249 = vector.load %arg8[%c0_42, %c0_43, %c0_44] : memref<8x8x768xf32, #tpu.memory_space<vmem>>, vector<1x8x768xf32>
    %250 = vector.shape_cast %249 : vector<1x8x768xf32> to vector<8x768xf32>
    %251 = math.tanh %250 : vector<8x768xf32>
    %cst = arith.constant 5.000000e-01 : f32
    %252 = vector.broadcast %cst : f32 to vector<8x768xf32>
    %253 = arith.mulf %252, %251 : vector<8x768xf32>
    %cst_45 = arith.constant 5.000000e-01 : f32
    %254 = vector.broadcast %cst_45 : f32 to vector<8x768xf32>
    %255 = arith.addf %253, %254 : vector<8x768xf32>
    %256 = vector.extract_strided_slice %255 {offsets = [0, 0], sizes = [2, 768], strides = [1, 1]} : vector<8x768xf32> to vector<2x768xf32>
    %257 = vector.extract_strided_slice %251 {offsets = [4, 0], sizes = [2, 768], strides = [1, 1]} : vector<8x768xf32> to vector<2x768xf32>
    %258 = arith.mulf %256, %257 : vector<2x768xf32>
    %259 = vector.extract_strided_slice %255 {offsets = [6, 0], sizes = [2, 768], strides = [1, 1]} : vector<8x768xf32> to vector<2x768xf32>
    %260 = math.tanh %258 : vector<2x768xf32>
    %261 = arith.mulf %259, %260 : vector<2x768xf32>
    %c1_46 = arith.constant 1 : index
    %c0_47 = arith.constant 0 : index
    %c0_48 = arith.constant 0 : index
    %262 = vector.load %arg8[%c1_46, %c0_47, %c0_48] : memref<8x8x768xf32, #tpu.memory_space<vmem>>, vector<1x8x768xf32>
    %263 = vector.shape_cast %262 : vector<1x8x768xf32> to vector<8x768xf32>
    %264 = vector.extract_strided_slice %261 {offsets = [0, 0], sizes = [1, 768], strides = [1, 1]} : vector<2x768xf32> to vector<1x768xf32>
    %265 = vector.broadcast %3 : vector<8x1xf32> to vector<8x768xf32>
    %266 = vector.broadcast %264 : vector<1x768xf32> to vector<8x768xf32>
    %267 = arith.mulf %265, %266 : vector<8x768xf32>
    %268 = arith.addf %263, %267 : vector<8x768xf32>
    %269 = vector.extract_strided_slice %261 {offsets = [1, 0], sizes = [1, 768], strides = [1, 1]} : vector<2x768xf32> to vector<1x768xf32>
    %270 = vector.broadcast %4 : vector<8x1xf32> to vector<8x768xf32>
    %271 = vector.broadcast %269 : vector<1x768xf32> to vector<8x768xf32>
    %272 = arith.mulf %270, %271 : vector<8x768xf32>
    %273 = arith.addf %268, %272 : vector<8x768xf32>
    %274 = math.tanh %273 : vector<8x768xf32>
    %cst_49 = arith.constant 5.000000e-01 : f32
    %275 = vector.broadcast %cst_49 : f32 to vector<8x768xf32>
    %276 = arith.mulf %275, %274 : vector<8x768xf32>
    %cst_50 = arith.constant 5.000000e-01 : f32
    %277 = vector.broadcast %cst_50 : f32 to vector<8x768xf32>
    %278 = arith.addf %276, %277 : vector<8x768xf32>
    %279 = vector.extract_strided_slice %278 {offsets = [2, 0], sizes = [2, 768], strides = [1, 1]} : vector<8x768xf32> to vector<2x768xf32>
    %280 = arith.mulf %279, %258 : vector<2x768xf32>
    %281 = vector.extract_strided_slice %278 {offsets = [0, 0], sizes = [2, 768], strides = [1, 1]} : vector<8x768xf32> to vector<2x768xf32>
    %282 = vector.extract_strided_slice %274 {offsets = [4, 0], sizes = [2, 768], strides = [1, 1]} : vector<8x768xf32> to vector<2x768xf32>
    %283 = arith.mulf %281, %282 : vector<2x768xf32>
    %284 = arith.addf %280, %283 : vector<2x768xf32>
    %285 = vector.extract_strided_slice %278 {offsets = [6, 0], sizes = [2, 768], strides = [1, 1]} : vector<8x768xf32> to vector<2x768xf32>
    %286 = math.tanh %284 : vector<2x768xf32>
    %287 = arith.mulf %285, %286 : vector<2x768xf32>
    %288 = vector.extract_strided_slice %287 {offsets = [0, 0], sizes = [1, 768], strides = [1, 1]} : vector<2x768xf32> to vector<1x768xf32>
    %c0_51 = arith.constant 0 : index
    %c0_52 = arith.constant 0 : index
    %289 = vector.load %arg7[%c0_51, %c0_52] : memref<8x768xf32, #tpu.memory_space<vmem>>, vector<1x768xf32>
    tpu.vector_store %arg7[%c0_51, %c0_52], %288 {strides = array<i32>} : memref<8x768xf32, #tpu.memory_space<vmem>>, vector<1x768xf32>,
    %c2_53 = arith.constant 2 : index
    %c0_54 = arith.constant 0 : index
    %c0_55 = arith.constant 0 : index
    %290 = vector.load %arg8[%c2_53, %c0_54, %c0_55] : memref<8x8x768xf32, #tpu.memory_space<vmem>>, vector<1x8x768xf32>
    %291 = vector.shape_cast %290 : vector<1x8x768xf32> to vector<8x768xf32>
    %292 = vector.extract_strided_slice %287 {offsets = [0, 0], sizes = [1, 768], strides = [1, 1]} : vector<2x768xf32> to vector<1x768xf32>
    %293 = vector.broadcast %3 : vector<8x1xf32> to vector<8x768xf32>
    %294 = vector.broadcast %292 : vector<1x768xf32> to vector<8x768xf32>
    %295 = arith.mulf %293, %294 : vector<8x768xf32>
    %296 = arith.addf %291, %295 : vector<8x768xf32>
    %297 = vector.extract_strided_slice %287 {offsets = [1, 0], sizes = [1, 768], strides = [1, 1]} : vector<2x768xf32> to vector<1x768xf32>
    %298 = vector.broadcast %4 : vector<8x1xf32> to vector<8x768xf32>
    %299 = vector.broadcast %297 : vector<1x768xf32> to vector<8x768xf32>
    %300 = arith.mulf %298, %299 : vector<8x768xf32>
    %301 = arith.addf %296, %300 : vector<8x768xf32>
    %302 = math.tanh %301 : vector<8x768xf32>
    %cst_56 = arith.constant 5.000000e-01 : f32
    %303 = vector.broadcast %cst_56 : f32 to vector<8x768xf32>
    %304 = arith.mulf %303, %302 : vector<8x768xf32>
    %cst_57 = arith.constant 5.000000e-01 : f32
    %305 = vector.broadcast %cst_57 : f32 to vector<8x768xf32>
    %306 = arith.addf %304, %305 : vector<8x768xf32>
    %307 = vector.extract_strided_slice %306 {offsets = [2, 0], sizes = [2, 768], strides = [1, 1]} : vector<8x768xf32> to vector<2x768xf32>
    %308 = arith.mulf %307, %284 : vector<2x768xf32>
    %309 = vector.extract_strided_slice %306 {offsets = [0, 0], sizes = [2, 768], strides = [1, 1]} : vector<8x768xf32> to vector<2x768xf32>
    %310 = vector.extract_strided_slice %302 {offsets = [4, 0], sizes = [2, 768], strides = [1, 1]} : vector<8x768xf32> to vector<2x768xf32>
    %311 = arith.mulf %309, %310 : vector<2x768xf32>
    %312 = arith.addf %308, %311 : vector<2x768xf32>
    %313 = vector.extract_strided_slice %306 {offsets = [6, 0], sizes = [2, 768], strides = [1, 1]} : vector<8x768xf32> to vector<2x768xf32>
    %314 = math.tanh %312 : vector<2x768xf32>
    %315 = arith.mulf %313, %314 : vector<2x768xf32>
    %316 = vector.extract_strided_slice %315 {offsets = [0, 0], sizes = [1, 768], strides = [1, 1]} : vector<2x768xf32> to vector<1x768xf32>
    %c1_58 = arith.constant 1 : index
    %c0_59 = arith.constant 0 : index
    %317 = vector.load %arg7[%c1_58, %c0_59] : memref<8x768xf32, #tpu.memory_space<vmem>>, vector<1x768xf32>
    tpu.vector_store %arg7[%c1_58, %c0_59], %316 {strides = array<i32>} : memref<8x768xf32, #tpu.memory_space<vmem>>, vector<1x768xf32>,
    %c3_60 = arith.constant 3 : index
    %c0_61 = arith.constant 0 : index
    %c0_62 = arith.constant 0 : index
    %318 = vector.load %arg8[%c3_60, %c0_61, %c0_62] : memref<8x8x768xf32, #tpu.memory_space<vmem>>, vector<1x8x768xf32>
    %319 = vector.shape_cast %318 : vector<1x8x768xf32> to vector<8x768xf32>
    %320 = vector.extract_strided_slice %315 {offsets = [0, 0], sizes = [1, 768], strides = [1, 1]} : vector<2x768xf32> to vector<1x768xf32>
    %321 = vector.broadcast %3 : vector<8x1xf32> to vector<8x768xf32>
    %322 = vector.broadcast %320 : vector<1x768xf32> to vector<8x768xf32>
    %323 = arith.mulf %321, %322 : vector<8x768xf32>
    %324 = arith.addf %319, %323 : vector<8x768xf32>
    %325 = vector.extract_strided_slice %315 {offsets = [1, 0], sizes = [1, 768], strides = [1, 1]} : vector<2x768xf32> to vector<1x768xf32>
    %326 = vector.broadcast %4 : vector<8x1xf32> to vector<8x768xf32>
    %327 = vector.broadcast %325 : vector<1x768xf32> to vector<8x768xf32>
    %328 = arith.mulf %326, %327 : vector<8x768xf32>
    %329 = arith.addf %324, %328 : vector<8x768xf32>
    %330 = math.tanh %329 : vector<8x768xf32>
    %cst_63 = arith.constant 5.000000e-01 : f32
    %331 = vector.broadcast %cst_63 : f32 to vector<8x768xf32>
    %332 = arith.mulf %331, %330 : vector<8x768xf32>
    %cst_64 = arith.constant 5.000000e-01 : f32
    %333 = vector.broadcast %cst_64 : f32 to vector<8x768xf32>
    %334 = arith.addf %332, %333 : vector<8x768xf32>
    %335 = vector.extract_strided_slice %334 {offsets = [2, 0], sizes = [2, 768], strides = [1, 1]} : vector<8x768xf32> to vector<2x768xf32>
    %336 = arith.mulf %335, %312 : vector<2x768xf32>
    %337 = vector.extract_strided_slice %334 {offsets = [0, 0], sizes = [2, 768], strides = [1, 1]} : vector<8x768xf32> to vector<2x768xf32>
    %338 = vector.extract_strided_slice %330 {offsets = [4, 0], sizes = [2, 768], strides = [1, 1]} : vector<8x768xf32> to vector<2x768xf32>
    %339 = arith.mulf %337, %338 : vector<2x768xf32>
    %340 = arith.addf %336, %339 : vector<2x768xf32>
    %341 = vector.extract_strided_slice %334 {offsets = [6, 0], sizes = [2, 768], strides = [1, 1]} : vector<8x768xf32> to vector<2x768xf32>
    %342 = math.tanh %340 : vector<2x768xf32>
    %343 = arith.mulf %341, %342 : vector<2x768xf32>
    %344 = vector.extract_strided_slice %343 {offsets = [0, 0], sizes = [1, 768], strides = [1, 1]} : vector<2x768xf32> to vector<1x768xf32>
    %c2_65 = arith.constant 2 : index
    %c0_66 = arith.constant 0 : index
    %345 = vector.load %arg7[%c2_65, %c0_66] : memref<8x768xf32, #tpu.memory_space<vmem>>, vector<1x768xf32>
    tpu.vector_store %arg7[%c2_65, %c0_66], %344 {strides = array<i32>} : memref<8x768xf32, #tpu.memory_space<vmem>>, vector<1x768xf32>,
    %c4_67 = arith.constant 4 : index
    %c0_68 = arith.constant 0 : index
    %c0_69 = arith.constant 0 : index
    %346 = vector.load %arg8[%c4_67, %c0_68, %c0_69] : memref<8x8x768xf32, #tpu.memory_space<vmem>>, vector<1x8x768xf32>
    %347 = vector.shape_cast %346 : vector<1x8x768xf32> to vector<8x768xf32>
    %348 = vector.extract_strided_slice %343 {offsets = [0, 0], sizes = [1, 768], strides = [1, 1]} : vector<2x768xf32> to vector<1x768xf32>
    %349 = vector.broadcast %3 : vector<8x1xf32> to vector<8x768xf32>
    %350 = vector.broadcast %348 : vector<1x768xf32> to vector<8x768xf32>
    %351 = arith.mulf %349, %350 : vector<8x768xf32>
    %352 = arith.addf %347, %351 : vector<8x768xf32>
    %353 = vector.extract_strided_slice %343 {offsets = [1, 0], sizes = [1, 768], strides = [1, 1]} : vector<2x768xf32> to vector<1x768xf32>
    %354 = vector.broadcast %4 : vector<8x1xf32> to vector<8x768xf32>
    %355 = vector.broadcast %353 : vector<1x768xf32> to vector<8x768xf32>
    %356 = arith.mulf %354, %355 : vector<8x768xf32>
    %357 = arith.addf %352, %356 : vector<8x768xf32>
    %358 = math.tanh %357 : vector<8x768xf32>
    %cst_70 = arith.constant 5.000000e-01 : f32
    %359 = vector.broadcast %cst_70 : f32 to vector<8x768xf32>
    %360 = arith.mulf %359, %358 : vector<8x768xf32>
    %cst_71 = arith.constant 5.000000e-01 : f32
    %361 = vector.broadcast %cst_71 : f32 to vector<8x768xf32>
    %362 = arith.addf %360, %361 : vector<8x768xf32>
    %363 = vector.extract_strided_slice %362 {offsets = [2, 0], sizes = [2, 768], strides = [1, 1]} : vector<8x768xf32> to vector<2x768xf32>
    %364 = arith.mulf %363, %340 : vector<2x768xf32>
    %365 = vector.extract_strided_slice %362 {offsets = [0, 0], sizes = [2, 768], strides = [1, 1]} : vector<8x768xf32> to vector<2x768xf32>
    %366 = vector.extract_strided_slice %358 {offsets = [4, 0], sizes = [2, 768], strides = [1, 1]} : vector<8x768xf32> to vector<2x768xf32>
    %367 = arith.mulf %365, %366 : vector<2x768xf32>
    %368 = arith.addf %364, %367 : vector<2x768xf32>
    %369 = vector.extract_strided_slice %362 {offsets = [6, 0], sizes = [2, 768], strides = [1, 1]} : vector<8x768xf32> to vector<2x768xf32>
    %370 = math.tanh %368 : vector<2x768xf32>
    %371 = arith.mulf %369, %370 : vector<2x768xf32>
    %372 = vector.extract_strided_slice %371 {offsets = [0, 0], sizes = [1, 768], strides = [1, 1]} : vector<2x768xf32> to vector<1x768xf32>
    %c3_72 = arith.constant 3 : index
    %c0_73 = arith.constant 0 : index
    %373 = vector.load %arg7[%c3_72, %c0_73] : memref<8x768xf32, #tpu.memory_space<vmem>>, vector<1x768xf32>
    tpu.vector_store %arg7[%c3_72, %c0_73], %372 {strides = array<i32>} : memref<8x768xf32, #tpu.memory_space<vmem>>, vector<1x768xf32>,
    %c5_74 = arith.constant 5 : index
    %c0_75 = arith.constant 0 : index
    %c0_76 = arith.constant 0 : index
    %374 = vector.load %arg8[%c5_74, %c0_75, %c0_76] : memref<8x8x768xf32, #tpu.memory_space<vmem>>, vector<1x8x768xf32>
    %375 = vector.shape_cast %374 : vector<1x8x768xf32> to vector<8x768xf32>
    %376 = vector.extract_strided_slice %371 {offsets = [0, 0], sizes = [1, 768], strides = [1, 1]} : vector<2x768xf32> to vector<1x768xf32>
    %377 = vector.broadcast %3 : vector<8x1xf32> to vector<8x768xf32>
    %378 = vector.broadcast %376 : vector<1x768xf32> to vector<8x768xf32>
    %379 = arith.mulf %377, %378 : vector<8x768xf32>
    %380 = arith.addf %375, %379 : vector<8x768xf32>
    %381 = vector.extract_strided_slice %371 {offsets = [1, 0], sizes = [1, 768], strides = [1, 1]} : vector<2x768xf32> to vector<1x768xf32>
    %382 = vector.broadcast %4 : vector<8x1xf32> to vector<8x768xf32>
    %383 = vector.broadcast %381 : vector<1x768xf32> to vector<8x768xf32>
    %384 = arith.mulf %382, %383 : vector<8x768xf32>
    %385 = arith.addf %380, %384 : vector<8x768xf32>
    %386 = math.tanh %385 : vector<8x768xf32>
    %cst_77 = arith.constant 5.000000e-01 : f32
    %387 = vector.broadcast %cst_77 : f32 to vector<8x768xf32>
    %388 = arith.mulf %387, %386 : vector<8x768xf32>
    %cst_78 = arith.constant 5.000000e-01 : f32
    %389 = vector.broadcast %cst_78 : f32 to vector<8x768xf32>
    %390 = arith.addf %388, %389 : vector<8x768xf32>
    %391 = vector.extract_strided_slice %390 {offsets = [2, 0], sizes = [2, 768], strides = [1, 1]} : vector<8x768xf32> to vector<2x768xf32>
    %392 = arith.mulf %391, %368 : vector<2x768xf32>
    %393 = vector.extract_strided_slice %390 {offsets = [0, 0], sizes = [2, 768], strides = [1, 1]} : vector<8x768xf32> to vector<2x768xf32>
    %394 = vector.extract_strided_slice %386 {offsets = [4, 0], sizes = [2, 768], strides = [1, 1]} : vector<8x768xf32> to vector<2x768xf32>
    %395 = arith.mulf %393, %394 : vector<2x768xf32>
    %396 = arith.addf %392, %395 : vector<2x768xf32>
    %397 = vector.extract_strided_slice %390 {offsets = [6, 0], sizes = [2, 768], strides = [1, 1]} : vector<8x768xf32> to vector<2x768xf32>
    %398 = math.tanh %396 : vector<2x768xf32>
    %399 = arith.mulf %397, %398 : vector<2x768xf32>
    %400 = vector.extract_strided_slice %399 {offsets = [0, 0], sizes = [1, 768], strides = [1, 1]} : vector<2x768xf32> to vector<1x768xf32>
    %c4_79 = arith.constant 4 : index
    %c0_80 = arith.constant 0 : index
    %401 = vector.load %arg7[%c4_79, %c0_80] : memref<8x768xf32, #tpu.memory_space<vmem>>, vector<1x768xf32>
    tpu.vector_store %arg7[%c4_79, %c0_80], %400 {strides = array<i32>} : memref<8x768xf32, #tpu.memory_space<vmem>>, vector<1x768xf32>,
    %c6_81 = arith.constant 6 : index
    %c0_82 = arith.constant 0 : index
    %c0_83 = arith.constant 0 : index
    %402 = vector.load %arg8[%c6_81, %c0_82, %c0_83] : memref<8x8x768xf32, #tpu.memory_space<vmem>>, vector<1x8x768xf32>
    %403 = vector.shape_cast %402 : vector<1x8x768xf32> to vector<8x768xf32>
    %404 = vector.extract_strided_slice %399 {offsets = [0, 0], sizes = [1, 768], strides = [1, 1]} : vector<2x768xf32> to vector<1x768xf32>
    %405 = vector.broadcast %3 : vector<8x1xf32> to vector<8x768xf32>
    %406 = vector.broadcast %404 : vector<1x768xf32> to vector<8x768xf32>
    %407 = arith.mulf %405, %406 : vector<8x768xf32>
    %408 = arith.addf %403, %407 : vector<8x768xf32>
    %409 = vector.extract_strided_slice %399 {offsets = [1, 0], sizes = [1, 768], strides = [1, 1]} : vector<2x768xf32> to vector<1x768xf32>
    %410 = vector.broadcast %4 : vector<8x1xf32> to vector<8x768xf32>
    %411 = vector.broadcast %409 : vector<1x768xf32> to vector<8x768xf32>
    %412 = arith.mulf %410, %411 : vector<8x768xf32>
    %413 = arith.addf %408, %412 : vector<8x768xf32>
    %414 = math.tanh %413 : vector<8x768xf32>
    %cst_84 = arith.constant 5.000000e-01 : f32
    %415 = vector.broadcast %cst_84 : f32 to vector<8x768xf32>
    %416 = arith.mulf %415, %414 : vector<8x768xf32>
    %cst_85 = arith.constant 5.000000e-01 : f32
    %417 = vector.broadcast %cst_85 : f32 to vector<8x768xf32>
    %418 = arith.addf %416, %417 : vector<8x768xf32>
    %419 = vector.extract_strided_slice %418 {offsets = [2, 0], sizes = [2, 768], strides = [1, 1]} : vector<8x768xf32> to vector<2x768xf32>
    %420 = arith.mulf %419, %396 : vector<2x768xf32>
    %421 = vector.extract_strided_slice %418 {offsets = [0, 0], sizes = [2, 768], strides = [1, 1]} : vector<8x768xf32> to vector<2x768xf32>
    %422 = vector.extract_strided_slice %414 {offsets = [4, 0], sizes = [2, 768], strides = [1, 1]} : vector<8x768xf32> to vector<2x768xf32>
    %423 = arith.mulf %421, %422 : vector<2x768xf32>
    %424 = arith.addf %420, %423 : vector<2x768xf32>
    %425 = vector.extract_strided_slice %418 {offsets = [6, 0], sizes = [2, 768], strides = [1, 1]} : vector<8x768xf32> to vector<2x768xf32>
    %426 = math.tanh %424 : vector<2x768xf32>
    %427 = arith.mulf %425, %426 : vector<2x768xf32>
    %428 = vector.extract_strided_slice %427 {offsets = [0, 0], sizes = [1, 768], strides = [1, 1]} : vector<2x768xf32> to vector<1x768xf32>
    %c5_86 = arith.constant 5 : index
    %c0_87 = arith.constant 0 : index
    %429 = vector.load %arg7[%c5_86, %c0_87] : memref<8x768xf32, #tpu.memory_space<vmem>>, vector<1x768xf32>
    tpu.vector_store %arg7[%c5_86, %c0_87], %428 {strides = array<i32>} : memref<8x768xf32, #tpu.memory_space<vmem>>, vector<1x768xf32>,
    %c7_88 = arith.constant 7 : index
    %c0_89 = arith.constant 0 : index
    %c0_90 = arith.constant 0 : index
    %430 = vector.load %arg8[%c7_88, %c0_89, %c0_90] : memref<8x8x768xf32, #tpu.memory_space<vmem>>, vector<1x8x768xf32>
    %431 = vector.shape_cast %430 : vector<1x8x768xf32> to vector<8x768xf32>
    %432 = vector.extract_strided_slice %427 {offsets = [0, 0], sizes = [1, 768], strides = [1, 1]} : vector<2x768xf32> to vector<1x768xf32>
    %433 = vector.broadcast %3 : vector<8x1xf32> to vector<8x768xf32>
    %434 = vector.broadcast %432 : vector<1x768xf32> to vector<8x768xf32>
    %435 = arith.mulf %433, %434 : vector<8x768xf32>
    %436 = arith.addf %431, %435 : vector<8x768xf32>
    %437 = vector.extract_strided_slice %427 {offsets = [1, 0], sizes = [1, 768], strides = [1, 1]} : vector<2x768xf32> to vector<1x768xf32>
    %438 = vector.broadcast %4 : vector<8x1xf32> to vector<8x768xf32>
    %439 = vector.broadcast %437 : vector<1x768xf32> to vector<8x768xf32>
    %440 = arith.mulf %438, %439 : vector<8x768xf32>
    %441 = arith.addf %436, %440 : vector<8x768xf32>
    %442 = math.tanh %441 : vector<8x768xf32>
    %cst_91 = arith.constant 5.000000e-01 : f32
    %443 = vector.broadcast %cst_91 : f32 to vector<8x768xf32>
    %444 = arith.mulf %443, %442 : vector<8x768xf32>
    %cst_92 = arith.constant 5.000000e-01 : f32
    %445 = vector.broadcast %cst_92 : f32 to vector<8x768xf32>
    %446 = arith.addf %444, %445 : vector<8x768xf32>
    %447 = vector.extract_strided_slice %446 {offsets = [2, 0], sizes = [2, 768], strides = [1, 1]} : vector<8x768xf32> to vector<2x768xf32>
    %448 = arith.mulf %447, %424 : vector<2x768xf32>
    %449 = vector.extract_strided_slice %446 {offsets = [0, 0], sizes = [2, 768], strides = [1, 1]} : vector<8x768xf32> to vector<2x768xf32>
    %450 = vector.extract_strided_slice %442 {offsets = [4, 0], sizes = [2, 768], strides = [1, 1]} : vector<8x768xf32> to vector<2x768xf32>
    %451 = arith.mulf %449, %450 : vector<2x768xf32>
    %452 = arith.addf %448, %451 : vector<2x768xf32>
    %453 = vector.extract_strided_slice %446 {offsets = [6, 0], sizes = [2, 768], strides = [1, 1]} : vector<8x768xf32> to vector<2x768xf32>
    %454 = math.tanh %452 : vector<2x768xf32>
    %455 = arith.mulf %453, %454 : vector<2x768xf32>
    %456 = vector.extract_strided_slice %455 {offsets = [0, 0], sizes = [1, 768], strides = [1, 1]} : vector<2x768xf32> to vector<1x768xf32>
    %c6_93 = arith.constant 6 : index
    %c0_94 = arith.constant 0 : index
    %457 = vector.load %arg7[%c6_93, %c0_94] : memref<8x768xf32, #tpu.memory_space<vmem>>, vector<1x768xf32>
    tpu.vector_store %arg7[%c6_93, %c0_94], %456 {strides = array<i32>} : memref<8x768xf32, #tpu.memory_space<vmem>>, vector<1x768xf32>,
    %458 = vector.extract_strided_slice %455 {offsets = [1, 0], sizes = [1, 768], strides = [1, 1]} : vector<2x768xf32> to vector<1x768xf32>
    %459 = vector.broadcast %5 : vector<4x1xf32> to vector<4x768xf32>
    %460 = vector.broadcast %458 : vector<1x768xf32> to vector<4x768xf32>
    %461 = arith.mulf %459, %460 : vector<4x768xf32>
    %462 = vector.broadcast %7 : vector<4x1xf32> to vector<4x768xf32>
    %463 = arith.addf %462, %461 : vector<4x768xf32>
    %464 = vector.extract_strided_slice %455 {offsets = [0, 0], sizes = [1, 768], strides = [1, 1]} : vector<2x768xf32> to vector<1x768xf32>
    %465 = vector.broadcast %6 : vector<4x1xf32> to vector<4x768xf32>
    %466 = vector.broadcast %464 : vector<1x768xf32> to vector<4x768xf32>
    %467 = arith.mulf %465, %466 : vector<4x768xf32>
    %468 = arith.addf %463, %467 : vector<4x768xf32>
    %469 = math.tanh %468 : vector<4x768xf32>
    %cst_95 = arith.constant 5.000000e-01 : f32
    %470 = vector.broadcast %cst_95 : f32 to vector<4x768xf32>
    %471 = arith.mulf %470, %469 : vector<4x768xf32>
    %cst_96 = arith.constant 5.000000e-01 : f32
    %472 = vector.broadcast %cst_96 : f32 to vector<4x768xf32>
    %473 = arith.addf %471, %472 : vector<4x768xf32>
    %474 = vector.extract_strided_slice %473 {offsets = [1, 0], sizes = [1, 768], strides = [1, 1]} : vector<4x768xf32> to vector<1x768xf32>
    %475 = vector.extract_strided_slice %452 {offsets = [0, 0], sizes = [1, 768], strides = [1, 1]} : vector<2x768xf32> to vector<1x768xf32>
    %476 = arith.mulf %474, %475 : vector<1x768xf32>
    %477 = vector.extract_strided_slice %473 {offsets = [0, 0], sizes = [1, 768], strides = [1, 1]} : vector<4x768xf32> to vector<1x768xf32>
    %478 = vector.extract_strided_slice %469 {offsets = [2, 0], sizes = [1, 768], strides = [1, 1]} : vector<4x768xf32> to vector<1x768xf32>
    %479 = arith.mulf %477, %478 : vector<1x768xf32>
    %480 = arith.addf %476, %479 : vector<1x768xf32>
    %481 = vector.extract_strided_slice %473 {offsets = [3, 0], sizes = [1, 768], strides = [1, 1]} : vector<4x768xf32> to vector<1x768xf32>
    %482 = math.tanh %480 : vector<1x768xf32>
    %483 = arith.mulf %481, %482 : vector<1x768xf32>
    %c7_97 = arith.constant 7 : index
    %c0_98 = arith.constant 0 : index
    %484 = vector.load %arg7[%c7_97, %c0_98] : memref<8x768xf32, #tpu.memory_space<vmem>>, vector<1x768xf32>
    tpu.vector_store %arg7[%c7_97, %c0_98], %483 {strides = array<i32>} : memref<8x768xf32, #tpu.memory_space<vmem>>, vector<1x768xf32>,
    tpu.wait_dma2 semaphore(%arg6 : memref<!tpu.dma_semaphore, #tpu.memory_space<semaphore_mem>>) src(%arg2 : memref<768x128xf32, #tpu.memory_space<any>>) dst(%arg5 : memref<768x128xf32, #tpu.memory_space<vmem>>)
    %c0_99 = arith.constant 0 : index
    %c0_100 = arith.constant 0 : index
    %485 = vector.load %arg7[%c0_99, %c0_100] : memref<8x768xf32, #tpu.memory_space<vmem>>, vector<8x768xf32>
    %c0_101 = arith.constant 0 : index
    %c0_102 = arith.constant 0 : index
    %486 = vector.load %arg5[%c0_101, %c0_102] : memref<768x128xf32, #tpu.memory_space<vmem>>, vector<768x128xf32>
    %cst_103 = arith.constant dense<0.000000e+00> : vector<8x128xf32>
    %487 = tpu.matmul %485, %486, %cst_103 {dimension_numbers = #tpu.dot_dimension_numbers<[1], [0], [0], [1], [0, 0, 1, 1], [], []>} : vector<8x768xf32>, vector<768x128xf32>, vector<8x128xf32> -> vector<8x128xf32>
    %c0_104 = arith.constant 0 : index
    %c0_105 = arith.constant 0 : index
    %488 = vector.load %arg3[%c0_104, %c0_105] : memref<3x128xf32, #tpu.memory_space<vmem>>, vector<1x128xf32>
    %489 = vector.broadcast %488 : vector<1x128xf32> to vector<8x128xf32>
    %490 = arith.addf %487, %489 : vector<8x128xf32>
    %cst_106 = arith.constant 0.000000e+00 : f32
    %491 = vector.broadcast %cst_106 : f32 to vector<8x128xf32>
    %492 = arith.maximumf %490, %491 : vector<8x128xf32>
    %c1_107 = arith.constant 1 : index
    %c0_108 = arith.constant 0 : index
    %493 = vector.load %arg3[%c1_107, %c0_108] : memref<3x128xf32, #tpu.memory_space<vmem>>, vector<1x128xf32>
    %494 = vector.broadcast %493 : vector<1x128xf32> to vector<8x128xf32>
    %495 = arith.mulf %492, %494 : vector<8x128xf32>
    %cst_109 = arith.constant dense<0.000000e+00> : vector<8xf32>
    %496 = vector.multi_reduction <add>, %495, %cst_109 [1] : vector<8x128xf32> to vector<8xf32>
    %497 = vector.shape_cast %496 : vector<8xf32> to vector<8x1xf32>
    %c2_110 = arith.constant 2 : index
    %c0_111 = arith.constant 0 : index
    %498 = vector.load %arg3[%c2_110, %c0_111] : memref<3x128xf32, #tpu.memory_space<vmem>>, vector<1x1xf32>
    %499 = vector.broadcast %498 : vector<1x1xf32> to vector<8x1xf32>
    %500 = arith.addf %497, %499 : vector<8x1xf32>
    %c0_112 = arith.constant 0 : index
    %c0_113 = arith.constant 0 : index
    %501 = vector.load %arg4[%c0_112, %c0_113] : memref<8x1xf32, #tpu.memory_space<vmem>>, vector<8x1xf32>
    tpu.vector_store %arg4[%c0_112, %c0_113], %500 {strides = array<i32>} : memref<8x1xf32, #tpu.memory_space<vmem>>, vector<8x1xf32>,
    return
  }
}

</mosaic_0001>

<llo_original>
// kernel: tpu_custom_call.1
$region0: #{tpu_custom_call.1}
  #allocation0 [shape = 'u32[]', space=smem, size = 0x4, offset = 0x4, fixed_abs, tag = 'smem constant byte address 0x4 - core index']
  #allocation1 [shape = 'u32[144,128]{1,0:T(1,128)}', space=vmem, size = 0x12000, scoped, tag = 'internal scratch']
  #allocation2 [shape = 'f32[768,128]{1,0:T(8,128)}', space=vmem, size = 0x60000, scoped, tag = 'scratch operand']
  #allocation3 [shape = 's32[1]{0}', space=sflag, size = 0x4, scoped, tag = 'scratch operand']
  #allocation4 [shape = 'f32[8,768]{1,0:T(8,128)}', space=vmem, size = 0x6000, scoped, tag = 'scratch operand']
  #allocation5 [shape = 'f32[8,8,768]{2,1,0:T(8,128)}', space=vmem, size = 0x30000, scoped, tag = 'scratch operand']
  #allocation10 [shape = 's32[]', space=sflag, size = 0x4, offset = 0, fixed_abs, tag = 'sflag constant byte address 0x0 - dummy sync flag']
  #allocation11 [shape = 's32[]', space=sflag, size = 0x4, offset = 0, fixed_abs, tag = 'sflag constant byte address 0x0 - dummy sync flag']
  #allocation12 [shape = 'u32[]', space=smem, size = 0x4, offset = 0x44, fixed_abs, tag = 'smem constant byte address 0x44 - assertion arg 0']
  #allocation13 [shape = 'u32[]', space=smem, size = 0x4, offset = 0x48, fixed_abs, tag = 'smem constant byte address 0x48 - assertion arg 1']
  %s0 = inlined_call_operand.hbm [shape: f32[8,4,768], index: 0, kind: input, shape index: {}]
  %s1 = inlined_call_operand.hbm [shape: f32[8,11], index: 1, kind: input, shape index: {}]
  %s2 = inlined_call_operand.hbm [shape: f32[768,128], index: 2, kind: input, shape index: {}]
  %s3 = inlined_call_operand.vmem [shape: f32[3,128], index: 3, kind: input, shape index: {}]
  %s4 = inlined_call_operand.vmem [shape: f32[8,1], index: 4, kind: output, shape index: {}]
  %s5 = sld [smem:[#allocation0]]
  $region34: #{tpu_custom_call.1} parent=0
    _
  %s7 = ssub.s32 1, %s5
  %s8 = scalar_select 0, %s7, %s5
  $region1: #{tpu_custom_call.1} parent=0
    #allocation6 [shape = 'u8[98304]{0}', space=vmem, size = 0x18000, scoped, tag = 'input window, operand 0, single buffered']
    #allocation7 [shape = 's32[1]{0}', space=sflag, size = 0x4, scoped, tag = 'scoped memory for tpu_custom_call.1']
    #allocation8 [shape = 'u8[4096]{0}', space=vmem, size = 0x1000, scoped, tag = 'input window, operand 1, single buffered']
    #allocation9 [shape = 's32[1]{0}', space=sflag, size = 0x4, scoped, tag = 'scoped memory for tpu_custom_call.1']
    %9 = vsyncpa [#allocation7], 0
    %10 = vsyncpa [#allocation9], 0
    // Predicated region
    $region2: #{tpu_custom_call.1} parent=1 // pred_check
      _
    $region3: #{tpu_custom_call.1} parent=1 // pred_check_branch
      %12 = sbr.rel (0) target = $region5
    $region4: #{tpu_custom_call.1} parent=1 // pred_region
      %s14 = ssub.s32 3072, 3072
      %15 = vsyncadd [#allocation7], %s14
      %s16 = sshll.u32 [#allocation6], 4
      %s17 = int_to_ptr.vmem [resolvable:$true] %s16
      %22 = dma.hbm_to_vmem [thread:$0]  %s0, 3072, %s17, [#allocation7], 384, 384, 24
    $region5: #{tpu_custom_call.1} parent=1 // pred_fallthru
      _
    // Predicated region
    $region6: #{tpu_custom_call.1} parent=1 // pred_check
      _
    $region7: #{tpu_custom_call.1} parent=1 // pred_check_branch
      %24 = sbr.rel (0) target = $region9
    $region8: #{tpu_custom_call.1} parent=1 // pred_region
      %s26 = ssub.s32 128, 128
      %27 = vsyncadd [#allocation9], %s26
      %s29 = sshll.u32 [#allocation8], 4
      %s30 = int_to_ptr.vmem [resolvable:$true] %s29
      %32 = dma.hbm_to_vmem [thread:$0]  %s1, 128, %s30, [#allocation9]
    $region9: #{tpu_custom_call.1} parent=1 // pred_fallthru
      _
    // Predicated region
    $region10: #{tpu_custom_call.1} parent=1 // pred_check
      _
    $region11: #{tpu_custom_call.1} parent=1 // pred_check_branch
      %34 = sbr.rel (0) target = $region13
    $region12: #{tpu_custom_call.1} parent=1 // pred_region
      _
    $region13: #{tpu_custom_call.1} parent=1 // pred_fallthru
      _
    // Predicated region
    $region14: #{tpu_custom_call.1} parent=1 // pred_check
      _
    $region15: #{tpu_custom_call.1} parent=1 // pred_check_branch
      %36 = sbr.rel (0) target = $region17
    $region16: #{tpu_custom_call.1} parent=1 // pred_region
      %37 = dma.done [#allocation7], 3072
    $region17: #{tpu_custom_call.1} parent=1 // pred_fallthru
      _
    // Predicated region
    $region18: #{tpu_custom_call.1} parent=1 // pred_check
      _
    $region19: #{tpu_custom_call.1} parent=1 // pred_check_branch
      %39 = sbr.rel (0) target = $region21
    $region20: #{tpu_custom_call.1} parent=1 // pred_region
      %40 = dma.done [#allocation9], 128
    $region21: #{tpu_custom_call.1} parent=1 // pred_fallthru
      _
    // Predicated region
    $region22: #{tpu_custom_call.1} parent=1 // pred_check
      _
    $region23: #{tpu_custom_call.1} parent=1 // pred_check_branch
      %42 = sbr.rel target = $region25
    $region24: #{tpu_custom_call.1} parent=1 // pred_region
      %43 = sst [smem:[#allocation12]] [#allocation11]
      %44 = sst [smem:[#allocation13]] [#allocation10]
    $region25: #{tpu_custom_call.1} parent=1 // pred_fallthru
      _
    %46 = shalt.err (0)
    %s48 = sshll.u32 [#allocation2], 4
    %s49 = int_to_ptr.vmem [resolvable:$true] %s48
    %51 = dma.hbm_to_vmem [thread:$0]  %s2, 12288, %s49, [#allocation3]
    %v52 = vld [vmem:[#allocation8] sm:$0xff]
    %v53 = vld [vmem:[#allocation6] sm:$0xff]
    %v54 = vld [vmem:[#allocation6 + $0x8] sm:$0xff]
    %v55 = vld [vmem:[#allocation6 + $0x10] sm:$0xff]
    %57 = vset.pattern.permute.xlu0 0
    %58 = vperm.xlu0 %57, %v52
    %v59 = vpop.permute.xlu0 %58
    %v64 = vlaneseq
    %v65 = vshrl.u32 %v64, 7
    %v66 = vsub.s32 0, %v65
    %v67 = vrot.slane %v53, %v66
    %v68 = vlaneseq
    %v69 = vshrl.u32 %v68, 7
    %v70 = vsub.s32 4, %v69
    %v71 = vrot.slane %v53, %v70
    %v72 = vlaneseq
    %v73 = vshrl.u32 %v72, 7
    %v74 = vsub.s32 0, %v73
    %v75 = vrot.slane %v54, %v74
    %v76 = vlaneseq
    %v77 = vshrl.u32 %v76, 7
    %v78 = vsub.s32 4, %v77
    %v79 = vrot.slane %v54, %v78
    %v80 = vlaneseq
    %v81 = vshrl.u32 %v80, 7
    %v82 = vsub.s32 0, %v81
    %v83 = vrot.slane %v55, %v82
    %v84 = vlaneseq
    %v85 = vshrl.u32 %v84, 7
    %v86 = vsub.s32 4, %v85
    %v87 = vrot.slane %v55, %v86
    %v94 = vlaneseq
    %v95 = vshrl.u32 %v94, 7
    %v96 = vsub.s32 0, %v95
    %v97 = vrot.slane %v67, %v96
    %v98 = vlaneseq
    %v99 = vshrl.u32 %v98, 7
    %v100 = vsub.s32 0, %v99
    %v101 = vrot.slane %v71, %v100
    %v102 = vlaneseq
    %v103 = vshrl.u32 %v102, 7
    %v104 = vsub.s32 0, %v103
    %v105 = vrot.slane %v75, %v104
    %v106 = vlaneseq
    %v107 = vshrl.u32 %v106, 7
    %v108 = vsub.s32 0, %v107
    %v109 = vrot.slane %v79, %v108
    %v110 = vlaneseq
    %v111 = vshrl.u32 %v110, 7
    %v112 = vsub.s32 0, %v111
    %v113 = vrot.slane %v83, %v112
    %v114 = vlaneseq
    %v115 = vshrl.u32 %v114, 7
    %v116 = vsub.s32 0, %v115
    %v117 = vrot.slane %v87, %v116
    %v118 = vmul.f32 %v59, %v97
    %v119 = vmul.f32 %v59, %v101
    %v120 = vmul.f32 %v59, %v105
    %v121 = vmul.f32 %v59, %v109
    %v122 = vmul.f32 %v59, %v113
    %v123 = vmul.f32 %v59, %v117
    %124 = vset.pattern.permute.xlu0 10
    %125 = vperm.xlu0 %124, %v52
    %v126 = vpop.permute.xlu0 %125
    %v128 = vadd.f32 %v126, %v118
    %v129 = vadd.f32 %v126, %v119
    %v130 = vadd.f32 %v126, %v120
    %v131 = vadd.f32 %v126, %v121
    %v132 = vadd.f32 %v126, %v122
    %v133 = vadd.f32 %v126, %v123
    %134 = vset.pattern.permute.xlu0 1
    %135 = vperm.xlu0 %134, %v52
    %v136 = vpop.permute.xlu0 %135
    %v138 = vlaneseq
    %v139 = vshrl.u32 %v138, 7
    %v140 = vsub.s32 1, %v139
    %v141 = vrot.slane %v53, %v140
    %v142 = vlaneseq
    %v143 = vshrl.u32 %v142, 7
    %v144 = vsub.s32 5, %v143
    %v145 = vrot.slane %v53, %v144
    %v146 = vlaneseq
    %v147 = vshrl.u32 %v146, 7
    %v148 = vsub.s32 1, %v147
    %v149 = vrot.slane %v54, %v148
    %v150 = vlaneseq
    %v151 = vshrl.u32 %v150, 7
    %v152 = vsub.s32 5, %v151
    %v153 = vrot.slane %v54, %v152
    %v154 = vlaneseq
    %v155 = vshrl.u32 %v154, 7
    %v156 = vsub.s32 1, %v155
    %v157 = vrot.slane %v55, %v156
    %v158 = vlaneseq
    %v159 = vshrl.u32 %v158, 7
    %v160 = vsub.s32 5, %v159
    %v161 = vrot.slane %v55, %v160
    %v168 = vlaneseq
    %v169 = vshrl.u32 %v168, 7
    %v170 = vsub.s32 1, %v169
    %v171 = vrot.slane %v141, %v170
    %v172 = vlaneseq
    %v173 = vshrl.u32 %v172, 7
    %v174 = vsub.s32 1, %v173
    %v175 = vrot.slane %v145, %v174
    %v176 = vlaneseq
    %v177 = vshrl.u32 %v176, 7
    %v178 = vsub.s32 1, %v177
    %v179 = vrot.slane %v149, %v178
    %v180 = vlaneseq
    %v181 = vshrl.u32 %v180, 7
    %v182 = vsub.s32 1, %v181
    %v183 = vrot.slane %v153, %v182
    %v184 = vlaneseq
    %v185 = vshrl.u32 %v184, 7
    %v186 = vsub.s32 1, %v185
    %v187 = vrot.slane %v157, %v186
    %v188 = vlaneseq
    %v189 = vshrl.u32 %v188, 7
    %v190 = vsub.s32 1, %v189
    %v191 = vrot.slane %v161, %v190
    %v192 = vmul.f32 %v136, %v171
    %v193 = vmul.f32 %v136, %v175
    %v194 = vmul.f32 %v136, %v179
    %v195 = vmul.f32 %v136, %v183
    %v196 = vmul.f32 %v136, %v187
    %v197 = vmul.f32 %v136, %v191
    %v198 = vadd.f32 %v128, %v192
    %v199 = vadd.f32 %v129, %v193
    %v200 = vadd.f32 %v130, %v194
    %v201 = vadd.f32 %v131, %v195
    %v202 = vadd.f32 %v132, %v196
    %v203 = vadd.f32 %v133, %v197
    %204 = vset.pattern.permute.xlu0 2
    %205 = vperm.xlu0 %204, %v52
    %v206 = vpop.permute.xlu0 %205
    %v208 = vlaneseq
    %v209 = vshrl.u32 %v208, 7
    %v210 = vsub.s32 2, %v209
    %v211 = vrot.slane %v53, %v210
    %v212 = vlaneseq
    %v213 = vshrl.u32 %v212, 7
    %v214 = vsub.s32 6, %v213
    %v215 = vrot.slane %v53, %v214
    %v216 = vlaneseq
    %v217 = vshrl.u32 %v216, 7
    %v218 = vsub.s32 2, %v217
    %v219 = vrot.slane %v54, %v218
    %v220 = vlaneseq
    %v221 = vshrl.u32 %v220, 7
    %v222 = vsub.s32 6, %v221
    %v223 = vrot.slane %v54, %v222
    %v224 = vlaneseq
    %v225 = vshrl.u32 %v224, 7
    %v226 = vsub.s32 2, %v225
    %v227 = vrot.slane %v55, %v226
    %v228 = vlaneseq
    %v229 = vshrl.u32 %v228, 7
    %v230 = vsub.s32 6, %v229
    %v231 = vrot.slane %v55, %v230
    %v238 = vlaneseq
    %v239 = vshrl.u32 %v238, 7
    %v240 = vsub.s32 2, %v239
    %v241 = vrot.slane %v211, %v240
    %v242 = vlaneseq
    %v243 = vshrl.u32 %v242, 7
    %v244 = vsub.s32 2, %v243
    %v245 = vrot.slane %v215, %v244
    %v246 = vlaneseq
    %v247 = vshrl.u32 %v246, 7
    %v248 = vsub.s32 2, %v247
    %v249 = vrot.slane %v219, %v248
    %v250 = vlaneseq
    %v251 = vshrl.u32 %v250, 7
    %v252 = vsub.s32 2, %v251
    %v253 = vrot.slane %v223, %v252
    %v254 = vlaneseq
    %v255 = vshrl.u32 %v254, 7
    %v256 = vsub.s32 2, %v255
    %v257 = vrot.slane %v227, %v256
    %v258 = vlaneseq
    %v259 = vshrl.u32 %v258, 7
    %v260 = vsub.s32 2, %v259
    %v261 = vrot.slane %v231, %v260
    %v262 = vmul.f32 %v206, %v241
    %v263 = vmul.f32 %v206, %v245
    %v264 = vmul.f32 %v206, %v249
    %v265 = vmul.f32 %v206, %v253
    %v266 = vmul.f32 %v206, %v257
    %v267 = vmul.f32 %v206, %v261
    %v268 = vadd.f32 %v198, %v262
    %v269 = vadd.f32 %v199, %v263
    %v270 = vadd.f32 %v200, %v264
    %v271 = vadd.f32 %v201, %v265
    %v272 = vadd.f32 %v202, %v266
    %v273 = vadd.f32 %v203, %v267
    %274 = vset.pattern.permute.xlu0 3
    %275 = vperm.xlu0 %274, %v52
    %v276 = vpop.permute.xlu0 %275
    %v278 = vlaneseq
    %v279 = vshrl.u32 %v278, 7
    %v280 = vsub.s32 3, %v279
    %v281 = vrot.slane %v53, %v280
    %v282 = vlaneseq
    %v283 = vshrl.u32 %v282, 7
    %v284 = vsub.s32 7, %v283
    %v285 = vrot.slane %v53, %v284
    %v286 = vlaneseq
    %v287 = vshrl.u32 %v286, 7
    %v288 = vsub.s32 3, %v287
    %v289 = vrot.slane %v54, %v288
    %v290 = vlaneseq
    %v291 = vshrl.u32 %v290, 7
    %v292 = vsub.s32 7, %v291
    %v293 = vrot.slane %v54, %v292
    %v294 = vlaneseq
    %v295 = vshrl.u32 %v294, 7
    %v296 = vsub.s32 3, %v295
    %v297 = vrot.slane %v55, %v296
    %v298 = vlaneseq
    %v299 = vshrl.u32 %v298, 7
    %v300 = vsub.s32 7, %v299
    %v301 = vrot.slane %v55, %v300
    %v308 = vlaneseq
    %v309 = vshrl.u32 %v308, 7
    %v310 = vsub.s32 3, %v309
    %v311 = vrot.slane %v281, %v310
    %v312 = vlaneseq
    %v313 = vshrl.u32 %v312, 7
    %v314 = vsub.s32 3, %v313
    %v315 = vrot.slane %v285, %v314
    %v316 = vlaneseq
    %v317 = vshrl.u32 %v316, 7
    %v318 = vsub.s32 3, %v317
    %v319 = vrot.slane %v289, %v318
    %v320 = vlaneseq
    %v321 = vshrl.u32 %v320, 7
    %v322 = vsub.s32 3, %v321
    %v323 = vrot.slane %v293, %v322
    %v324 = vlaneseq
    %v325 = vshrl.u32 %v324, 7
    %v326 = vsub.s32 3, %v325
    %v327 = vrot.slane %v297, %v326
    %v328 = vlaneseq
    %v329 = vshrl.u32 %v328, 7
    %v330 = vsub.s32 3, %v329
    %v331 = vrot.slane %v301, %v330
    %v332 = vmul.f32 %v276, %v311
    %v333 = vmul.f32 %v276, %v315
    %v334 = vmul.f32 %v276, %v319
    %v335 = vmul.f32 %v276, %v323
    %v336 = vmul.f32 %v276, %v327
    %v337 = vmul.f32 %v276, %v331
    %v338 = vadd.f32 %v268, %v332
    %v339 = vadd.f32 %v269, %v333
    %v340 = vadd.f32 %v270, %v334
    %v341 = vadd.f32 %v271, %v335
    %v342 = vadd.f32 %v272, %v336
    %v343 = vadd.f32 %v273, %v337
    %344 = vst [vmem:[#allocation5] sm:$0xff] %v338
    %345 = vst [vmem:[#allocation5 + $0x8] sm:$0xff] %v339
    %346 = vst [vmem:[#allocation5 + $0x10] sm:$0xff] %v340
    %347 = vst [vmem:[#allocation5 + $0x18] sm:$0xff] %v341
    %348 = vst [vmem:[#allocation5 + $0x20] sm:$0xff] %v342
    %349 = vst [vmem:[#allocation5 + $0x28] sm:$0xff] %v343
    %s350 = scalar_lea.vmem [#allocation6], 24
    %v351 = vld [vmem:[%s350] sm:$0xff]
    %v352 = vld [vmem:[%s350 + $0x8] sm:$0xff]
    %v353 = vld [vmem:[%s350 + $0x10] sm:$0xff]
    %v357 = vlaneseq
    %v358 = vshrl.u32 %v357, 7
    %v359 = vsub.s32 0, %v358
    %v360 = vrot.slane %v351, %v359
    %v361 = vlaneseq
    %v362 = vshrl.u32 %v361, 7
    %v363 = vsub.s32 4, %v362
    %v364 = vrot.slane %v351, %v363
    %v365 = vlaneseq
    %v366 = vshrl.u32 %v365, 7
    %v367 = vsub.s32 0, %v366
    %v368 = vrot.slane %v352, %v367
    %v369 = vlaneseq
    %v370 = vshrl.u32 %v369, 7
    %v371 = vsub.s32 4, %v370
    %v372 = vrot.slane %v352, %v371
    %v373 = vlaneseq
    %v374 = vshrl.u32 %v373, 7
    %v375 = vsub.s32 0, %v374
    %v376 = vrot.slane %v353, %v375
    %v377 = vlaneseq
    %v378 = vshrl.u32 %v377, 7
    %v379 = vsub.s32 4, %v378
    %v380 = vrot.slane %v353, %v379
    %v387 = vlaneseq
    %v388 = vshrl.u32 %v387, 7
    %v389 = vsub.s32 0, %v388
    %v390 = vrot.slane %v360, %v389
    %v391 = vlaneseq
    %v392 = vshrl.u32 %v391, 7
    %v393 = vsub.s32 0, %v392
    %v394 = vrot.slane %v364, %v393
    %v395 = vlaneseq
    %v396 = vshrl.u32 %v395, 7
    %v397 = vsub.s32 0, %v396
    %v398 = vrot.slane %v368, %v397
    %v399 = vlaneseq
    %v400 = vshrl.u32 %v399, 7
    %v401 = vsub.s32 0, %v400
    %v402 = vrot.slane %v372, %v401
    %v403 = vlaneseq
    %v404 = vshrl.u32 %v403, 7
    %v405 = vsub.s32 0, %v404
    %v406 = vrot.slane %v376, %v405
    %v407 = vlaneseq
    %v408 = vshrl.u32 %v407, 7
    %v409 = vsub.s32 0, %v408
    %v410 = vrot.slane %v380, %v409
    %v411 = vmul.f32 %v59, %v390
    %v412 = vmul.f32 %v59, %v394
    %v413 = vmul.f32 %v59, %v398
    %v414 = vmul.f32 %v59, %v402
    %v415 = vmul.f32 %v59, %v406
    %v416 = vmul.f32 %v59, %v410
    %417 = vset.pattern.permute.xlu0 4
    %418 = vperm.xlu0 %417, %v52
    %v419 = vpop.permute.xlu0 %418
    %v421 = vadd.f32 %v419, %v411
    %v422 = vadd.f32 %v419, %v412
    %v423 = vadd.f32 %v419, %v413
    %v424 = vadd.f32 %v419, %v414
    %v425 = vadd.f32 %v419, %v415
    %v426 = vadd.f32 %v419, %v416
    %v427 = vlaneseq
    %v428 = vshrl.u32 %v427, 7
    %v429 = vsub.s32 1, %v428
    %v430 = vrot.slane %v351, %v429
    %v431 = vlaneseq
    %v432 = vshrl.u32 %v431, 7
    %v433 = vsub.s32 5, %v432
    %v434 = vrot.slane %v351, %v433
    %v435 = vlaneseq
    %v436 = vshrl.u32 %v435, 7
    %v437 = vsub.s32 1, %v436
    %v438 = vrot.slane %v352, %v437
    %v439 = vlaneseq
    %v440 = vshrl.u32 %v439, 7
    %v441 = vsub.s32 5, %v440
    %v442 = vrot.slane %v352, %v441
    %v443 = vlaneseq
    %v444 = vshrl.u32 %v443, 7
    %v445 = vsub.s32 1, %v444
    %v446 = vrot.slane %v353, %v445
    %v447 = vlaneseq
    %v448 = vshrl.u32 %v447, 7
    %v449 = vsub.s32 5, %v448
    %v450 = vrot.slane %v353, %v449
    %v457 = vlaneseq
    %v458 = vshrl.u32 %v457, 7
    %v459 = vsub.s32 1, %v458
    %v460 = vrot.slane %v430, %v459
    %v461 = vlaneseq
    %v462 = vshrl.u32 %v461, 7
    %v463 = vsub.s32 1, %v462
    %v464 = vrot.slane %v434, %v463
    %v465 = vlaneseq
    %v466 = vshrl.u32 %v465, 7
    %v467 = vsub.s32 1, %v466
    %v468 = vrot.slane %v438, %v467
    %v469 = vlaneseq
    %v470 = vshrl.u32 %v469, 7
    %v471 = vsub.s32 1, %v470
    %v472 = vrot.slane %v442, %v471
    %v473 = vlaneseq
    %v474 = vshrl.u32 %v473, 7
    %v475 = vsub.s32 1, %v474
    %v476 = vrot.slane %v446, %v475
    %v477 = vlaneseq
    %v478 = vshrl.u32 %v477, 7
    %v479 = vsub.s32 1, %v478
    %v480 = vrot.slane %v450, %v479
    %v481 = vmul.f32 %v136, %v460
    %v482 = vmul.f32 %v136, %v464
    %v483 = vmul.f32 %v136, %v468
    %v484 = vmul.f32 %v136, %v472
    %v485 = vmul.f32 %v136, %v476
    %v486 = vmul.f32 %v136, %v480
    %v487 = vadd.f32 %v421, %v481
    %v488 = vadd.f32 %v422, %v482
    %v489 = vadd.f32 %v423, %v483
    %v490 = vadd.f32 %v424, %v484
    %v491 = vadd.f32 %v425, %v485
    %v492 = vadd.f32 %v426, %v486
    %v493 = vlaneseq
    %v494 = vshrl.u32 %v493, 7
    %v495 = vsub.s32 2, %v494
    %v496 = vrot.slane %v351, %v495
    %v497 = vlaneseq
    %v498 = vshrl.u32 %v497, 7
    %v499 = vsub.s32 6, %v498
    %v500 = vrot.slane %v351, %v499
    %v501 = vlaneseq
    %v502 = vshrl.u32 %v501, 7
    %v503 = vsub.s32 2, %v502
    %v504 = vrot.slane %v352, %v503
    %v505 = vlaneseq
    %v506 = vshrl.u32 %v505, 7
    %v507 = vsub.s32 6, %v506
    %v508 = vrot.slane %v352, %v507
    %v509 = vlaneseq
    %v510 = vshrl.u32 %v509, 7
    %v511 = vsub.s32 2, %v510
    %v512 = vrot.slane %v353, %v511
    %v513 = vlaneseq
    %v514 = vshrl.u32 %v513, 7
    %v515 = vsub.s32 6, %v514
    %v516 = vrot.slane %v353, %v515
    %v523 = vlaneseq
    %v524 = vshrl.u32 %v523, 7
    %v525 = vsub.s32 2, %v524
    %v526 = vrot.slane %v496, %v525
    %v527 = vlaneseq
    %v528 = vshrl.u32 %v527, 7
    %v529 = vsub.s32 2, %v528
    %v530 = vrot.slane %v500, %v529
    %v531 = vlaneseq
    %v532 = vshrl.u32 %v531, 7
    %v533 = vsub.s32 2, %v532
    %v534 = vrot.slane %v504, %v533
    %v535 = vlaneseq
    %v536 = vshrl.u32 %v535, 7
    %v537 = vsub.s32 2, %v536
    %v538 = vrot.slane %v508, %v537
    %v539 = vlaneseq
    %v540 = vshrl.u32 %v539, 7
    %v541 = vsub.s32 2, %v540
    %v542 = vrot.slane %v512, %v541
    %v543 = vlaneseq
    %v544 = vshrl.u32 %v543, 7
    %v545 = vsub.s32 2, %v544
    %v546 = vrot.slane %v516, %v545
    %v547 = vmul.f32 %v206, %v526
    %v548 = vmul.f32 %v206, %v530
    %v549 = vmul.f32 %v206, %v534
    %v550 = vmul.f32 %v206, %v538
    %v551 = vmul.f32 %v206, %v542
    %v552 = vmul.f32 %v206, %v546
    %v553 = vadd.f32 %v487, %v547
    %v554 = vadd.f32 %v488, %v548
    %v555 = vadd.f32 %v489, %v549
    %v556 = vadd.f32 %v490, %v550
    %v557 = vadd.f32 %v491, %v551
    %v558 = vadd.f32 %v492, %v552
    %v559 = vlaneseq
    %v560 = vshrl.u32 %v559, 7
    %v561 = vsub.s32 3, %v560
    %v562 = vrot.slane %v351, %v561
    %v563 = vlaneseq
    %v564 = vshrl.u32 %v563, 7
    %v565 = vsub.s32 7, %v564
    %v566 = vrot.slane %v351, %v565
    %v567 = vlaneseq
    %v568 = vshrl.u32 %v567, 7
    %v569 = vsub.s32 3, %v568
    %v570 = vrot.slane %v352, %v569
    %v571 = vlaneseq
    %v572 = vshrl.u32 %v571, 7
    %v573 = vsub.s32 7, %v572
    %v574 = vrot.slane %v352, %v573
    %v575 = vlaneseq
    %v576 = vshrl.u32 %v575, 7
    %v577 = vsub.s32 3, %v576
    %v578 = vrot.slane %v353, %v577
    %v579 = vlaneseq
    %v580 = vshrl.u32 %v579, 7
    %v581 = vsub.s32 7, %v580
    %v582 = vrot.slane %v353, %v581
    %v589 = vlaneseq
    %v590 = vshrl.u32 %v589, 7
    %v591 = vsub.s32 3, %v590
    %v592 = vrot.slane %v562, %v591
    %v593 = vlaneseq
    %v594 = vshrl.u32 %v593, 7
    %v595 = vsub.s32 3, %v594
    %v596 = vrot.slane %v566, %v595
    %v597 = vlaneseq
    %v598 = vshrl.u32 %v597, 7
    %v599 = vsub.s32 3, %v598
    %v600 = vrot.slane %v570, %v599
    %v601 = vlaneseq
    %v602 = vshrl.u32 %v601, 7
    %v603 = vsub.s32 3, %v602
    %v604 = vrot.slane %v574, %v603
    %v605 = vlaneseq
    %v606 = vshrl.u32 %v605, 7
    %v607 = vsub.s32 3, %v606
    %v608 = vrot.slane %v578, %v607
    %v609 = vlaneseq
    %v610 = vshrl.u32 %v609, 7
    %v611 = vsub.s32 3, %v610
    %v612 = vrot.slane %v582, %v611
    %v613 = vmul.f32 %v276, %v592
    %v614 = vmul.f32 %v276, %v596
    %v615 = vmul.f32 %v276, %v600
    %v616 = vmul.f32 %v276, %v604
    %v617 = vmul.f32 %v276, %v608
    %v618 = vmul.f32 %v276, %v612
    %v619 = vadd.f32 %v553, %v613
    %v620 = vadd.f32 %v554, %v614
    %v621 = vadd.f32 %v555, %v615
    %v622 = vadd.f32 %v556, %v616
    %v623 = vadd.f32 %v557, %v617
    %v624 = vadd.f32 %v558, %v618
    %s625 = scalar_lea.vmem [#allocation5], 48
    %626 = vst [vmem:[%s625] sm:$0xff] %v619
    %627 = vst [vmem:[%s625 + $0x8] sm:$0xff] %v620
    %628 = vst [vmem:[%s625 + $0x10] sm:$0xff] %v621
    %629 = vst [vmem:[%s625 + $0x18] sm:$0xff] %v622
    %630 = vst [vmem:[%s625 + $0x20] sm:$0xff] %v623
    %631 = vst [vmem:[%s625 + $0x28] sm:$0xff] %v624
    %s632 = scalar_lea.vmem [#allocation6], 48
    %v633 = vld [vmem:[%s632] sm:$0xff]
    %v634 = vld [vmem:[%s632 + $0x8] sm:$0xff]
    %v635 = vld [vmem:[%s632 + $0x10] sm:$0xff]
    %v639 = vlaneseq
    %v640 = vshrl.u32 %v639, 7
    %v641 = vsub.s32 0, %v640
    %v642 = vrot.slane %v633, %v641
    %v643 = vlaneseq
    %v644 = vshrl.u32 %v643, 7
    %v645 = vsub.s32 4, %v644
    %v646 = vrot.slane %v633, %v645
    %v647 = vlaneseq
    %v648 = vshrl.u32 %v647, 7
    %v649 = vsub.s32 0, %v648
    %v650 = vrot.slane %v634, %v649
    %v651 = vlaneseq
    %v652 = vshrl.u32 %v651, 7
    %v653 = vsub.s32 4, %v652
    %v654 = vrot.slane %v634, %v653
    %v655 = vlaneseq
    %v656 = vshrl.u32 %v655, 7
    %v657 = vsub.s32 0, %v656
    %v658 = vrot.slane %v635, %v657
    %v659 = vlaneseq
    %v660 = vshrl.u32 %v659, 7
    %v661 = vsub.s32 4, %v660
    %v662 = vrot.slane %v635, %v661
    %v669 = vlaneseq
    %v670 = vshrl.u32 %v669, 7
    %v671 = vsub.s32 0, %v670
    %v672 = vrot.slane %v642, %v671
    %v673 = vlaneseq
    %v674 = vshrl.u32 %v673, 7
    %v675 = vsub.s32 0, %v674
    %v676 = vrot.slane %v646, %v675
    %v677 = vlaneseq
    %v678 = vshrl.u32 %v677, 7
    %v679 = vsub.s32 0, %v678
    %v680 = vrot.slane %v650, %v679
    %v681 = vlaneseq
    %v682 = vshrl.u32 %v681, 7
    %v683 = vsub.s32 0, %v682
    %v684 = vrot.slane %v654, %v683
    %v685 = vlaneseq
    %v686 = vshrl.u32 %v685, 7
    %v687 = vsub.s32 0, %v686
    %v688 = vrot.slane %v658, %v687
    %v689 = vlaneseq
    %v690 = vshrl.u32 %v689, 7
    %v691 = vsub.s32 0, %v690
    %v692 = vrot.slane %v662, %v691
    %v693 = vmul.f32 %v59, %v672
    %v694 = vmul.f32 %v59, %v676
    %v695 = vmul.f32 %v59, %v680
    %v696 = vmul.f32 %v59, %v684
    %v697 = vmul.f32 %v59, %v688
    %v698 = vmul.f32 %v59, %v692
    %v699 = vadd.f32 %v419, %v693
    %v700 = vadd.f32 %v419, %v694
    %v701 = vadd.f32 %v419, %v695
    %v702 = vadd.f32 %v419, %v696
    %v703 = vadd.f32 %v419, %v697
    %v704 = vadd.f32 %v419, %v698
    %v705 = vlaneseq
    %v706 = vshrl.u32 %v705, 7
    %v707 = vsub.s32 1, %v706
    %v708 = vrot.slane %v633, %v707
    %v709 = vlaneseq
    %v710 = vshrl.u32 %v709, 7
    %v711 = vsub.s32 5, %v710
    %v712 = vrot.slane %v633, %v711
    %v713 = vlaneseq
    %v714 = vshrl.u32 %v713, 7
    %v715 = vsub.s32 1, %v714
    %v716 = vrot.slane %v634, %v715
    %v717 = vlaneseq
    %v718 = vshrl.u32 %v717, 7
    %v719 = vsub.s32 5, %v718
    %v720 = vrot.slane %v634, %v719
    %v721 = vlaneseq
    %v722 = vshrl.u32 %v721, 7
    %v723 = vsub.s32 1, %v722
    %v724 = vrot.slane %v635, %v723
    %v725 = vlaneseq
    %v726 = vshrl.u32 %v725, 7
    %v727 = vsub.s32 5, %v726
    %v728 = vrot.slane %v635, %v727
    %v735 = vlaneseq
    %v736 = vshrl.u32 %v735, 7
    %v737 = vsub.s32 1, %v736
    %v738 = vrot.slane %v708, %v737
    %v739 = vlaneseq
    %v740 = vshrl.u32 %v739, 7
    %v741 = vsub.s32 1, %v740
    %v742 = vrot.slane %v712, %v741
    %v743 = vlaneseq
    %v744 = vshrl.u32 %v743, 7
    %v745 = vsub.s32 1, %v744
    %v746 = vrot.slane %v716, %v745
    %v747 = vlaneseq
    %v748 = vshrl.u32 %v747, 7
    %v749 = vsub.s32 1, %v748
    %v750 = vrot.slane %v720, %v749
    %v751 = vlaneseq
    %v752 = vshrl.u32 %v751, 7
    %v753 = vsub.s32 1, %v752
    %v754 = vrot.slane %v724, %v753
    %v755 = vlaneseq
    %v756 = vshrl.u32 %v755, 7
    %v757 = vsub.s32 1, %v756
    %v758 = vrot.slane %v728, %v757
    %v759 = vmul.f32 %v136, %v738
    %v760 = vmul.f32 %v136, %v742
    %v761 = vmul.f32 %v136, %v746
    %v762 = vmul.f32 %v136, %v750
    %v763 = vmul.f32 %v136, %v754
    %v764 = vmul.f32 %v136, %v758
    %v765 = vadd.f32 %v699, %v759
    %v766 = vadd.f32 %v700, %v760
    %v767 = vadd.f32 %v701, %v761
    %v768 = vadd.f32 %v702, %v762
    %v769 = vadd.f32 %v703, %v763
    %v770 = vadd.f32 %v704, %v764
    %v771 = vlaneseq
    %v772 = vshrl.u32 %v771, 7
    %v773 = vsub.s32 2, %v772
    %v774 = vrot.slane %v633, %v773
    %v775 = vlaneseq
    %v776 = vshrl.u32 %v775, 7
    %v777 = vsub.s32 6, %v776
    %v778 = vrot.slane %v633, %v777
    %v779 = vlaneseq
    %v780 = vshrl.u32 %v779, 7
    %v781 = vsub.s32 2, %v780
    %v782 = vrot.slane %v634, %v781
    %v783 = vlaneseq
    %v784 = vshrl.u32 %v783, 7
    %v785 = vsub.s32 6, %v784
    %v786 = vrot.slane %v634, %v785
    %v787 = vlaneseq
    %v788 = vshrl.u32 %v787, 7
    %v789 = vsub.s32 2, %v788
    %v790 = vrot.slane %v635, %v789
    %v791 = vlaneseq
    %v792 = vshrl.u32 %v791, 7
    %v793 = vsub.s32 6, %v792
    %v794 = vrot.slane %v635, %v793
    %v801 = vlaneseq
    %v802 = vshrl.u32 %v801, 7
    %v803 = vsub.s32 2, %v802
    %v804 = vrot.slane %v774, %v803
    %v805 = vlaneseq
    %v806 = vshrl.u32 %v805, 7
    %v807 = vsub.s32 2, %v806
    %v808 = vrot.slane %v778, %v807
    %v809 = vlaneseq
    %v810 = vshrl.u32 %v809, 7
    %v811 = vsub.s32 2, %v810
    %v812 = vrot.slane %v782, %v811
    %v813 = vlaneseq
    %v814 = vshrl.u32 %v813, 7
    %v815 = vsub.s32 2, %v814
    %v816 = vrot.slane %v786, %v815
    %v817 = vlaneseq
    %v818 = vshrl.u32 %v817, 7
    %v819 = vsub.s32 2, %v818
    %v820 = vrot.slane %v790, %v819
    %v821 = vlaneseq
    %v822 = vshrl.u32 %v821, 7
    %v823 = vsub.s32 2, %v822
    %v824 = vrot.slane %v794, %v823
    %v825 = vmul.f32 %v206, %v804
    %v826 = vmul.f32 %v206, %v808
    %v827 = vmul.f32 %v206, %v812
    %v828 = vmul.f32 %v206, %v816
    %v829 = vmul.f32 %v206, %v820
    %v830 = vmul.f32 %v206, %v824
    %v831 = vadd.f32 %v765, %v825
    %v832 = vadd.f32 %v766, %v826
    %v833 = vadd.f32 %v767, %v827
    %v834 = vadd.f32 %v768, %v828
    %v835 = vadd.f32 %v769, %v829
    %v836 = vadd.f32 %v770, %v830
    %v837 = vlaneseq
    %v838 = vshrl.u32 %v837, 7
    %v839 = vsub.s32 3, %v838
    %v840 = vrot.slane %v633, %v839
    %v841 = vlaneseq
    %v842 = vshrl.u32 %v841, 7
    %v843 = vsub.s32 7, %v842
    %v844 = vrot.slane %v633, %v843
    %v845 = vlaneseq
    %v846 = vshrl.u32 %v845, 7
    %v847 = vsub.s32 3, %v846
    %v848 = vrot.slane %v634, %v847
    %v849 = vlaneseq
    %v850 = vshrl.u32 %v849, 7
    %v851 = vsub.s32 7, %v850
    %v852 = vrot.slane %v634, %v851
    %v853 = vlaneseq
    %v854 = vshrl.u32 %v853, 7
    %v855 = vsub.s32 3, %v854
    %v856 = vrot.slane %v635, %v855
    %v857 = vlaneseq
    %v858 = vshrl.u32 %v857, 7
    %v859 = vsub.s32 7, %v858
    %v860 = vrot.slane %v635, %v859
    %v867 = vlaneseq
    %v868 = vshrl.u32 %v867, 7
    %v869 = vsub.s32 3, %v868
    %v870 = vrot.slane %v840, %v869
    %v871 = vlaneseq
    %v872 = vshrl.u32 %v871, 7
    %v873 = vsub.s32 3, %v872
    %v874 = vrot.slane %v844, %v873
    %v875 = vlaneseq
    %v876 = vshrl.u32 %v875, 7
    %v877 = vsub.s32 3, %v876
    %v878 = vrot.slane %v848, %v877
    %v879 = vlaneseq
    %v880 = vshrl.u32 %v879, 7
    %v881 = vsub.s32 3, %v880
    %v882 = vrot.slane %v852, %v881
    %v883 = vlaneseq
    %v884 = vshrl.u32 %v883, 7
    %v885 = vsub.s32 3, %v884
    %v886 = vrot.slane %v856, %v885
    %v887 = vlaneseq
    %v888 = vshrl.u32 %v887, 7
    %v889 = vsub.s32 3, %v888
    %v890 = vrot.slane %v860, %v889
    %v891 = vmul.f32 %v276, %v870
    %v892 = vmul.f32 %v276, %v874
    %v893 = vmul.f32 %v276, %v878
    %v894 = vmul.f32 %v276, %v882
    %v895 = vmul.f32 %v276, %v886
    %v896 = vmul.f32 %v276, %v890
    %v897 = vadd.f32 %v831, %v891
    %v898 = vadd.f32 %v832, %v892
    %v899 = vadd.f32 %v833, %v893
    %v900 = vadd.f32 %v834, %v894
    %v901 = vadd.f32 %v835, %v895
    %v902 = vadd.f32 %v836, %v896
    %s903 = scalar_lea.vmem [#allocation5], 96
    %904 = vst [vmem:[%s903] sm:$0xff] %v897
    %905 = vst [vmem:[%s903 + $0x8] sm:$0xff] %v898
    %906 = vst [vmem:[%s903 + $0x10] sm:$0xff] %v899
    %907 = vst [vmem:[%s903 + $0x18] sm:$0xff] %v900
    %908 = vst [vmem:[%s903 + $0x20] sm:$0xff] %v901
    %909 = vst [vmem:[%s903 + $0x28] sm:$0xff] %v902
    %s910 = scalar_lea.vmem [#allocation6], 72
    %v911 = vld [vmem:[%s910] sm:$0xff]
    %v912 = vld [vmem:[%s910 + $0x8] sm:$0xff]
    %v913 = vld [vmem:[%s910 + $0x10] sm:$0xff]
    %v917 = vlaneseq
    %v918 = vshrl.u32 %v917, 7
    %v919 = vsub.s32 0, %v918
    %v920 = vrot.slane %v911, %v919
    %v921 = vlaneseq
    %v922 = vshrl.u32 %v921, 7
    %v923 = vsub.s32 4, %v922
    %v924 = vrot.slane %v911, %v923
    %v925 = vlaneseq
    %v926 = vshrl.u32 %v925, 7
    %v927 = vsub.s32 0, %v926
    %v928 = vrot.slane %v912, %v927
    %v929 = vlaneseq
    %v930 = vshrl.u32 %v929, 7
    %v931 = vsub.s32 4, %v930
    %v932 = vrot.slane %v912, %v931
    %v933 = vlaneseq
    %v934 = vshrl.u32 %v933, 7
    %v935 = vsub.s32 0, %v934
    %v936 = vrot.slane %v913, %v935
    %v937 = vlaneseq
    %v938 = vshrl.u32 %v937, 7
    %v939 = vsub.s32 4, %v938
    %v940 = vrot.slane %v913, %v939
    %v947 = vlaneseq
    %v948 = vshrl.u32 %v947, 7
    %v949 = vsub.s32 0, %v948
    %v950 = vrot.slane %v920, %v949
    %v951 = vlaneseq
    %v952 = vshrl.u32 %v951, 7
    %v953 = vsub.s32 0, %v952
    %v954 = vrot.slane %v924, %v953
    %v955 = vlaneseq
    %v956 = vshrl.u32 %v955, 7
    %v957 = vsub.s32 0, %v956
    %v958 = vrot.slane %v928, %v957
    %v959 = vlaneseq
    %v960 = vshrl.u32 %v959, 7
    %v961 = vsub.s32 0, %v960
    %v962 = vrot.slane %v932, %v961
    %v963 = vlaneseq
    %v964 = vshrl.u32 %v963, 7
    %v965 = vsub.s32 0, %v964
    %v966 = vrot.slane %v936, %v965
    %v967 = vlaneseq
    %v968 = vshrl.u32 %v967, 7
    %v969 = vsub.s32 0, %v968
    %v970 = vrot.slane %v940, %v969
    %v971 = vmul.f32 %v59, %v950
    %v972 = vmul.f32 %v59, %v954
    %v973 = vmul.f32 %v59, %v958
    %v974 = vmul.f32 %v59, %v962
    %v975 = vmul.f32 %v59, %v966
    %v976 = vmul.f32 %v59, %v970
    %v977 = vadd.f32 %v419, %v971
    %v978 = vadd.f32 %v419, %v972
    %v979 = vadd.f32 %v419, %v973
    %v980 = vadd.f32 %v419, %v974
    %v981 = vadd.f32 %v419, %v975
    %v982 = vadd.f32 %v419, %v976
    %v983 = vlaneseq
    %v984 = vshrl.u32 %v983, 7
    %v985 = vsub.s32 1, %v984
    %v986 = vrot.slane %v911, %v985
    %v987 = vlaneseq
    %v988 = vshrl.u32 %v987, 7
    %v989 = vsub.s32 5, %v988
    %v990 = vrot.slane %v911, %v989
    %v991 = vlaneseq
    %v992 = vshrl.u32 %v991, 7
    %v993 = vsub.s32 1, %v992
    %v994 = vrot.slane %v912, %v993
    %v995 = vlaneseq
    %v996 = vshrl.u32 %v995, 7
    %v997 = vsub.s32 5, %v996
    %v998 = vrot.slane %v912, %v997
    %v999 = vlaneseq
    %v1000 = vshrl.u32 %v999, 7
    %v1001 = vsub.s32 1, %v1000
    %v1002 = vrot.slane %v913, %v1001
    %v1003 = vlaneseq
    %v1004 = vshrl.u32 %v1003, 7
    %v1005 = vsub.s32 5, %v1004
    %v1006 = vrot.slane %v913, %v1005
    %v1013 = vlaneseq
    %v1014 = vshrl.u32 %v1013, 7
    %v1015 = vsub.s32 1, %v1014
    %v1016 = vrot.slane %v986, %v1015
    %v1017 = vlaneseq
    %v1018 = vshrl.u32 %v1017, 7
    %v1019 = vsub.s32 1, %v1018
    %v1020 = vrot.slane %v990, %v1019
    %v1021 = vlaneseq
    %v1022 = vshrl.u32 %v1021, 7
    %v1023 = vsub.s32 1, %v1022
    %v1024 = vrot.slane %v994, %v1023
    %v1025 = vlaneseq
    %v1026 = vshrl.u32 %v1025, 7
    %v1027 = vsub.s32 1, %v1026
    %v1028 = vrot.slane %v998, %v1027
    %v1029 = vlaneseq
    %v1030 = vshrl.u32 %v1029, 7
    %v1031 = vsub.s32 1, %v1030
    %v1032 = vrot.slane %v1002, %v1031
    %v1033 = vlaneseq
    %v1034 = vshrl.u32 %v1033, 7
    %v1035 = vsub.s32 1, %v1034
    %v1036 = vrot.slane %v1006, %v1035
    %v1037 = vmul.f32 %v136, %v1016
    %v1038 = vmul.f32 %v136, %v1020
    %v1039 = vmul.f32 %v136, %v1024
    %v1040 = vmul.f32 %v136, %v1028
    %v1041 = vmul.f32 %v136, %v1032
    %v1042 = vmul.f32 %v136, %v1036
    %v1043 = vadd.f32 %v977, %v1037
    %v1044 = vadd.f32 %v978, %v1038
    %v1045 = vadd.f32 %v979, %v1039
    %v1046 = vadd.f32 %v980, %v1040
    %v1047 = vadd.f32 %v981, %v1041
    %v1048 = vadd.f32 %v982, %v1042
    %v1049 = vlaneseq
    %v1050 = vshrl.u32 %v1049, 7
    %v1051 = vsub.s32 2, %v1050
    %v1052 = vrot.slane %v911, %v1051
    %v1053 = vlaneseq
    %v1054 = vshrl.u32 %v1053, 7
    %v1055 = vsub.s32 6, %v1054
    %v1056 = vrot.slane %v911, %v1055
    %v1057 = vlaneseq
    %v1058 = vshrl.u32 %v1057, 7
    %v1059 = vsub.s32 2, %v1058
    %v1060 = vrot.slane %v912, %v1059
    %v1061 = vlaneseq
    %v1062 = vshrl.u32 %v1061, 7
    %v1063 = vsub.s32 6, %v1062
    %v1064 = vrot.slane %v912, %v1063
    %v1065 = vlaneseq
    %v1066 = vshrl.u32 %v1065, 7
    %v1067 = vsub.s32 2, %v1066
    %v1068 = vrot.slane %v913, %v1067
    %v1069 = vlaneseq
    %v1070 = vshrl.u32 %v1069, 7
    %v1071 = vsub.s32 6, %v1070
    %v1072 = vrot.slane %v913, %v1071
    %v1079 = vlaneseq
    %v1080 = vshrl.u32 %v1079, 7
    %v1081 = vsub.s32 2, %v1080
    %v1082 = vrot.slane %v1052, %v1081
    %v1083 = vlaneseq
    %v1084 = vshrl.u32 %v1083, 7
    %v1085 = vsub.s32 2, %v1084
    %v1086 = vrot.slane %v1056, %v1085
    %v1087 = vlaneseq
    %v1088 = vshrl.u32 %v1087, 7
    %v1089 = vsub.s32 2, %v1088
    %v1090 = vrot.slane %v1060, %v1089
    %v1091 = vlaneseq
    %v1092 = vshrl.u32 %v1091, 7
    %v1093 = vsub.s32 2, %v1092
    %v1094 = vrot.slane %v1064, %v1093
    %v1095 = vlaneseq
    %v1096 = vshrl.u32 %v1095, 7
    %v1097 = vsub.s32 2, %v1096
    %v1098 = vrot.slane %v1068, %v1097
    %v1099 = vlaneseq
    %v1100 = vshrl.u32 %v1099, 7
    %v1101 = vsub.s32 2, %v1100
    %v1102 = vrot.slane %v1072, %v1101
    %v1103 = vmul.f32 %v206, %v1082
    %v1104 = vmul.f32 %v206, %v1086
    %v1105 = vmul.f32 %v206, %v1090
    %v1106 = vmul.f32 %v206, %v1094
    %v1107 = vmul.f32 %v206, %v1098
    %v1108 = vmul.f32 %v206, %v1102
    %v1109 = vadd.f32 %v1043, %v1103
    %v1110 = vadd.f32 %v1044, %v1104
    %v1111 = vadd.f32 %v1045, %v1105
    %v1112 = vadd.f32 %v1046, %v1106
    %v1113 = vadd.f32 %v1047, %v1107
    %v1114 = vadd.f32 %v1048, %v1108
    %v1115 = vlaneseq
    %v1116 = vshrl.u32 %v1115, 7
    %v1117 = vsub.s32 3, %v1116
    %v1118 = vrot.slane %v911, %v1117
    %v1119 = vlaneseq
    %v1120 = vshrl.u32 %v1119, 7
    %v1121 = vsub.s32 7, %v1120
    %v1122 = vrot.slane %v911, %v1121
    %v1123 = vlaneseq
    %v1124 = vshrl.u32 %v1123, 7
    %v1125 = vsub.s32 3, %v1124
    %v1126 = vrot.slane %v912, %v1125
    %v1127 = vlaneseq
    %v1128 = vshrl.u32 %v1127, 7
    %v1129 = vsub.s32 7, %v1128
    %v1130 = vrot.slane %v912, %v1129
    %v1131 = vlaneseq
    %v1132 = vshrl.u32 %v1131, 7
    %v1133 = vsub.s32 3, %v1132
    %v1134 = vrot.slane %v913, %v1133
    %v1135 = vlaneseq
    %v1136 = vshrl.u32 %v1135, 7
    %v1137 = vsub.s32 7, %v1136
    %v1138 = vrot.slane %v913, %v1137
    %v1145 = vlaneseq
    %v1146 = vshrl.u32 %v1145, 7
    %v1147 = vsub.s32 3, %v1146
    %v1148 = vrot.slane %v1118, %v1147
    %v1149 = vlaneseq
    %v1150 = vshrl.u32 %v1149, 7
    %v1151 = vsub.s32 3, %v1150
    %v1152 = vrot.slane %v1122, %v1151
    %v1153 = vlaneseq
    %v1154 = vshrl.u32 %v1153, 7
    %v1155 = vsub.s32 3, %v1154
    %v1156 = vrot.slane %v1126, %v1155
    %v1157 = vlaneseq
    %v1158 = vshrl.u32 %v1157, 7
    %v1159 = vsub.s32 3, %v1158
    %v1160 = vrot.slane %v1130, %v1159
    %v1161 = vlaneseq
    %v1162 = vshrl.u32 %v1161, 7
    %v1163 = vsub.s32 3, %v1162
    %v1164 = vrot.slane %v1134, %v1163
    %v1165 = vlaneseq
    %v1166 = vshrl.u32 %v1165, 7
    %v1167 = vsub.s32 3, %v1166
    %v1168 = vrot.slane %v1138, %v1167
    %v1169 = vmul.f32 %v276, %v1148
    %v1170 = vmul.f32 %v276, %v1152
    %v1171 = vmul.f32 %v276, %v1156
    %v1172 = vmul.f32 %v276, %v1160
    %v1173 = vmul.f32 %v276, %v1164
    %v1174 = vmul.f32 %v276, %v1168
    %v1175 = vadd.f32 %v1109, %v1169
    %v1176 = vadd.f32 %v1110, %v1170
    %v1177 = vadd.f32 %v1111, %v1171
    %v1178 = vadd.f32 %v1112, %v1172
    %v1179 = vadd.f32 %v1113, %v1173
    %v1180 = vadd.f32 %v1114, %v1174
    %s1181 = scalar_lea.vmem [#allocation5], 144
    %1182 = vst [vmem:[%s1181] sm:$0xff] %v1175
    %1183 = vst [vmem:[%s1181 + $0x8] sm:$0xff] %v1176
    %1184 = vst [vmem:[%s1181 + $0x10] sm:$0xff] %v1177
    %1185 = vst [vmem:[%s1181 + $0x18] sm:$0xff] %v1178
    %1186 = vst [vmem:[%s1181 + $0x20] sm:$0xff] %v1179
    %1187 = vst [vmem:[%s1181 + $0x28] sm:$0xff] %v1180
    %s1188 = scalar_lea.vmem [#allocation6], 96
    %v1189 = vld [vmem:[%s1188] sm:$0xff]
    %v1190 = vld [vmem:[%s1188 + $0x8] sm:$0xff]
    %v1191 = vld [vmem:[%s1188 + $0x10] sm:$0xff]
    %v1195 = vlaneseq
    %v1196 = vshrl.u32 %v1195, 7
    %v1197 = vsub.s32 0, %v1196
    %v1198 = vrot.slane %v1189, %v1197
    %v1199 = vlaneseq
    %v1200 = vshrl.u32 %v1199, 7
    %v1201 = vsub.s32 4, %v1200
    %v1202 = vrot.slane %v1189, %v1201
    %v1203 = vlaneseq
    %v1204 = vshrl.u32 %v1203, 7
    %v1205 = vsub.s32 0, %v1204
    %v1206 = vrot.slane %v1190, %v1205
    %v1207 = vlaneseq
    %v1208 = vshrl.u32 %v1207, 7
    %v1209 = vsub.s32 4, %v1208
    %v1210 = vrot.slane %v1190, %v1209
    %v1211 = vlaneseq
    %v1212 = vshrl.u32 %v1211, 7
    %v1213 = vsub.s32 0, %v1212
    %v1214 = vrot.slane %v1191, %v1213
    %v1215 = vlaneseq
    %v1216 = vshrl.u32 %v1215, 7
    %v1217 = vsub.s32 4, %v1216
    %v1218 = vrot.slane %v1191, %v1217
    %v1225 = vlaneseq
    %v1226 = vshrl.u32 %v1225, 7
    %v1227 = vsub.s32 0, %v1226
    %v1228 = vrot.slane %v1198, %v1227
    %v1229 = vlaneseq
    %v1230 = vshrl.u32 %v1229, 7
    %v1231 = vsub.s32 0, %v1230
    %v1232 = vrot.slane %v1202, %v1231
    %v1233 = vlaneseq
    %v1234 = vshrl.u32 %v1233, 7
    %v1235 = vsub.s32 0, %v1234
    %v1236 = vrot.slane %v1206, %v1235
    %v1237 = vlaneseq
    %v1238 = vshrl.u32 %v1237, 7
    %v1239 = vsub.s32 0, %v1238
    %v1240 = vrot.slane %v1210, %v1239
    %v1241 = vlaneseq
    %v1242 = vshrl.u32 %v1241, 7
    %v1243 = vsub.s32 0, %v1242
    %v1244 = vrot.slane %v1214, %v1243
    %v1245 = vlaneseq
    %v1246 = vshrl.u32 %v1245, 7
    %v1247 = vsub.s32 0, %v1246
    %v1248 = vrot.slane %v1218, %v1247
    %v1249 = vmul.f32 %v59, %v1228
    %v1250 = vmul.f32 %v59, %v1232
    %v1251 = vmul.f32 %v59, %v1236
    %v1252 = vmul.f32 %v59, %v1240
    %v1253 = vmul.f32 %v59, %v1244
    %v1254 = vmul.f32 %v59, %v1248
    %v1255 = vadd.f32 %v419, %v1249
    %v1256 = vadd.f32 %v419, %v1250
    %v1257 = vadd.f32 %v419, %v1251
    %v1258 = vadd.f32 %v419, %v1252
    %v1259 = vadd.f32 %v419, %v1253
    %v1260 = vadd.f32 %v419, %v1254
    %v1261 = vlaneseq
    %v1262 = vshrl.u32 %v1261, 7
    %v1263 = vsub.s32 1, %v1262
    %v1264 = vrot.slane %v1189, %v1263
    %v1265 = vlaneseq
    %v1266 = vshrl.u32 %v1265, 7
    %v1267 = vsub.s32 5, %v1266
    %v1268 = vrot.slane %v1189, %v1267
    %v1269 = vlaneseq
    %v1270 = vshrl.u32 %v1269, 7
    %v1271 = vsub.s32 1, %v1270
    %v1272 = vrot.slane %v1190, %v1271
    %v1273 = vlaneseq
    %v1274 = vshrl.u32 %v1273, 7
    %v1275 = vsub.s32 5, %v1274
    %v1276 = vrot.slane %v1190, %v1275
    %v1277 = vlaneseq
    %v1278 = vshrl.u32 %v1277, 7
    %v1279 = vsub.s32 1, %v1278
    %v1280 = vrot.slane %v1191, %v1279
    %v1281 = vlaneseq
    %v1282 = vshrl.u32 %v1281, 7
    %v1283 = vsub.s32 5, %v1282
    %v1284 = vrot.slane %v1191, %v1283
    %v1291 = vlaneseq
    %v1292 = vshrl.u32 %v1291, 7
    %v1293 = vsub.s32 1, %v1292
    %v1294 = vrot.slane %v1264, %v1293
    %v1295 = vlaneseq
    %v1296 = vshrl.u32 %v1295, 7
    %v1297 = vsub.s32 1, %v1296
    %v1298 = vrot.slane %v1268, %v1297
    %v1299 = vlaneseq
    %v1300 = vshrl.u32 %v1299, 7
    %v1301 = vsub.s32 1, %v1300
    %v1302 = vrot.slane %v1272, %v1301
    %v1303 = vlaneseq
    %v1304 = vshrl.u32 %v1303, 7
    %v1305 = vsub.s32 1, %v1304
    %v1306 = vrot.slane %v1276, %v1305
    %v1307 = vlaneseq
    %v1308 = vshrl.u32 %v1307, 7
    %v1309 = vsub.s32 1, %v1308
    %v1310 = vrot.slane %v1280, %v1309
    %v1311 = vlaneseq
    %v1312 = vshrl.u32 %v1311, 7
    %v1313 = vsub.s32 1, %v1312
    %v1314 = vrot.slane %v1284, %v1313
    %v1315 = vmul.f32 %v136, %v1294
    %v1316 = vmul.f32 %v136, %v1298
    %v1317 = vmul.f32 %v136, %v1302
    %v1318 = vmul.f32 %v136, %v1306
    %v1319 = vmul.f32 %v136, %v1310
    %v1320 = vmul.f32 %v136, %v1314
    %v1321 = vadd.f32 %v1255, %v1315
    %v1322 = vadd.f32 %v1256, %v1316
    %v1323 = vadd.f32 %v1257, %v1317
    %v1324 = vadd.f32 %v1258, %v1318
    %v1325 = vadd.f32 %v1259, %v1319
    %v1326 = vadd.f32 %v1260, %v1320
    %v1327 = vlaneseq
    %v1328 = vshrl.u32 %v1327, 7
    %v1329 = vsub.s32 2, %v1328
    %v1330 = vrot.slane %v1189, %v1329
    %v1331 = vlaneseq
    %v1332 = vshrl.u32 %v1331, 7
    %v1333 = vsub.s32 6, %v1332
    %v1334 = vrot.slane %v1189, %v1333
    %v1335 = vlaneseq
    %v1336 = vshrl.u32 %v1335, 7
    %v1337 = vsub.s32 2, %v1336
    %v1338 = vrot.slane %v1190, %v1337
    %v1339 = vlaneseq
    %v1340 = vshrl.u32 %v1339, 7
    %v1341 = vsub.s32 6, %v1340
    %v1342 = vrot.slane %v1190, %v1341
    %v1343 = vlaneseq
    %v1344 = vshrl.u32 %v1343, 7
    %v1345 = vsub.s32 2, %v1344
    %v1346 = vrot.slane %v1191, %v1345
    %v1347 = vlaneseq
    %v1348 = vshrl.u32 %v1347, 7
    %v1349 = vsub.s32 6, %v1348
    %v1350 = vrot.slane %v1191, %v1349
    %v1357 = vlaneseq
    %v1358 = vshrl.u32 %v1357, 7
    %v1359 = vsub.s32 2, %v1358
    %v1360 = vrot.slane %v1330, %v1359
    %v1361 = vlaneseq
    %v1362 = vshrl.u32 %v1361, 7
    %v1363 = vsub.s32 2, %v1362
    %v1364 = vrot.slane %v1334, %v1363
    %v1365 = vlaneseq
    %v1366 = vshrl.u32 %v1365, 7
    %v1367 = vsub.s32 2, %v1366
    %v1368 = vrot.slane %v1338, %v1367
    %v1369 = vlaneseq
    %v1370 = vshrl.u32 %v1369, 7
    %v1371 = vsub.s32 2, %v1370
    %v1372 = vrot.slane %v1342, %v1371
    %v1373 = vlaneseq
    %v1374 = vshrl.u32 %v1373, 7
    %v1375 = vsub.s32 2, %v1374
    %v1376 = vrot.slane %v1346, %v1375
    %v1377 = vlaneseq
    %v1378 = vshrl.u32 %v1377, 7
    %v1379 = vsub.s32 2, %v1378
    %v1380 = vrot.slane %v1350, %v1379
    %v1381 = vmul.f32 %v206, %v1360
    %v1382 = vmul.f32 %v206, %v1364
    %v1383 = vmul.f32 %v206, %v1368
    %v1384 = vmul.f32 %v206, %v1372
    %v1385 = vmul.f32 %v206, %v1376
    %v1386 = vmul.f32 %v206, %v1380
    %v1387 = vadd.f32 %v1321, %v1381
    %v1388 = vadd.f32 %v1322, %v1382
    %v1389 = vadd.f32 %v1323, %v1383
    %v1390 = vadd.f32 %v1324, %v1384
    %v1391 = vadd.f32 %v1325, %v1385
    %v1392 = vadd.f32 %v1326, %v1386
    %v1393 = vlaneseq
    %v1394 = vshrl.u32 %v1393, 7
    %v1395 = vsub.s32 3, %v1394
    %v1396 = vrot.slane %v1189, %v1395
    %v1397 = vlaneseq
    %v1398 = vshrl.u32 %v1397, 7
    %v1399 = vsub.s32 7, %v1398
    %v1400 = vrot.slane %v1189, %v1399
    %v1401 = vlaneseq
    %v1402 = vshrl.u32 %v1401, 7
    %v1403 = vsub.s32 3, %v1402
    %v1404 = vrot.slane %v1190, %v1403
    %v1405 = vlaneseq
    %v1406 = vshrl.u32 %v1405, 7
    %v1407 = vsub.s32 7, %v1406
    %v1408 = vrot.slane %v1190, %v1407
    %v1409 = vlaneseq
    %v1410 = vshrl.u32 %v1409, 7
    %v1411 = vsub.s32 3, %v1410
    %v1412 = vrot.slane %v1191, %v1411
    %v1413 = vlaneseq
    %v1414 = vshrl.u32 %v1413, 7
    %v1415 = vsub.s32 7, %v1414
    %v1416 = vrot.slane %v1191, %v1415
    %v1423 = vlaneseq
    %v1424 = vshrl.u32 %v1423, 7
    %v1425 = vsub.s32 3, %v1424
    %v1426 = vrot.slane %v1396, %v1425
    %v1427 = vlaneseq
    %v1428 = vshrl.u32 %v1427, 7
    %v1429 = vsub.s32 3, %v1428
    %v1430 = vrot.slane %v1400, %v1429
    %v1431 = vlaneseq
    %v1432 = vshrl.u32 %v1431, 7
    %v1433 = vsub.s32 3, %v1432
    %v1434 = vrot.slane %v1404, %v1433
    %v1435 = vlaneseq
    %v1436 = vshrl.u32 %v1435, 7
    %v1437 = vsub.s32 3, %v1436
    %v1438 = vrot.slane %v1408, %v1437
    %v1439 = vlaneseq
    %v1440 = vshrl.u32 %v1439, 7
    %v1441 = vsub.s32 3, %v1440
    %v1442 = vrot.slane %v1412, %v1441
    %v1443 = vlaneseq
    %v1444 = vshrl.u32 %v1443, 7
    %v1445 = vsub.s32 3, %v1444
    %v1446 = vrot.slane %v1416, %v1445
    %v1447 = vmul.f32 %v276, %v1426
    %v1448 = vmul.f32 %v276, %v1430
    %v1449 = vmul.f32 %v276, %v1434
    %v1450 = vmul.f32 %v276, %v1438
    %v1451 = vmul.f32 %v276, %v1442
    %v1452 = vmul.f32 %v276, %v1446
    %v1453 = vadd.f32 %v1387, %v1447
    %v1454 = vadd.f32 %v1388, %v1448
    %v1455 = vadd.f32 %v1389, %v1449
    %v1456 = vadd.f32 %v1390, %v1450
    %v1457 = vadd.f32 %v1391, %v1451
    %v1458 = vadd.f32 %v1392, %v1452
    %s1459 = scalar_lea.vmem [#allocation5], 192
    %1460 = vst [vmem:[%s1459] sm:$0xff] %v1453
    %1461 = vst [vmem:[%s1459 + $0x8] sm:$0xff] %v1454
    %1462 = vst [vmem:[%s1459 + $0x10] sm:$0xff] %v1455
    %1463 = vst [vmem:[%s1459 + $0x18] sm:$0xff] %v1456
    %1464 = vst [vmem:[%s1459 + $0x20] sm:$0xff] %v1457
    %1465 = vst [vmem:[%s1459 + $0x28] sm:$0xff] %v1458
    %s1466 = scalar_lea.vmem [#allocation6], 120
    %v1467 = vld [vmem:[%s1466] sm:$0xff]
    %v1468 = vld [vmem:[%s1466 + $0x8] sm:$0xff]
    %v1469 = vld [vmem:[%s1466 + $0x10] sm:$0xff]
    %v1473 = vlaneseq
    %v1474 = vshrl.u32 %v1473, 7
    %v1475 = vsub.s32 0, %v1474
    %v1476 = vrot.slane %v1467, %v1475
    %v1477 = vlaneseq
    %v1478 = vshrl.u32 %v1477, 7
    %v1479 = vsub.s32 4, %v1478
    %v1480 = vrot.slane %v1467, %v1479
    %v1481 = vlaneseq
    %v1482 = vshrl.u32 %v1481, 7
    %v1483 = vsub.s32 0, %v1482
    %v1484 = vrot.slane %v1468, %v1483
    %v1485 = vlaneseq
    %v1486 = vshrl.u32 %v1485, 7
    %v1487 = vsub.s32 4, %v1486
    %v1488 = vrot.slane %v1468, %v1487
    %v1489 = vlaneseq
    %v1490 = vshrl.u32 %v1489, 7
    %v1491 = vsub.s32 0, %v1490
    %v1492 = vrot.slane %v1469, %v1491
    %v1493 = vlaneseq
    %v1494 = vshrl.u32 %v1493, 7
    %v1495 = vsub.s32 4, %v1494
    %v1496 = vrot.slane %v1469, %v1495
    %v1503 = vlaneseq
    %v1504 = vshrl.u32 %v1503, 7
    %v1505 = vsub.s32 0, %v1504
    %v1506 = vrot.slane %v1476, %v1505
    %v1507 = vlaneseq
    %v1508 = vshrl.u32 %v1507, 7
    %v1509 = vsub.s32 0, %v1508
    %v1510 = vrot.slane %v1480, %v1509
    %v1511 = vlaneseq
    %v1512 = vshrl.u32 %v1511, 7
    %v1513 = vsub.s32 0, %v1512
    %v1514 = vrot.slane %v1484, %v1513
    %v1515 = vlaneseq
    %v1516 = vshrl.u32 %v1515, 7
    %v1517 = vsub.s32 0, %v1516
    %v1518 = vrot.slane %v1488, %v1517
    %v1519 = vlaneseq
    %v1520 = vshrl.u32 %v1519, 7
    %v1521 = vsub.s32 0, %v1520
    %v1522 = vrot.slane %v1492, %v1521
    %v1523 = vlaneseq
    %v1524 = vshrl.u32 %v1523, 7
    %v1525 = vsub.s32 0, %v1524
    %v1526 = vrot.slane %v1496, %v1525
    %v1527 = vmul.f32 %v59, %v1506
    %v1528 = vmul.f32 %v59, %v1510
    %v1529 = vmul.f32 %v59, %v1514
    %v1530 = vmul.f32 %v59, %v1518
    %v1531 = vmul.f32 %v59, %v1522
    %v1532 = vmul.f32 %v59, %v1526
    %v1533 = vadd.f32 %v419, %v1527
    %v1534 = vadd.f32 %v419, %v1528
    %v1535 = vadd.f32 %v419, %v1529
    %v1536 = vadd.f32 %v419, %v1530
    %v1537 = vadd.f32 %v419, %v1531
    %v1538 = vadd.f32 %v419, %v1532
    %v1539 = vlaneseq
    %v1540 = vshrl.u32 %v1539, 7
    %v1541 = vsub.s32 1, %v1540
    %v1542 = vrot.slane %v1467, %v1541
    %v1543 = vlaneseq
    %v1544 = vshrl.u32 %v1543, 7
    %v1545 = vsub.s32 5, %v1544
    %v1546 = vrot.slane %v1467, %v1545
    %v1547 = vlaneseq
    %v1548 = vshrl.u32 %v1547, 7
    %v1549 = vsub.s32 1, %v1548
    %v1550 = vrot.slane %v1468, %v1549
    %v1551 = vlaneseq
    %v1552 = vshrl.u32 %v1551, 7
    %v1553 = vsub.s32 5, %v1552
    %v1554 = vrot.slane %v1468, %v1553
    %v1555 = vlaneseq
    %v1556 = vshrl.u32 %v1555, 7
    %v1557 = vsub.s32 1, %v1556
    %v1558 = vrot.slane %v1469, %v1557
    %v1559 = vlaneseq
    %v1560 = vshrl.u32 %v1559, 7
    %v1561 = vsub.s32 5, %v1560
    %v1562 = vrot.slane %v1469, %v1561
    %v1569 = vlaneseq
    %v1570 = vshrl.u32 %v1569, 7
    %v1571 = vsub.s32 1, %v1570
    %v1572 = vrot.slane %v1542, %v1571
    %v1573 = vlaneseq
    %v1574 = vshrl.u32 %v1573, 7
    %v1575 = vsub.s32 1, %v1574
    %v1576 = vrot.slane %v1546, %v1575
    %v1577 = vlaneseq
    %v1578 = vshrl.u32 %v1577, 7
    %v1579 = vsub.s32 1, %v1578
    %v1580 = vrot.slane %v1550, %v1579
    %v1581 = vlaneseq
    %v1582 = vshrl.u32 %v1581, 7
    %v1583 = vsub.s32 1, %v1582
    %v1584 = vrot.slane %v1554, %v1583
    %v1585 = vlaneseq
    %v1586 = vshrl.u32 %v1585, 7
    %v1587 = vsub.s32 1, %v1586
    %v1588 = vrot.slane %v1558, %v1587
    %v1589 = vlaneseq
    %v1590 = vshrl.u32 %v1589, 7
    %v1591 = vsub.s32 1, %v1590
    %v1592 = vrot.slane %v1562, %v1591
    %v1593 = vmul.f32 %v136, %v1572
    %v1594 = vmul.f32 %v136, %v1576
    %v1595 = vmul.f32 %v136, %v1580
    %v1596 = vmul.f32 %v136, %v1584
    %v1597 = vmul.f32 %v136, %v1588
    %v1598 = vmul.f32 %v136, %v1592
    %v1599 = vadd.f32 %v1533, %v1593
    %v1600 = vadd.f32 %v1534, %v1594
    %v1601 = vadd.f32 %v1535, %v1595
    %v1602 = vadd.f32 %v1536, %v1596
    %v1603 = vadd.f32 %v1537, %v1597
    %v1604 = vadd.f32 %v1538, %v1598
    %v1605 = vlaneseq
    %v1606 = vshrl.u32 %v1605, 7
    %v1607 = vsub.s32 2, %v1606
    %v1608 = vrot.slane %v1467, %v1607
    %v1609 = vlaneseq
    %v1610 = vshrl.u32 %v1609, 7
    %v1611 = vsub.s32 6, %v1610
    %v1612 = vrot.slane %v1467, %v1611
    %v1613 = vlaneseq
    %v1614 = vshrl.u32 %v1613, 7
    %v1615 = vsub.s32 2, %v1614
    %v1616 = vrot.slane %v1468, %v1615
    %v1617 = vlaneseq
    %v1618 = vshrl.u32 %v1617, 7
    %v1619 = vsub.s32 6, %v1618
    %v1620 = vrot.slane %v1468, %v1619
    %v1621 = vlaneseq
    %v1622 = vshrl.u32 %v1621, 7
    %v1623 = vsub.s32 2, %v1622
    %v1624 = vrot.slane %v1469, %v1623
    %v1625 = vlaneseq
    %v1626 = vshrl.u32 %v1625, 7
    %v1627 = vsub.s32 6, %v1626
    %v1628 = vrot.slane %v1469, %v1627
    %v1635 = vlaneseq
    %v1636 = vshrl.u32 %v1635, 7
    %v1637 = vsub.s32 2, %v1636
    %v1638 = vrot.slane %v1608, %v1637
    %v1639 = vlaneseq
    %v1640 = vshrl.u32 %v1639, 7
    %v1641 = vsub.s32 2, %v1640
    %v1642 = vrot.slane %v1612, %v1641
    %v1643 = vlaneseq
    %v1644 = vshrl.u32 %v1643, 7
    %v1645 = vsub.s32 2, %v1644
    %v1646 = vrot.slane %v1616, %v1645
    %v1647 = vlaneseq
    %v1648 = vshrl.u32 %v1647, 7
    %v1649 = vsub.s32 2, %v1648
    %v1650 = vrot.slane %v1620, %v1649
    %v1651 = vlaneseq
    %v1652 = vshrl.u32 %v1651, 7
    %v1653 = vsub.s32 2, %v1652
    %v1654 = vrot.slane %v1624, %v1653
    %v1655 = vlaneseq
    %v1656 = vshrl.u32 %v1655, 7
    %v1657 = vsub.s32 2, %v1656
    %v1658 = vrot.slane %v1628, %v1657
    %v1659 = vmul.f32 %v206, %v1638
    %v1660 = vmul.f32 %v206, %v1642
    %v1661 = vmul.f32 %v206, %v1646
    %v1662 = vmul.f32 %v206, %v1650
    %v1663 = vmul.f32 %v206, %v1654
    %v1664 = vmul.f32 %v206, %v1658
    %v1665 = vadd.f32 %v1599, %v1659
    %v1666 = vadd.f32 %v1600, %v1660
    %v1667 = vadd.f32 %v1601, %v1661
    %v1668 = vadd.f32 %v1602, %v1662
    %v1669 = vadd.f32 %v1603, %v1663
    %v1670 = vadd.f32 %v1604, %v1664
    %v1671 = vlaneseq
    %v1672 = vshrl.u32 %v1671, 7
    %v1673 = vsub.s32 3, %v1672
    %v1674 = vrot.slane %v1467, %v1673
    %v1675 = vlaneseq
    %v1676 = vshrl.u32 %v1675, 7
    %v1677 = vsub.s32 7, %v1676
    %v1678 = vrot.slane %v1467, %v1677
    %v1679 = vlaneseq
    %v1680 = vshrl.u32 %v1679, 7
    %v1681 = vsub.s32 3, %v1680
    %v1682 = vrot.slane %v1468, %v1681
    %v1683 = vlaneseq
    %v1684 = vshrl.u32 %v1683, 7
    %v1685 = vsub.s32 7, %v1684
    %v1686 = vrot.slane %v1468, %v1685
    %v1687 = vlaneseq
    %v1688 = vshrl.u32 %v1687, 7
    %v1689 = vsub.s32 3, %v1688
    %v1690 = vrot.slane %v1469, %v1689
    %v1691 = vlaneseq
    %v1692 = vshrl.u32 %v1691, 7
    %v1693 = vsub.s32 7, %v1692
    %v1694 = vrot.slane %v1469, %v1693
    %v1701 = vlaneseq
    %v1702 = vshrl.u32 %v1701, 7
    %v1703 = vsub.s32 3, %v1702
    %v1704 = vrot.slane %v1674, %v1703
    %v1705 = vlaneseq
    %v1706 = vshrl.u32 %v1705, 7
    %v1707 = vsub.s32 3, %v1706
    %v1708 = vrot.slane %v1678, %v1707
    %v1709 = vlaneseq
    %v1710 = vshrl.u32 %v1709, 7
    %v1711 = vsub.s32 3, %v1710
    %v1712 = vrot.slane %v1682, %v1711
    %v1713 = vlaneseq
    %v1714 = vshrl.u32 %v1713, 7
    %v1715 = vsub.s32 3, %v1714
    %v1716 = vrot.slane %v1686, %v1715
    %v1717 = vlaneseq
    %v1718 = vshrl.u32 %v1717, 7
    %v1719 = vsub.s32 3, %v1718
    %v1720 = vrot.slane %v1690, %v1719
    %v1721 = vlaneseq
    %v1722 = vshrl.u32 %v1721, 7
    %v1723 = vsub.s32 3, %v1722
    %v1724 = vrot.slane %v1694, %v1723
    %v1725 = vmul.f32 %v276, %v1704
    %v1726 = vmul.f32 %v276, %v1708
    %v1727 = vmul.f32 %v276, %v1712
    %v1728 = vmul.f32 %v276, %v1716
    %v1729 = vmul.f32 %v276, %v1720
    %v1730 = vmul.f32 %v276, %v1724
    %v1731 = vadd.f32 %v1665, %v1725
    %v1732 = vadd.f32 %v1666, %v1726
    %v1733 = vadd.f32 %v1667, %v1727
    %v1734 = vadd.f32 %v1668, %v1728
    %v1735 = vadd.f32 %v1669, %v1729
    %v1736 = vadd.f32 %v1670, %v1730
    %s1737 = scalar_lea.vmem [#allocation5], 240
    %1738 = vst [vmem:[%s1737] sm:$0xff] %v1731
    %1739 = vst [vmem:[%s1737 + $0x8] sm:$0xff] %v1732
    %1740 = vst [vmem:[%s1737 + $0x10] sm:$0xff] %v1733
    %1741 = vst [vmem:[%s1737 + $0x18] sm:$0xff] %v1734
    %1742 = vst [vmem:[%s1737 + $0x20] sm:$0xff] %v1735
    %1743 = vst [vmem:[%s1737 + $0x28] sm:$0xff] %v1736
    %s1744 = scalar_lea.vmem [#allocation6], 144
    %v1745 = vld [vmem:[%s1744] sm:$0xff]
    %v1746 = vld [vmem:[%s1744 + $0x8] sm:$0xff]
    %v1747 = vld [vmem:[%s1744 + $0x10] sm:$0xff]
    %v1751 = vlaneseq
    %v1752 = vshrl.u32 %v1751, 7
    %v1753 = vsub.s32 0, %v1752
    %v1754 = vrot.slane %v1745, %v1753
    %v1755 = vlaneseq
    %v1756 = vshrl.u32 %v1755, 7
    %v1757 = vsub.s32 4, %v1756
    %v1758 = vrot.slane %v1745, %v1757
    %v1759 = vlaneseq
    %v1760 = vshrl.u32 %v1759, 7
    %v1761 = vsub.s32 0, %v1760
    %v1762 = vrot.slane %v1746, %v1761
    %v1763 = vlaneseq
    %v1764 = vshrl.u32 %v1763, 7
    %v1765 = vsub.s32 4, %v1764
    %v1766 = vrot.slane %v1746, %v1765
    %v1767 = vlaneseq
    %v1768 = vshrl.u32 %v1767, 7
    %v1769 = vsub.s32 0, %v1768
    %v1770 = vrot.slane %v1747, %v1769
    %v1771 = vlaneseq
    %v1772 = vshrl.u32 %v1771, 7
    %v1773 = vsub.s32 4, %v1772
    %v1774 = vrot.slane %v1747, %v1773
    %v1781 = vlaneseq
    %v1782 = vshrl.u32 %v1781, 7
    %v1783 = vsub.s32 0, %v1782
    %v1784 = vrot.slane %v1754, %v1783
    %v1785 = vlaneseq
    %v1786 = vshrl.u32 %v1785, 7
    %v1787 = vsub.s32 0, %v1786
    %v1788 = vrot.slane %v1758, %v1787
    %v1789 = vlaneseq
    %v1790 = vshrl.u32 %v1789, 7
    %v1791 = vsub.s32 0, %v1790
    %v1792 = vrot.slane %v1762, %v1791
    %v1793 = vlaneseq
    %v1794 = vshrl.u32 %v1793, 7
    %v1795 = vsub.s32 0, %v1794
    %v1796 = vrot.slane %v1766, %v1795
    %v1797 = vlaneseq
    %v1798 = vshrl.u32 %v1797, 7
    %v1799 = vsub.s32 0, %v1798
    %v1800 = vrot.slane %v1770, %v1799
    %v1801 = vlaneseq
    %v1802 = vshrl.u32 %v1801, 7
    %v1803 = vsub.s32 0, %v1802
    %v1804 = vrot.slane %v1774, %v1803
    %v1805 = vmul.f32 %v59, %v1784
    %v1806 = vmul.f32 %v59, %v1788
    %v1807 = vmul.f32 %v59, %v1792
    %v1808 = vmul.f32 %v59, %v1796
    %v1809 = vmul.f32 %v59, %v1800
    %v1810 = vmul.f32 %v59, %v1804
    %v1811 = vadd.f32 %v419, %v1805
    %v1812 = vadd.f32 %v419, %v1806
    %v1813 = vadd.f32 %v419, %v1807
    %v1814 = vadd.f32 %v419, %v1808
    %v1815 = vadd.f32 %v419, %v1809
    %v1816 = vadd.f32 %v419, %v1810
    %v1817 = vlaneseq
    %v1818 = vshrl.u32 %v1817, 7
    %v1819 = vsub.s32 1, %v1818
    %v1820 = vrot.slane %v1745, %v1819
    %v1821 = vlaneseq
    %v1822 = vshrl.u32 %v1821, 7
    %v1823 = vsub.s32 5, %v1822
    %v1824 = vrot.slane %v1745, %v1823
    %v1825 = vlaneseq
    %v1826 = vshrl.u32 %v1825, 7
    %v1827 = vsub.s32 1, %v1826
    %v1828 = vrot.slane %v1746, %v1827
    %v1829 = vlaneseq
    %v1830 = vshrl.u32 %v1829, 7
    %v1831 = vsub.s32 5, %v1830
    %v1832 = vrot.slane %v1746, %v1831
    %v1833 = vlaneseq
    %v1834 = vshrl.u32 %v1833, 7
    %v1835 = vsub.s32 1, %v1834
    %v1836 = vrot.slane %v1747, %v1835
    %v1837 = vlaneseq
    %v1838 = vshrl.u32 %v1837, 7
    %v1839 = vsub.s32 5, %v1838
    %v1840 = vrot.slane %v1747, %v1839
    %v1847 = vlaneseq
    %v1848 = vshrl.u32 %v1847, 7
    %v1849 = vsub.s32 1, %v1848
    %v1850 = vrot.slane %v1820, %v1849
    %v1851 = vlaneseq
    %v1852 = vshrl.u32 %v1851, 7
    %v1853 = vsub.s32 1, %v1852
    %v1854 = vrot.slane %v1824, %v1853
    %v1855 = vlaneseq
    %v1856 = vshrl.u32 %v1855, 7
    %v1857 = vsub.s32 1, %v1856
    %v1858 = vrot.slane %v1828, %v1857
    %v1859 = vlaneseq
    %v1860 = vshrl.u32 %v1859, 7
    %v1861 = vsub.s32 1, %v1860
    %v1862 = vrot.slane %v1832, %v1861
    %v1863 = vlaneseq
    %v1864 = vshrl.u32 %v1863, 7
    %v1865 = vsub.s32 1, %v1864
    %v1866 = vrot.slane %v1836, %v1865
    %v1867 = vlaneseq
    %v1868 = vshrl.u32 %v1867, 7
    %v1869 = vsub.s32 1, %v1868
    %v1870 = vrot.slane %v1840, %v1869
    %v1871 = vmul.f32 %v136, %v1850
    %v1872 = vmul.f32 %v136, %v1854
    %v1873 = vmul.f32 %v136, %v1858
    %v1874 = vmul.f32 %v136, %v1862
    %v1875 = vmul.f32 %v136, %v1866
    %v1876 = vmul.f32 %v136, %v1870
    %v1877 = vadd.f32 %v1811, %v1871
    %v1878 = vadd.f32 %v1812, %v1872
    %v1879 = vadd.f32 %v1813, %v1873
    %v1880 = vadd.f32 %v1814, %v1874
    %v1881 = vadd.f32 %v1815, %v1875
    %v1882 = vadd.f32 %v1816, %v1876
    %v1883 = vlaneseq
    %v1884 = vshrl.u32 %v1883, 7
    %v1885 = vsub.s32 2, %v1884
    %v1886 = vrot.slane %v1745, %v1885
    %v1887 = vlaneseq
    %v1888 = vshrl.u32 %v1887, 7
    %v1889 = vsub.s32 6, %v1888
    %v1890 = vrot.slane %v1745, %v1889
    %v1891 = vlaneseq
    %v1892 = vshrl.u32 %v1891, 7
    %v1893 = vsub.s32 2, %v1892
    %v1894 = vrot.slane %v1746, %v1893
    %v1895 = vlaneseq
    %v1896 = vshrl.u32 %v1895, 7
    %v1897 = vsub.s32 6, %v1896
    %v1898 = vrot.slane %v1746, %v1897
    %v1899 = vlaneseq
    %v1900 = vshrl.u32 %v1899, 7
    %v1901 = vsub.s32 2, %v1900
    %v1902 = vrot.slane %v1747, %v1901
    %v1903 = vlaneseq
    %v1904 = vshrl.u32 %v1903, 7
    %v1905 = vsub.s32 6, %v1904
    %v1906 = vrot.slane %v1747, %v1905
    %v1913 = vlaneseq
    %v1914 = vshrl.u32 %v1913, 7
    %v1915 = vsub.s32 2, %v1914
    %v1916 = vrot.slane %v1886, %v1915
    %v1917 = vlaneseq
    %v1918 = vshrl.u32 %v1917, 7
    %v1919 = vsub.s32 2, %v1918
    %v1920 = vrot.slane %v1890, %v1919
    %v1921 = vlaneseq
    %v1922 = vshrl.u32 %v1921, 7
    %v1923 = vsub.s32 2, %v1922
    %v1924 = vrot.slane %v1894, %v1923
    %v1925 = vlaneseq
    %v1926 = vshrl.u32 %v1925, 7
    %v1927 = vsub.s32 2, %v1926
    %v1928 = vrot.slane %v1898, %v1927
    %v1929 = vlaneseq
    %v1930 = vshrl.u32 %v1929, 7
    %v1931 = vsub.s32 2, %v1930
    %v1932 = vrot.slane %v1902, %v1931
    %v1933 = vlaneseq
    %v1934 = vshrl.u32 %v1933, 7
    %v1935 = vsub.s32 2, %v1934
    %v1936 = vrot.slane %v1906, %v1935
    %v1937 = vmul.f32 %v206, %v1916
    %v1938 = vmul.f32 %v206, %v1920
    %v1939 = vmul.f32 %v206, %v1924
    %v1940 = vmul.f32 %v206, %v1928
    %v1941 = vmul.f32 %v206, %v1932
    %v1942 = vmul.f32 %v206, %v1936
    %v1943 = vadd.f32 %v1877, %v1937
    %v1944 = vadd.f32 %v1878, %v1938
    %v1945 = vadd.f32 %v1879, %v1939
    %v1946 = vadd.f32 %v1880, %v1940
    %v1947 = vadd.f32 %v1881, %v1941
    %v1948 = vadd.f32 %v1882, %v1942
    %v1949 = vlaneseq
    %v1950 = vshrl.u32 %v1949, 7
    %v1951 = vsub.s32 3, %v1950
    %v1952 = vrot.slane %v1745, %v1951
    %v1953 = vlaneseq
    %v1954 = vshrl.u32 %v1953, 7
    %v1955 = vsub.s32 7, %v1954
    %v1956 = vrot.slane %v1745, %v1955
    %v1957 = vlaneseq
    %v1958 = vshrl.u32 %v1957, 7
    %v1959 = vsub.s32 3, %v1958
    %v1960 = vrot.slane %v1746, %v1959
    %v1961 = vlaneseq
    %v1962 = vshrl.u32 %v1961, 7
    %v1963 = vsub.s32 7, %v1962
    %v1964 = vrot.slane %v1746, %v1963
    %v1965 = vlaneseq
    %v1966 = vshrl.u32 %v1965, 7
    %v1967 = vsub.s32 3, %v1966
    %v1968 = vrot.slane %v1747, %v1967
    %v1969 = vlaneseq
    %v1970 = vshrl.u32 %v1969, 7
    %v1971 = vsub.s32 7, %v1970
    %v1972 = vrot.slane %v1747, %v1971
    %v1979 = vlaneseq
    %v1980 = vshrl.u32 %v1979, 7
    %v1981 = vsub.s32 3, %v1980
    %v1982 = vrot.slane %v1952, %v1981
    %v1983 = vlaneseq
    %v1984 = vshrl.u32 %v1983, 7
    %v1985 = vsub.s32 3, %v1984
    %v1986 = vrot.slane %v1956, %v1985
    %v1987 = vlaneseq
    %v1988 = vshrl.u32 %v1987, 7
    %v1989 = vsub.s32 3, %v1988
    %v1990 = vrot.slane %v1960, %v1989
    %v1991 = vlaneseq
    %v1992 = vshrl.u32 %v1991, 7
    %v1993 = vsub.s32 3, %v1992
    %v1994 = vrot.slane %v1964, %v1993
    %v1995 = vlaneseq
    %v1996 = vshrl.u32 %v1995, 7
    %v1997 = vsub.s32 3, %v1996
    %v1998 = vrot.slane %v1968, %v1997
    %v1999 = vlaneseq
    %v2000 = vshrl.u32 %v1999, 7
    %v2001 = vsub.s32 3, %v2000
    %v2002 = vrot.slane %v1972, %v2001
    %v2003 = vmul.f32 %v276, %v1982
    %v2004 = vmul.f32 %v276, %v1986
    %v2005 = vmul.f32 %v276, %v1990
    %v2006 = vmul.f32 %v276, %v1994
    %v2007 = vmul.f32 %v276, %v1998
    %v2008 = vmul.f32 %v276, %v2002
    %v2009 = vadd.f32 %v1943, %v2003
    %v2010 = vadd.f32 %v1944, %v2004
    %v2011 = vadd.f32 %v1945, %v2005
    %v2012 = vadd.f32 %v1946, %v2006
    %v2013 = vadd.f32 %v1947, %v2007
    %v2014 = vadd.f32 %v1948, %v2008
    %s2015 = scalar_lea.vmem [#allocation5], 288
    %2016 = vst [vmem:[%s2015] sm:$0xff] %v2009
    %2017 = vst [vmem:[%s2015 + $0x8] sm:$0xff] %v2010
    %2018 = vst [vmem:[%s2015 + $0x10] sm:$0xff] %v2011
    %2019 = vst [vmem:[%s2015 + $0x18] sm:$0xff] %v2012
    %2020 = vst [vmem:[%s2015 + $0x20] sm:$0xff] %v2013
    %2021 = vst [vmem:[%s2015 + $0x28] sm:$0xff] %v2014
    %s2022 = scalar_lea.vmem [#allocation6], 168
    %v2023 = vld [vmem:[%s2022] sm:$0xff]
    %v2024 = vld [vmem:[%s2022 + $0x8] sm:$0xff]
    %v2025 = vld [vmem:[%s2022 + $0x10] sm:$0xff]
    %v2029 = vlaneseq
    %v2030 = vshrl.u32 %v2029, 7
    %v2031 = vsub.s32 0, %v2030
    %v2032 = vrot.slane %v2023, %v2031
    %v2033 = vlaneseq
    %v2034 = vshrl.u32 %v2033, 7
    %v2035 = vsub.s32 4, %v2034
    %v2036 = vrot.slane %v2023, %v2035
    %v2037 = vlaneseq
    %v2038 = vshrl.u32 %v2037, 7
    %v2039 = vsub.s32 0, %v2038
    %v2040 = vrot.slane %v2024, %v2039
    %v2041 = vlaneseq
    %v2042 = vshrl.u32 %v2041, 7
    %v2043 = vsub.s32 4, %v2042
    %v2044 = vrot.slane %v2024, %v2043
    %v2045 = vlaneseq
    %v2046 = vshrl.u32 %v2045, 7
    %v2047 = vsub.s32 0, %v2046
    %v2048 = vrot.slane %v2025, %v2047
    %v2049 = vlaneseq
    %v2050 = vshrl.u32 %v2049, 7
    %v2051 = vsub.s32 4, %v2050
    %v2052 = vrot.slane %v2025, %v2051
    %v2059 = vlaneseq
    %v2060 = vshrl.u32 %v2059, 7
    %v2061 = vsub.s32 0, %v2060
    %v2062 = vrot.slane %v2032, %v2061
    %v2063 = vlaneseq
    %v2064 = vshrl.u32 %v2063, 7
    %v2065 = vsub.s32 0, %v2064
    %v2066 = vrot.slane %v2036, %v2065
    %v2067 = vlaneseq
    %v2068 = vshrl.u32 %v2067, 7
    %v2069 = vsub.s32 0, %v2068
    %v2070 = vrot.slane %v2040, %v2069
    %v2071 = vlaneseq
    %v2072 = vshrl.u32 %v2071, 7
    %v2073 = vsub.s32 0, %v2072
    %v2074 = vrot.slane %v2044, %v2073
    %v2075 = vlaneseq
    %v2076 = vshrl.u32 %v2075, 7
    %v2077 = vsub.s32 0, %v2076
    %v2078 = vrot.slane %v2048, %v2077
    %v2079 = vlaneseq
    %v2080 = vshrl.u32 %v2079, 7
    %v2081 = vsub.s32 0, %v2080
    %v2082 = vrot.slane %v2052, %v2081
    %v2083 = vmul.f32 %v59, %v2062
    %v2084 = vmul.f32 %v59, %v2066
    %v2085 = vmul.f32 %v59, %v2070
    %v2086 = vmul.f32 %v59, %v2074
    %v2087 = vmul.f32 %v59, %v2078
    %v2088 = vmul.f32 %v59, %v2082
    %v2089 = vadd.f32 %v419, %v2083
    %v2090 = vadd.f32 %v419, %v2084
    %v2091 = vadd.f32 %v419, %v2085
    %v2092 = vadd.f32 %v419, %v2086
    %v2093 = vadd.f32 %v419, %v2087
    %v2094 = vadd.f32 %v419, %v2088
    %v2095 = vlaneseq
    %v2096 = vshrl.u32 %v2095, 7
    %v2097 = vsub.s32 1, %v2096
    %v2098 = vrot.slane %v2023, %v2097
    %v2099 = vlaneseq
    %v2100 = vshrl.u32 %v2099, 7
    %v2101 = vsub.s32 5, %v2100
    %v2102 = vrot.slane %v2023, %v2101
    %v2103 = vlaneseq
    %v2104 = vshrl.u32 %v2103, 7
    %v2105 = vsub.s32 1, %v2104
    %v2106 = vrot.slane %v2024, %v2105
    %v2107 = vlaneseq
    %v2108 = vshrl.u32 %v2107, 7
    %v2109 = vsub.s32 5, %v2108
    %v2110 = vrot.slane %v2024, %v2109
    %v2111 = vlaneseq
    %v2112 = vshrl.u32 %v2111, 7
    %v2113 = vsub.s32 1, %v2112
    %v2114 = vrot.slane %v2025, %v2113
    %v2115 = vlaneseq
    %v2116 = vshrl.u32 %v2115, 7
    %v2117 = vsub.s32 5, %v2116
    %v2118 = vrot.slane %v2025, %v2117
    %v2125 = vlaneseq
    %v2126 = vshrl.u32 %v2125, 7
    %v2127 = vsub.s32 1, %v2126
    %v2128 = vrot.slane %v2098, %v2127
    %v2129 = vlaneseq
    %v2130 = vshrl.u32 %v2129, 7
    %v2131 = vsub.s32 1, %v2130
    %v2132 = vrot.slane %v2102, %v2131
    %v2133 = vlaneseq
    %v2134 = vshrl.u32 %v2133, 7
    %v2135 = vsub.s32 1, %v2134
    %v2136 = vrot.slane %v2106, %v2135
    %v2137 = vlaneseq
    %v2138 = vshrl.u32 %v2137, 7
    %v2139 = vsub.s32 1, %v2138
    %v2140 = vrot.slane %v2110, %v2139
    %v2141 = vlaneseq
    %v2142 = vshrl.u32 %v2141, 7
    %v2143 = vsub.s32 1, %v2142
    %v2144 = vrot.slane %v2114, %v2143
    %v2145 = vlaneseq
    %v2146 = vshrl.u32 %v2145, 7
    %v2147 = vsub.s32 1, %v2146
    %v2148 = vrot.slane %v2118, %v2147
    %v2149 = vmul.f32 %v136, %v2128
    %v2150 = vmul.f32 %v136, %v2132
    %v2151 = vmul.f32 %v136, %v2136
    %v2152 = vmul.f32 %v136, %v2140
    %v2153 = vmul.f32 %v136, %v2144
    %v2154 = vmul.f32 %v136, %v2148
    %v2155 = vadd.f32 %v2089, %v2149
    %v2156 = vadd.f32 %v2090, %v2150
    %v2157 = vadd.f32 %v2091, %v2151
    %v2158 = vadd.f32 %v2092, %v2152
    %v2159 = vadd.f32 %v2093, %v2153
    %v2160 = vadd.f32 %v2094, %v2154
    %v2161 = vlaneseq
    %v2162 = vshrl.u32 %v2161, 7
    %v2163 = vsub.s32 2, %v2162
    %v2164 = vrot.slane %v2023, %v2163
    %v2165 = vlaneseq
    %v2166 = vshrl.u32 %v2165, 7
    %v2167 = vsub.s32 6, %v2166
    %v2168 = vrot.slane %v2023, %v2167
    %v2169 = vlaneseq
    %v2170 = vshrl.u32 %v2169, 7
    %v2171 = vsub.s32 2, %v2170
    %v2172 = vrot.slane %v2024, %v2171
    %v2173 = vlaneseq
    %v2174 = vshrl.u32 %v2173, 7
    %v2175 = vsub.s32 6, %v2174
    %v2176 = vrot.slane %v2024, %v2175
    %v2177 = vlaneseq
    %v2178 = vshrl.u32 %v2177, 7
    %v2179 = vsub.s32 2, %v2178
    %v2180 = vrot.slane %v2025, %v2179
    %v2181 = vlaneseq
    %v2182 = vshrl.u32 %v2181, 7
    %v2183 = vsub.s32 6, %v2182
    %v2184 = vrot.slane %v2025, %v2183
    %v2191 = vlaneseq
    %v2192 = vshrl.u32 %v2191, 7
    %v2193 = vsub.s32 2, %v2192
    %v2194 = vrot.slane %v2164, %v2193
    %v2195 = vlaneseq
    %v2196 = vshrl.u32 %v2195, 7
    %v2197 = vsub.s32 2, %v2196
    %v2198 = vrot.slane %v2168, %v2197
    %v2199 = vlaneseq
    %v2200 = vshrl.u32 %v2199, 7
    %v2201 = vsub.s32 2, %v2200
    %v2202 = vrot.slane %v2172, %v2201
    %v2203 = vlaneseq
    %v2204 = vshrl.u32 %v2203, 7
    %v2205 = vsub.s32 2, %v2204
    %v2206 = vrot.slane %v2176, %v2205
    %v2207 = vlaneseq
    %v2208 = vshrl.u32 %v2207, 7
    %v2209 = vsub.s32 2, %v2208
    %v2210 = vrot.slane %v2180, %v2209
    %v2211 = vlaneseq
    %v2212 = vshrl.u32 %v2211, 7
    %v2213 = vsub.s32 2, %v2212
    %v2214 = vrot.slane %v2184, %v2213
    %v2215 = vmul.f32 %v206, %v2194
    %v2216 = vmul.f32 %v206, %v2198
    %v2217 = vmul.f32 %v206, %v2202
    %v2218 = vmul.f32 %v206, %v2206
    %v2219 = vmul.f32 %v206, %v2210
    %v2220 = vmul.f32 %v206, %v2214
    %v2221 = vadd.f32 %v2155, %v2215
    %v2222 = vadd.f32 %v2156, %v2216
    %v2223 = vadd.f32 %v2157, %v2217
    %v2224 = vadd.f32 %v2158, %v2218
    %v2225 = vadd.f32 %v2159, %v2219
    %v2226 = vadd.f32 %v2160, %v2220
    %v2227 = vlaneseq
    %v2228 = vshrl.u32 %v2227, 7
    %v2229 = vsub.s32 3, %v2228
    %v2230 = vrot.slane %v2023, %v2229
    %v2231 = vlaneseq
    %v2232 = vshrl.u32 %v2231, 7
    %v2233 = vsub.s32 7, %v2232
    %v2234 = vrot.slane %v2023, %v2233
    %v2235 = vlaneseq
    %v2236 = vshrl.u32 %v2235, 7
    %v2237 = vsub.s32 3, %v2236
    %v2238 = vrot.slane %v2024, %v2237
    %v2239 = vlaneseq
    %v2240 = vshrl.u32 %v2239, 7
    %v2241 = vsub.s32 7, %v2240
    %v2242 = vrot.slane %v2024, %v2241
    %v2243 = vlaneseq
    %v2244 = vshrl.u32 %v2243, 7
    %v2245 = vsub.s32 3, %v2244
    %v2246 = vrot.slane %v2025, %v2245
    %v2247 = vlaneseq
    %v2248 = vshrl.u32 %v2247, 7
    %v2249 = vsub.s32 7, %v2248
    %v2250 = vrot.slane %v2025, %v2249
    %v2257 = vlaneseq
    %v2258 = vshrl.u32 %v2257, 7
    %v2259 = vsub.s32 3, %v2258
    %v2260 = vrot.slane %v2230, %v2259
    %v2261 = vlaneseq
    %v2262 = vshrl.u32 %v2261, 7
    %v2263 = vsub.s32 3, %v2262
    %v2264 = vrot.slane %v2234, %v2263
    %v2265 = vlaneseq
    %v2266 = vshrl.u32 %v2265, 7
    %v2267 = vsub.s32 3, %v2266
    %v2268 = vrot.slane %v2238, %v2267
    %v2269 = vlaneseq
    %v2270 = vshrl.u32 %v2269, 7
    %v2271 = vsub.s32 3, %v2270
    %v2272 = vrot.slane %v2242, %v2271
    %v2273 = vlaneseq
    %v2274 = vshrl.u32 %v2273, 7
    %v2275 = vsub.s32 3, %v2274
    %v2276 = vrot.slane %v2246, %v2275
    %v2277 = vlaneseq
    %v2278 = vshrl.u32 %v2277, 7
    %v2279 = vsub.s32 3, %v2278
    %v2280 = vrot.slane %v2250, %v2279
    %v2281 = vmul.f32 %v276, %v2260
    %v2282 = vmul.f32 %v276, %v2264
    %v2283 = vmul.f32 %v276, %v2268
    %v2284 = vmul.f32 %v276, %v2272
    %v2285 = vmul.f32 %v276, %v2276
    %v2286 = vmul.f32 %v276, %v2280
    %v2287 = vadd.f32 %v2221, %v2281
    %v2288 = vadd.f32 %v2222, %v2282
    %v2289 = vadd.f32 %v2223, %v2283
    %v2290 = vadd.f32 %v2224, %v2284
    %v2291 = vadd.f32 %v2225, %v2285
    %v2292 = vadd.f32 %v2226, %v2286
    %s2293 = scalar_lea.vmem [#allocation5], 336
    %2294 = vst [vmem:[%s2293] sm:$0xff] %v2287
    %2295 = vst [vmem:[%s2293 + $0x8] sm:$0xff] %v2288
    %2296 = vst [vmem:[%s2293 + $0x10] sm:$0xff] %v2289
    %2297 = vst [vmem:[%s2293 + $0x18] sm:$0xff] %v2290
    %2298 = vst [vmem:[%s2293 + $0x20] sm:$0xff] %v2291
    %2299 = vst [vmem:[%s2293 + $0x28] sm:$0xff] %v2292
    %v2300 = vld [vmem:[#allocation5] sm:$0xff]
    %v2301 = vld [vmem:[#allocation5 + $0x8] sm:$0xff]
    %v2302 = vld [vmem:[#allocation5 + $0x10] sm:$0xff]
    %v2303 = vld [vmem:[#allocation5 + $0x18] sm:$0xff]
    %v2304 = vld [vmem:[#allocation5 + $0x20] sm:$0xff]
    %v2305 = vld [vmem:[#allocation5 + $0x28] sm:$0xff]
    %v2306 = vtanh.pop %v2300
    %v2307 = vtanh.pop %v2301
    %v2308 = vtanh.pop %v2302
    %v2309 = vtanh.pop %v2303
    %v2310 = vtanh.pop %v2304
    %v2311 = vtanh.pop %v2305
    %v2312 = vmul.f32 %v2306, 0.5
    %v2313 = vmul.f32 %v2307, 0.5
    %v2314 = vmul.f32 %v2308, 0.5
    %v2315 = vmul.f32 %v2309, 0.5
    %v2316 = vmul.f32 %v2310, 0.5
    %v2317 = vmul.f32 %v2311, 0.5
    %v2318 = vadd.f32 %v2312, 0.5
    %v2319 = vadd.f32 %v2313, 0.5
    %v2320 = vadd.f32 %v2314, 0.5
    %v2321 = vadd.f32 %v2315, 0.5
    %v2322 = vadd.f32 %v2316, 0.5
    %v2323 = vadd.f32 %v2317, 0.5
    %v2330 = vrot.slane %v2306, 4
    %v2331 = vrot.slane %v2307, 4
    %v2332 = vrot.slane %v2308, 4
    %v2333 = vrot.slane %v2309, 4
    %v2334 = vrot.slane %v2310, 4
    %v2335 = vrot.slane %v2311, 4
    %v2342 = vmul.f32 %v2318, %v2330
    %v2343 = vmul.f32 %v2319, %v2331
    %v2344 = vmul.f32 %v2320, %v2332
    %v2345 = vmul.f32 %v2321, %v2333
    %v2346 = vmul.f32 %v2322, %v2334
    %v2347 = vmul.f32 %v2323, %v2335
    %v2348 = vtanh.pop %v2342
    %v2349 = vtanh.pop %v2343
    %v2350 = vtanh.pop %v2344
    %v2351 = vtanh.pop %v2345
    %v2352 = vtanh.pop %v2346
    %v2353 = vtanh.pop %v2347
    %v2360 = vrot.slane %v2348, 2
    %v2361 = vrot.slane %v2349, 2
    %v2362 = vrot.slane %v2350, 2
    %v2363 = vrot.slane %v2351, 2
    %v2364 = vrot.slane %v2352, 2
    %v2365 = vrot.slane %v2353, 2
    %v2372 = vmul.f32 %v2318, %v2360
    %v2373 = vmul.f32 %v2319, %v2361
    %v2374 = vmul.f32 %v2320, %v2362
    %v2375 = vmul.f32 %v2321, %v2363
    %v2376 = vmul.f32 %v2322, %v2364
    %v2377 = vmul.f32 %v2323, %v2365
    %v2378 = vld [vmem:[%s625] sm:$0xff]
    %v2379 = vld [vmem:[%s625 + $0x8] sm:$0xff]
    %v2380 = vld [vmem:[%s625 + $0x10] sm:$0xff]
    %v2381 = vld [vmem:[%s625 + $0x18] sm:$0xff]
    %v2382 = vld [vmem:[%s625 + $0x20] sm:$0xff]
    %v2383 = vld [vmem:[%s625 + $0x28] sm:$0xff]
    %2384 = vset.pattern.permute.xlu0 5
    %2385 = vperm.xlu0 %2384, %v52
    %v2386 = vpop.permute.xlu0 %2385
    %v2388 = vlaneseq
    %v2389 = vshrl.u32 %v2388, 7
    %v2390 = vsub.s32 6, %v2389
    %v2391 = vrot.slane %v2372, %v2390
    %v2392 = vlaneseq
    %v2393 = vshrl.u32 %v2392, 7
    %v2394 = vsub.s32 6, %v2393
    %v2395 = vrot.slane %v2373, %v2394
    %v2396 = vlaneseq
    %v2397 = vshrl.u32 %v2396, 7
    %v2398 = vsub.s32 6, %v2397
    %v2399 = vrot.slane %v2374, %v2398
    %v2400 = vlaneseq
    %v2401 = vshrl.u32 %v2400, 7
    %v2402 = vsub.s32 6, %v2401
    %v2403 = vrot.slane %v2375, %v2402
    %v2404 = vlaneseq
    %v2405 = vshrl.u32 %v2404, 7
    %v2406 = vsub.s32 6, %v2405
    %v2407 = vrot.slane %v2376, %v2406
    %v2408 = vlaneseq
    %v2409 = vshrl.u32 %v2408, 7
    %v2410 = vsub.s32 6, %v2409
    %v2411 = vrot.slane %v2377, %v2410
    %v2412 = vmul.f32 %v2386, %v2391
    %v2413 = vmul.f32 %v2386, %v2395
    %v2414 = vmul.f32 %v2386, %v2399
    %v2415 = vmul.f32 %v2386, %v2403
    %v2416 = vmul.f32 %v2386, %v2407
    %v2417 = vmul.f32 %v2386, %v2411
    %v2418 = vadd.f32 %v2378, %v2412
    %v2419 = vadd.f32 %v2379, %v2413
    %v2420 = vadd.f32 %v2380, %v2414
    %v2421 = vadd.f32 %v2381, %v2415
    %v2422 = vadd.f32 %v2382, %v2416
    %v2423 = vadd.f32 %v2383, %v2417
    %2424 = vset.pattern.permute.xlu0 6
    %2425 = vperm.xlu0 %2424, %v52
    %v2426 = vpop.permute.xlu0 %2425
    %v2428 = vlaneseq
    %v2429 = vshrl.u32 %v2428, 7
    %v2430 = vsub.s32 7, %v2429
    %v2431 = vrot.slane %v2372, %v2430
    %v2432 = vlaneseq
    %v2433 = vshrl.u32 %v2432, 7
    %v2434 = vsub.s32 7, %v2433
    %v2435 = vrot.slane %v2373, %v2434
    %v2436 = vlaneseq
    %v2437 = vshrl.u32 %v2436, 7
    %v2438 = vsub.s32 7, %v2437
    %v2439 = vrot.slane %v2374, %v2438
    %v2440 = vlaneseq
    %v2441 = vshrl.u32 %v2440, 7
    %v2442 = vsub.s32 7, %v2441
    %v2443 = vrot.slane %v2375, %v2442
    %v2444 = vlaneseq
    %v2445 = vshrl.u32 %v2444, 7
    %v2446 = vsub.s32 7, %v2445
    %v2447 = vrot.slane %v2376, %v2446
    %v2448 = vlaneseq
    %v2449 = vshrl.u32 %v2448, 7
    %v2450 = vsub.s32 7, %v2449
    %v2451 = vrot.slane %v2377, %v2450
    %v2452 = vmul.f32 %v2426, %v2431
    %v2453 = vmul.f32 %v2426, %v2435
    %v2454 = vmul.f32 %v2426, %v2439
    %v2455 = vmul.f32 %v2426, %v2443
    %v2456 = vmul.f32 %v2426, %v2447
    %v2457 = vmul.f32 %v2426, %v2451
    %v2458 = vadd.f32 %v2418, %v2452
    %v2459 = vadd.f32 %v2419, %v2453
    %v2460 = vadd.f32 %v2420, %v2454
    %v2461 = vadd.f32 %v2421, %v2455
    %v2462 = vadd.f32 %v2422, %v2456
    %v2463 = vadd.f32 %v2423, %v2457
    %v2464 = vtanh.pop %v2458
    %v2465 = vtanh.pop %v2459
    %v2466 = vtanh.pop %v2460
    %v2467 = vtanh.pop %v2461
    %v2468 = vtanh.pop %v2462
    %v2469 = vtanh.pop %v2463
    %v2470 = vmul.f32 %v2464, 0.5
    %v2471 = vmul.f32 %v2465, 0.5
    %v2472 = vmul.f32 %v2466, 0.5
    %v2473 = vmul.f32 %v2467, 0.5
    %v2474 = vmul.f32 %v2468, 0.5
    %v2475 = vmul.f32 %v2469, 0.5
    %v2476 = vadd.f32 %v2470, 0.5
    %v2477 = vadd.f32 %v2471, 0.5
    %v2478 = vadd.f32 %v2472, 0.5
    %v2479 = vadd.f32 %v2473, 0.5
    %v2480 = vadd.f32 %v2474, 0.5
    %v2481 = vadd.f32 %v2475, 0.5
    %v2488 = vrot.slane %v2342, 6
    %v2489 = vrot.slane %v2343, 6
    %v2490 = vrot.slane %v2344, 6
    %v2491 = vrot.slane %v2345, 6
    %v2492 = vrot.slane %v2346, 6
    %v2493 = vrot.slane %v2347, 6
    %v2500 = vmul.f32 %v2476, %v2488
    %v2501 = vmul.f32 %v2477, %v2489
    %v2502 = vmul.f32 %v2478, %v2490
    %v2503 = vmul.f32 %v2479, %v2491
    %v2504 = vmul.f32 %v2480, %v2492
    %v2505 = vmul.f32 %v2481, %v2493
    %v2512 = vrot.slane %v2464, 4
    %v2513 = vrot.slane %v2465, 4
    %v2514 = vrot.slane %v2466, 4
    %v2515 = vrot.slane %v2467, 4
    %v2516 = vrot.slane %v2468, 4
    %v2517 = vrot.slane %v2469, 4
    %v2524 = vmul.f32 %v2476, %v2512
    %v2525 = vmul.f32 %v2477, %v2513
    %v2526 = vmul.f32 %v2478, %v2514
    %v2527 = vmul.f32 %v2479, %v2515
    %v2528 = vmul.f32 %v2480, %v2516
    %v2529 = vmul.f32 %v2481, %v2517
    %v2536 = vrot.slane %v2524, 6
    %v2537 = vrot.slane %v2525, 6
    %v2538 = vrot.slane %v2526, 6
    %v2539 = vrot.slane %v2527, 6
    %v2540 = vrot.slane %v2528, 6
    %v2541 = vrot.slane %v2529, 6
    %v2548 = vadd.f32 %v2500, %v2536
    %v2549 = vadd.f32 %v2501, %v2537
    %v2550 = vadd.f32 %v2502, %v2538
    %v2551 = vadd.f32 %v2503, %v2539
    %v2552 = vadd.f32 %v2504, %v2540
    %v2553 = vadd.f32 %v2505, %v2541
    %v2554 = vtanh.pop %v2548
    %v2555 = vtanh.pop %v2549
    %v2556 = vtanh.pop %v2550
    %v2557 = vtanh.pop %v2551
    %v2558 = vtanh.pop %v2552
    %v2559 = vtanh.pop %v2553
    %v2566 = vrot.slane %v2554, 4
    %v2567 = vrot.slane %v2555, 4
    %v2568 = vrot.slane %v2556, 4
    %v2569 = vrot.slane %v2557, 4
    %v2570 = vrot.slane %v2558, 4
    %v2571 = vrot.slane %v2559, 4
    %v2578 = vmul.f32 %v2476, %v2566
    %v2579 = vmul.f32 %v2477, %v2567
    %v2580 = vmul.f32 %v2478, %v2568
    %v2581 = vmul.f32 %v2479, %v2569
    %v2582 = vmul.f32 %v2480, %v2570
    %v2583 = vmul.f32 %v2481, %v2571
    %v2590 = vcombine.high %v2578, %v2579
    %v2591 = vcombine.high %v2580, %v2581
    %v2592 = vcombine.high %v2582, %v2583
    %v2594 = vunpack.c.l.s4 1966171168
    %v2595 = vunpack.c.0.s8 %v2594
    %v2596 = vlaneseq
    %v2597 = vshrl.u32 %v2596, 7
    %v2598 = vsub.s32 %v2595, %v2597
    %v2599 = vrot.slane %v2590, %v2598
    %v2601 = vunpack.c.l.s4 1966171168
    %v2602 = vunpack.c.0.s8 %v2601
    %v2603 = vlaneseq
    %v2604 = vshrl.u32 %v2603, 7
    %v2605 = vsub.s32 %v2602, %v2604
    %v2606 = vrot.slane %v2591, %v2605
    %v2608 = vunpack.c.l.s4 1966171168
    %v2609 = vunpack.c.0.s8 %v2608
    %v2610 = vlaneseq
    %v2611 = vshrl.u32 %v2610, 7
    %v2612 = vsub.s32 %v2609, %v2611
    %v2613 = vrot.slane %v2592, %v2612
    %v2614 = vcombine.low %v2599, %v2606
    %v2616 = vunpack.c.l.s4 1966171168
    %v2617 = vunpack.c.0.s8 %v2616
    %v2618 = vlaneseq
    %v2619 = vshrl.u32 %v2618, 7
    %v2620 = vsub.s32 %v2617, %v2619
    %v2621 = vrot.slane %v2614, %v2620
    %v2623 = vunpack.c.l.s4 1966171168
    %v2624 = vunpack.c.0.s8 %v2623
    %v2625 = vlaneseq
    %v2626 = vshrl.u32 %v2625, 7
    %v2627 = vsub.s32 %v2624, %v2626
    %v2628 = vrot.slane %v2613, %v2627
    %v2629 = vcombine.high %v2621, %v2628
    %v2631 = vlaneseq
    %vm2632 = vcmp.ge.s32.totalorder %v2631, 0
    %vm2633 = vcmp.lt.s32.totalorder %v2631, 768
    %vm2634 = vmand %vm2632, %vm2633
    %2635 = vst.msk [vmem:[#allocation4] ss:$8 sm:$0xf] %vm2634, %v2629
    %2636 = vst.msk [vmem:[#allocation4] ss:$8 sm:$0x30] %vm2634, %v2629
    %v2637 = vld [vmem:[%s903] sm:$0xff]
    %v2638 = vld [vmem:[%s903 + $0x8] sm:$0xff]
    %v2639 = vld [vmem:[%s903 + $0x10] sm:$0xff]
    %v2640 = vld [vmem:[%s903 + $0x18] sm:$0xff]
    %v2641 = vld [vmem:[%s903 + $0x20] sm:$0xff]
    %v2642 = vld [vmem:[%s903 + $0x28] sm:$0xff]
    %v2643 = vlaneseq
    %v2644 = vshrl.u32 %v2643, 7
    %v2645 = vsub.s32 6, %v2644
    %v2646 = vrot.slane %v2578, %v2645
    %v2647 = vlaneseq
    %v2648 = vshrl.u32 %v2647, 7
    %v2649 = vsub.s32 6, %v2648
    %v2650 = vrot.slane %v2579, %v2649
    %v2651 = vlaneseq
    %v2652 = vshrl.u32 %v2651, 7
    %v2653 = vsub.s32 6, %v2652
    %v2654 = vrot.slane %v2580, %v2653
    %v2655 = vlaneseq
    %v2656 = vshrl.u32 %v2655, 7
    %v2657 = vsub.s32 6, %v2656
    %v2658 = vrot.slane %v2581, %v2657
    %v2659 = vlaneseq
    %v2660 = vshrl.u32 %v2659, 7
    %v2661 = vsub.s32 6, %v2660
    %v2662 = vrot.slane %v2582, %v2661
    %v2663 = vlaneseq
    %v2664 = vshrl.u32 %v2663, 7
    %v2665 = vsub.s32 6, %v2664
    %v2666 = vrot.slane %v2583, %v2665
    %v2667 = vmul.f32 %v2386, %v2646
    %v2668 = vmul.f32 %v2386, %v2650
    %v2669 = vmul.f32 %v2386, %v2654
    %v2670 = vmul.f32 %v2386, %v2658
    %v2671 = vmul.f32 %v2386, %v2662
    %v2672 = vmul.f32 %v2386, %v2666
    %v2673 = vadd.f32 %v2637, %v2667
    %v2674 = vadd.f32 %v2638, %v2668
    %v2675 = vadd.f32 %v2639, %v2669
    %v2676 = vadd.f32 %v2640, %v2670
    %v2677 = vadd.f32 %v2641, %v2671
    %v2678 = vadd.f32 %v2642, %v2672
    %v2679 = vlaneseq
    %v2680 = vshrl.u32 %v2679, 7
    %v2681 = vsub.s32 7, %v2680
    %v2682 = vrot.slane %v2578, %v2681
    %v2683 = vlaneseq
    %v2684 = vshrl.u32 %v2683, 7
    %v2685 = vsub.s32 7, %v2684
    %v2686 = vrot.slane %v2579, %v2685
    %v2687 = vlaneseq
    %v2688 = vshrl.u32 %v2687, 7
    %v2689 = vsub.s32 7, %v2688
    %v2690 = vrot.slane %v2580, %v2689
    %v2691 = vlaneseq
    %v2692 = vshrl.u32 %v2691, 7
    %v2693 = vsub.s32 7, %v2692
    %v2694 = vrot.slane %v2581, %v2693
    %v2695 = vlaneseq
    %v2696 = vshrl.u32 %v2695, 7
    %v2697 = vsub.s32 7, %v2696
    %v2698 = vrot.slane %v2582, %v2697
    %v2699 = vlaneseq
    %v2700 = vshrl.u32 %v2699, 7
    %v2701 = vsub.s32 7, %v2700
    %v2702 = vrot.slane %v2583, %v2701
    %v2703 = vmul.f32 %v2426, %v2682
    %v2704 = vmul.f32 %v2426, %v2686
    %v2705 = vmul.f32 %v2426, %v2690
    %v2706 = vmul.f32 %v2426, %v2694
    %v2707 = vmul.f32 %v2426, %v2698
    %v2708 = vmul.f32 %v2426, %v2702
    %v2709 = vadd.f32 %v2673, %v2703
    %v2710 = vadd.f32 %v2674, %v2704
    %v2711 = vadd.f32 %v2675, %v2705
    %v2712 = vadd.f32 %v2676, %v2706
    %v2713 = vadd.f32 %v2677, %v2707
    %v2714 = vadd.f32 %v2678, %v2708
    %v2715 = vtanh.pop %v2709
    %v2716 = vtanh.pop %v2710
    %v2717 = vtanh.pop %v2711
    %v2718 = vtanh.pop %v2712
    %v2719 = vtanh.pop %v2713
    %v2720 = vtanh.pop %v2714
    %v2721 = vmul.f32 %v2715, 0.5
    %v2722 = vmul.f32 %v2716, 0.5
    %v2723 = vmul.f32 %v2717, 0.5
    %v2724 = vmul.f32 %v2718, 0.5
    %v2725 = vmul.f32 %v2719, 0.5
    %v2726 = vmul.f32 %v2720, 0.5
    %v2727 = vadd.f32 %v2721, 0.5
    %v2728 = vadd.f32 %v2722, 0.5
    %v2729 = vadd.f32 %v2723, 0.5
    %v2730 = vadd.f32 %v2724, 0.5
    %v2731 = vadd.f32 %v2725, 0.5
    %v2732 = vadd.f32 %v2726, 0.5
    %v2733 = vmul.f32 %v2727, %v2548
    %v2734 = vmul.f32 %v2728, %v2549
    %v2735 = vmul.f32 %v2729, %v2550
    %v2736 = vmul.f32 %v2730, %v2551
    %v2737 = vmul.f32 %v2731, %v2552
    %v2738 = vmul.f32 %v2732, %v2553
    %v2745 = vrot.slane %v2715, 4
    %v2746 = vrot.slane %v2716, 4
    %v2747 = vrot.slane %v2717, 4
    %v2748 = vrot.slane %v2718, 4
    %v2749 = vrot.slane %v2719, 4
    %v2750 = vrot.slane %v2720, 4
    %v2757 = vmul.f32 %v2727, %v2745
    %v2758 = vmul.f32 %v2728, %v2746
    %v2759 = vmul.f32 %v2729, %v2747
    %v2760 = vmul.f32 %v2730, %v2748
    %v2761 = vmul.f32 %v2731, %v2749
    %v2762 = vmul.f32 %v2732, %v2750
    %v2769 = vrot.slane %v2757, 6
    %v2770 = vrot.slane %v2758, 6
    %v2771 = vrot.slane %v2759, 6
    %v2772 = vrot.slane %v2760, 6
    %v2773 = vrot.slane %v2761, 6
    %v2774 = vrot.slane %v2762, 6
    %v2781 = vadd.f32 %v2733, %v2769
    %v2782 = vadd.f32 %v2734, %v2770
    %v2783 = vadd.f32 %v2735, %v2771
    %v2784 = vadd.f32 %v2736, %v2772
    %v2785 = vadd.f32 %v2737, %v2773
    %v2786 = vadd.f32 %v2738, %v2774
    %v2787 = vtanh.pop %v2781
    %v2788 = vtanh.pop %v2782
    %v2789 = vtanh.pop %v2783
    %v2790 = vtanh.pop %v2784
    %v2791 = vtanh.pop %v2785
    %v2792 = vtanh.pop %v2786
    %v2799 = vrot.slane %v2787, 4
    %v2800 = vrot.slane %v2788, 4
    %v2801 = vrot.slane %v2789, 4
    %v2802 = vrot.slane %v2790, 4
    %v2803 = vrot.slane %v2791, 4
    %v2804 = vrot.slane %v2792, 4
    %v2811 = vmul.f32 %v2727, %v2799
    %v2812 = vmul.f32 %v2728, %v2800
    %v2813 = vmul.f32 %v2729, %v2801
    %v2814 = vmul.f32 %v2730, %v2802
    %v2815 = vmul.f32 %v2731, %v2803
    %v2816 = vmul.f32 %v2732, %v2804
    %v2823 = vcombine.high %v2811, %v2812
    %v2824 = vcombine.high %v2813, %v2814
    %v2825 = vcombine.high %v2815, %v2816
    %v2827 = vunpack.c.l.s4 1966171168
    %v2828 = vunpack.c.0.s8 %v2827
    %v2829 = vlaneseq
    %v2830 = vshrl.u32 %v2829, 7
    %v2831 = vsub.s32 %v2828, %v2830
    %v2832 = vrot.slane %v2823, %v2831
    %v2834 = vunpack.c.l.s4 1966171168
    %v2835 = vunpack.c.0.s8 %v2834
    %v2836 = vlaneseq
    %v2837 = vshrl.u32 %v2836, 7
    %v2838 = vsub.s32 %v2835, %v2837
    %v2839 = vrot.slane %v2824, %v2838
    %v2841 = vunpack.c.l.s4 1966171168
    %v2842 = vunpack.c.0.s8 %v2841
    %v2843 = vlaneseq
    %v2844 = vshrl.u32 %v2843, 7
    %v2845 = vsub.s32 %v2842, %v2844
    %v2846 = vrot.slane %v2825, %v2845
    %v2847 = vcombine.low %v2832, %v2839
    %v2849 = vunpack.c.l.s4 1966171168
    %v2850 = vunpack.c.0.s8 %v2849
    %v2851 = vlaneseq
    %v2852 = vshrl.u32 %v2851, 7
    %v2853 = vsub.s32 %v2850, %v2852
    %v2854 = vrot.slane %v2847, %v2853
    %v2856 = vunpack.c.l.s4 1966171168
    %v2857 = vunpack.c.0.s8 %v2856
    %v2858 = vlaneseq
    %v2859 = vshrl.u32 %v2858, 7
    %v2860 = vsub.s32 %v2857, %v2859
    %v2861 = vrot.slane %v2846, %v2860
    %v2862 = vcombine.high %v2854, %v2861
    %s2864 = scalar_lea.vmem [#allocation4], 1
    %2865 = vst.msk [vmem:[%s2864] ss:$8 sm:$0xf] %vm2634, %v2862
    %2866 = vst.msk [vmem:[%s2864] ss:$8 sm:$0x30] %vm2634, %v2862
    %v2867 = vld [vmem:[%s1181] sm:$0xff]
    %v2868 = vld [vmem:[%s1181 + $0x8] sm:$0xff]
    %v2869 = vld [vmem:[%s1181 + $0x10] sm:$0xff]
    %v2870 = vld [vmem:[%s1181 + $0x18] sm:$0xff]
    %v2871 = vld [vmem:[%s1181 + $0x20] sm:$0xff]
    %v2872 = vld [vmem:[%s1181 + $0x28] sm:$0xff]
    %v2873 = vlaneseq
    %v2874 = vshrl.u32 %v2873, 7
    %v2875 = vsub.s32 6, %v2874
    %v2876 = vrot.slane %v2811, %v2875
    %v2877 = vlaneseq
    %v2878 = vshrl.u32 %v2877, 7
    %v2879 = vsub.s32 6, %v2878
    %v2880 = vrot.slane %v2812, %v2879
    %v2881 = vlaneseq
    %v2882 = vshrl.u32 %v2881, 7
    %v2883 = vsub.s32 6, %v2882
    %v2884 = vrot.slane %v2813, %v2883
    %v2885 = vlaneseq
    %v2886 = vshrl.u32 %v2885, 7
    %v2887 = vsub.s32 6, %v2886
    %v2888 = vrot.slane %v2814, %v2887
    %v2889 = vlaneseq
    %v2890 = vshrl.u32 %v2889, 7
    %v2891 = vsub.s32 6, %v2890
    %v2892 = vrot.slane %v2815, %v2891
    %v2893 = vlaneseq
    %v2894 = vshrl.u32 %v2893, 7
    %v2895 = vsub.s32 6, %v2894
    %v2896 = vrot.slane %v2816, %v2895
    %v2897 = vmul.f32 %v2386, %v2876
    %v2898 = vmul.f32 %v2386, %v2880
    %v2899 = vmul.f32 %v2386, %v2884
    %v2900 = vmul.f32 %v2386, %v2888
    %v2901 = vmul.f32 %v2386, %v2892
    %v2902 = vmul.f32 %v2386, %v2896
    %v2903 = vadd.f32 %v2867, %v2897
    %v2904 = vadd.f32 %v2868, %v2898
    %v2905 = vadd.f32 %v2869, %v2899
    %v2906 = vadd.f32 %v2870, %v2900
    %v2907 = vadd.f32 %v2871, %v2901
    %v2908 = vadd.f32 %v2872, %v2902
    %v2909 = vlaneseq
    %v2910 = vshrl.u32 %v2909, 7
    %v2911 = vsub.s32 7, %v2910
    %v2912 = vrot.slane %v2811, %v2911
    %v2913 = vlaneseq
    %v2914 = vshrl.u32 %v2913, 7
    %v2915 = vsub.s32 7, %v2914
    %v2916 = vrot.slane %v2812, %v2915
    %v2917 = vlaneseq
    %v2918 = vshrl.u32 %v2917, 7
    %v2919 = vsub.s32 7, %v2918
    %v2920 = vrot.slane %v2813, %v2919
    %v2921 = vlaneseq
    %v2922 = vshrl.u32 %v2921, 7
    %v2923 = vsub.s32 7, %v2922
    %v2924 = vrot.slane %v2814, %v2923
    %v2925 = vlaneseq
    %v2926 = vshrl.u32 %v2925, 7
    %v2927 = vsub.s32 7, %v2926
    %v2928 = vrot.slane %v2815, %v2927
    %v2929 = vlaneseq
    %v2930 = vshrl.u32 %v2929, 7
    %v2931 = vsub.s32 7, %v2930
    %v2932 = vrot.slane %v2816, %v2931
    %v2933 = vmul.f32 %v2426, %v2912
    %v2934 = vmul.f32 %v2426, %v2916
    %v2935 = vmul.f32 %v2426, %v2920
    %v2936 = vmul.f32 %v2426, %v2924
    %v2937 = vmul.f32 %v2426, %v2928
    %v2938 = vmul.f32 %v2426, %v2932
    %v2939 = vadd.f32 %v2903, %v2933
    %v2940 = vadd.f32 %v2904, %v2934
    %v2941 = vadd.f32 %v2905, %v2935
    %v2942 = vadd.f32 %v2906, %v2936
    %v2943 = vadd.f32 %v2907, %v2937
    %v2944 = vadd.f32 %v2908, %v2938
    %v2945 = vtanh.pop %v2939
    %v2946 = vtanh.pop %v2940
    %v2947 = vtanh.pop %v2941
    %v2948 = vtanh.pop %v2942
    %v2949 = vtanh.pop %v2943
    %v2950 = vtanh.pop %v2944
    %v2951 = vmul.f32 %v2945, 0.5
    %v2952 = vmul.f32 %v2946, 0.5
    %v2953 = vmul.f32 %v2947, 0.5
    %v2954 = vmul.f32 %v2948, 0.5
    %v2955 = vmul.f32 %v2949, 0.5
    %v2956 = vmul.f32 %v2950, 0.5
    %v2957 = vadd.f32 %v2951, 0.5
    %v2958 = vadd.f32 %v2952, 0.5
    %v2959 = vadd.f32 %v2953, 0.5
    %v2960 = vadd.f32 %v2954, 0.5
    %v2961 = vadd.f32 %v2955, 0.5
    %v2962 = vadd.f32 %v2956, 0.5
    %v2963 = vmul.f32 %v2957, %v2781
    %v2964 = vmul.f32 %v2958, %v2782
    %v2965 = vmul.f32 %v2959, %v2783
    %v2966 = vmul.f32 %v2960, %v2784
    %v2967 = vmul.f32 %v2961, %v2785
    %v2968 = vmul.f32 %v2962, %v2786
    %v2975 = vrot.slane %v2945, 4
    %v2976 = vrot.slane %v2946, 4
    %v2977 = vrot.slane %v2947, 4
    %v2978 = vrot.slane %v2948, 4
    %v2979 = vrot.slane %v2949, 4
    %v2980 = vrot.slane %v2950, 4
    %v2987 = vmul.f32 %v2957, %v2975
    %v2988 = vmul.f32 %v2958, %v2976
    %v2989 = vmul.f32 %v2959, %v2977
    %v2990 = vmul.f32 %v2960, %v2978
    %v2991 = vmul.f32 %v2961, %v2979
    %v2992 = vmul.f32 %v2962, %v2980
    %v2999 = vrot.slane %v2987, 6
    %v3000 = vrot.slane %v2988, 6
    %v3001 = vrot.slane %v2989, 6
    %v3002 = vrot.slane %v2990, 6
    %v3003 = vrot.slane %v2991, 6
    %v3004 = vrot.slane %v2992, 6
    %v3011 = vadd.f32 %v2963, %v2999
    %v3012 = vadd.f32 %v2964, %v3000
    %v3013 = vadd.f32 %v2965, %v3001
    %v3014 = vadd.f32 %v2966, %v3002
    %v3015 = vadd.f32 %v2967, %v3003
    %v3016 = vadd.f32 %v2968, %v3004
    %v3017 = vtanh.pop %v3011
    %v3018 = vtanh.pop %v3012
    %v3019 = vtanh.pop %v3013
    %v3020 = vtanh.pop %v3014
    %v3021 = vtanh.pop %v3015
    %v3022 = vtanh.pop %v3016
    %v3029 = vrot.slane %v3017, 4
    %v3030 = vrot.slane %v3018, 4
    %v3031 = vrot.slane %v3019, 4
    %v3032 = vrot.slane %v3020, 4
    %v3033 = vrot.slane %v3021, 4
    %v3034 = vrot.slane %v3022, 4
    %v3041 = vmul.f32 %v2957, %v3029
    %v3042 = vmul.f32 %v2958, %v3030
    %v3043 = vmul.f32 %v2959, %v3031
    %v3044 = vmul.f32 %v2960, %v3032
    %v3045 = vmul.f32 %v2961, %v3033
    %v3046 = vmul.f32 %v2962, %v3034
    %v3053 = vcombine.high %v3041, %v3042
    %v3054 = vcombine.high %v3043, %v3044
    %v3055 = vcombine.high %v3045, %v3046
    %v3057 = vunpack.c.l.s4 1966171168
    %v3058 = vunpack.c.0.s8 %v3057
    %v3059 = vlaneseq
    %v3060 = vshrl.u32 %v3059, 7
    %v3061 = vsub.s32 %v3058, %v3060
    %v3062 = vrot.slane %v3053, %v3061
    %v3064 = vunpack.c.l.s4 1966171168
    %v3065 = vunpack.c.0.s8 %v3064
    %v3066 = vlaneseq
    %v3067 = vshrl.u32 %v3066, 7
    %v3068 = vsub.s32 %v3065, %v3067
    %v3069 = vrot.slane %v3054, %v3068
    %v3071 = vunpack.c.l.s4 1966171168
    %v3072 = vunpack.c.0.s8 %v3071
    %v3073 = vlaneseq
    %v3074 = vshrl.u32 %v3073, 7
    %v3075 = vsub.s32 %v3072, %v3074
    %v3076 = vrot.slane %v3055, %v3075
    %v3077 = vcombine.low %v3062, %v3069
    %v3079 = vunpack.c.l.s4 1966171168
    %v3080 = vunpack.c.0.s8 %v3079
    %v3081 = vlaneseq
    %v3082 = vshrl.u32 %v3081, 7
    %v3083 = vsub.s32 %v3080, %v3082
    %v3084 = vrot.slane %v3077, %v3083
    %v3086 = vunpack.c.l.s4 1966171168
    %v3087 = vunpack.c.0.s8 %v3086
    %v3088 = vlaneseq
    %v3089 = vshrl.u32 %v3088, 7
    %v3090 = vsub.s32 %v3087, %v3089
    %v3091 = vrot.slane %v3076, %v3090
    %v3092 = vcombine.high %v3084, %v3091
    %s3094 = scalar_lea.vmem [#allocation4], 2
    %3095 = vst.msk [vmem:[%s3094] ss:$8 sm:$0xf] %vm2634, %v3092
    %3096 = vst.msk [vmem:[%s3094] ss:$8 sm:$0x30] %vm2634, %v3092
    %v3097 = vld [vmem:[%s1459] sm:$0xff]
    %v3098 = vld [vmem:[%s1459 + $0x8] sm:$0xff]
    %v3099 = vld [vmem:[%s1459 + $0x10] sm:$0xff]
    %v3100 = vld [vmem:[%s1459 + $0x18] sm:$0xff]
    %v3101 = vld [vmem:[%s1459 + $0x20] sm:$0xff]
    %v3102 = vld [vmem:[%s1459 + $0x28] sm:$0xff]
    %v3103 = vlaneseq
    %v3104 = vshrl.u32 %v3103, 7
    %v3105 = vsub.s32 6, %v3104
    %v3106 = vrot.slane %v3041, %v3105
    %v3107 = vlaneseq
    %v3108 = vshrl.u32 %v3107, 7
    %v3109 = vsub.s32 6, %v3108
    %v3110 = vrot.slane %v3042, %v3109
    %v3111 = vlaneseq
    %v3112 = vshrl.u32 %v3111, 7
    %v3113 = vsub.s32 6, %v3112
    %v3114 = vrot.slane %v3043, %v3113
    %v3115 = vlaneseq
    %v3116 = vshrl.u32 %v3115, 7
    %v3117 = vsub.s32 6, %v3116
    %v3118 = vrot.slane %v3044, %v3117
    %v3119 = vlaneseq
    %v3120 = vshrl.u32 %v3119, 7
    %v3121 = vsub.s32 6, %v3120
    %v3122 = vrot.slane %v3045, %v3121
    %v3123 = vlaneseq
    %v3124 = vshrl.u32 %v3123, 7
    %v3125 = vsub.s32 6, %v3124
    %v3126 = vrot.slane %v3046, %v3125
    %v3127 = vmul.f32 %v2386, %v3106
    %v3128 = vmul.f32 %v2386, %v3110
    %v3129 = vmul.f32 %v2386, %v3114
    %v3130 = vmul.f32 %v2386, %v3118
    %v3131 = vmul.f32 %v2386, %v3122
    %v3132 = vmul.f32 %v2386, %v3126
    %v3133 = vadd.f32 %v3097, %v3127
    %v3134 = vadd.f32 %v3098, %v3128
    %v3135 = vadd.f32 %v3099, %v3129
    %v3136 = vadd.f32 %v3100, %v3130
    %v3137 = vadd.f32 %v3101, %v3131
    %v3138 = vadd.f32 %v3102, %v3132
    %v3139 = vlaneseq
    %v3140 = vshrl.u32 %v3139, 7
    %v3141 = vsub.s32 7, %v3140
    %v3142 = vrot.slane %v3041, %v3141
    %v3143 = vlaneseq
    %v3144 = vshrl.u32 %v3143, 7
    %v3145 = vsub.s32 7, %v3144
    %v3146 = vrot.slane %v3042, %v3145
    %v3147 = vlaneseq
    %v3148 = vshrl.u32 %v3147, 7
    %v3149 = vsub.s32 7, %v3148
    %v3150 = vrot.slane %v3043, %v3149
    %v3151 = vlaneseq
    %v3152 = vshrl.u32 %v3151, 7
    %v3153 = vsub.s32 7, %v3152
    %v3154 = vrot.slane %v3044, %v3153
    %v3155 = vlaneseq
    %v3156 = vshrl.u32 %v3155, 7
    %v3157 = vsub.s32 7, %v3156
    %v3158 = vrot.slane %v3045, %v3157
    %v3159 = vlaneseq
    %v3160 = vshrl.u32 %v3159, 7
    %v3161 = vsub.s32 7, %v3160
    %v3162 = vrot.slane %v3046, %v3161
    %v3163 = vmul.f32 %v2426, %v3142
    %v3164 = vmul.f32 %v2426, %v3146
    %v3165 = vmul.f32 %v2426, %v3150
    %v3166 = vmul.f32 %v2426, %v3154
    %v3167 = vmul.f32 %v2426, %v3158
    %v3168 = vmul.f32 %v2426, %v3162
    %v3169 = vadd.f32 %v3133, %v3163
    %v3170 = vadd.f32 %v3134, %v3164
    %v3171 = vadd.f32 %v3135, %v3165
    %v3172 = vadd.f32 %v3136, %v3166
    %v3173 = vadd.f32 %v3137, %v3167
    %v3174 = vadd.f32 %v3138, %v3168
    %v3175 = vtanh.pop %v3169
    %v3176 = vtanh.pop %v3170
    %v3177 = vtanh.pop %v3171
    %v3178 = vtanh.pop %v3172
    %v3179 = vtanh.pop %v3173
    %v3180 = vtanh.pop %v3174
    %v3181 = vmul.f32 %v3175, 0.5
    %v3182 = vmul.f32 %v3176, 0.5
    %v3183 = vmul.f32 %v3177, 0.5
    %v3184 = vmul.f32 %v3178, 0.5
    %v3185 = vmul.f32 %v3179, 0.5
    %v3186 = vmul.f32 %v3180, 0.5
    %v3187 = vadd.f32 %v3181, 0.5
    %v3188 = vadd.f32 %v3182, 0.5
    %v3189 = vadd.f32 %v3183, 0.5
    %v3190 = vadd.f32 %v3184, 0.5
    %v3191 = vadd.f32 %v3185, 0.5
    %v3192 = vadd.f32 %v3186, 0.5
    %v3193 = vmul.f32 %v3187, %v3011
    %v3194 = vmul.f32 %v3188, %v3012
    %v3195 = vmul.f32 %v3189, %v3013
    %v3196 = vmul.f32 %v3190, %v3014
    %v3197 = vmul.f32 %v3191, %v3015
    %v3198 = vmul.f32 %v3192, %v3016
    %v3205 = vrot.slane %v3175, 4
    %v3206 = vrot.slane %v3176, 4
    %v3207 = vrot.slane %v3177, 4
    %v3208 = vrot.slane %v3178, 4
    %v3209 = vrot.slane %v3179, 4
    %v3210 = vrot.slane %v3180, 4
    %v3217 = vmul.f32 %v3187, %v3205
    %v3218 = vmul.f32 %v3188, %v3206
    %v3219 = vmul.f32 %v3189, %v3207
    %v3220 = vmul.f32 %v3190, %v3208
    %v3221 = vmul.f32 %v3191, %v3209
    %v3222 = vmul.f32 %v3192, %v3210
    %v3229 = vrot.slane %v3217, 6
    %v3230 = vrot.slane %v3218, 6
    %v3231 = vrot.slane %v3219, 6
    %v3232 = vrot.slane %v3220, 6
    %v3233 = vrot.slane %v3221, 6
    %v3234 = vrot.slane %v3222, 6
    %v3241 = vadd.f32 %v3193, %v3229
    %v3242 = vadd.f32 %v3194, %v3230
    %v3243 = vadd.f32 %v3195, %v3231
    %v3244 = vadd.f32 %v3196, %v3232
    %v3245 = vadd.f32 %v3197, %v3233
    %v3246 = vadd.f32 %v3198, %v3234
    %v3247 = vtanh.pop %v3241
    %v3248 = vtanh.pop %v3242
    %v3249 = vtanh.pop %v3243
    %v3250 = vtanh.pop %v3244
    %v3251 = vtanh.pop %v3245
    %v3252 = vtanh.pop %v3246
    %v3259 = vrot.slane %v3247, 4
    %v3260 = vrot.slane %v3248, 4
    %v3261 = vrot.slane %v3249, 4
    %v3262 = vrot.slane %v3250, 4
    %v3263 = vrot.slane %v3251, 4
    %v3264 = vrot.slane %v3252, 4
    %v3271 = vmul.f32 %v3187, %v3259
    %v3272 = vmul.f32 %v3188, %v3260
    %v3273 = vmul.f32 %v3189, %v3261
    %v3274 = vmul.f32 %v3190, %v3262
    %v3275 = vmul.f32 %v3191, %v3263
    %v3276 = vmul.f32 %v3192, %v3264
    %v3283 = vcombine.high %v3271, %v3272
    %v3284 = vcombine.high %v3273, %v3274
    %v3285 = vcombine.high %v3275, %v3276
    %v3287 = vunpack.c.l.s4 1966171168
    %v3288 = vunpack.c.0.s8 %v3287
    %v3289 = vlaneseq
    %v3290 = vshrl.u32 %v3289, 7
    %v3291 = vsub.s32 %v3288, %v3290
    %v3292 = vrot.slane %v3283, %v3291
    %v3294 = vunpack.c.l.s4 1966171168
    %v3295 = vunpack.c.0.s8 %v3294
    %v3296 = vlaneseq
    %v3297 = vshrl.u32 %v3296, 7
    %v3298 = vsub.s32 %v3295, %v3297
    %v3299 = vrot.slane %v3284, %v3298
    %v3301 = vunpack.c.l.s4 1966171168
    %v3302 = vunpack.c.0.s8 %v3301
    %v3303 = vlaneseq
    %v3304 = vshrl.u32 %v3303, 7
    %v3305 = vsub.s32 %v3302, %v3304
    %v3306 = vrot.slane %v3285, %v3305
    %v3307 = vcombine.low %v3292, %v3299
    %v3309 = vunpack.c.l.s4 1966171168
    %v3310 = vunpack.c.0.s8 %v3309
    %v3311 = vlaneseq
    %v3312 = vshrl.u32 %v3311, 7
    %v3313 = vsub.s32 %v3310, %v3312
    %v3314 = vrot.slane %v3307, %v3313
    %v3316 = vunpack.c.l.s4 1966171168
    %v3317 = vunpack.c.0.s8 %v3316
    %v3318 = vlaneseq
    %v3319 = vshrl.u32 %v3318, 7
    %v3320 = vsub.s32 %v3317, %v3319
    %v3321 = vrot.slane %v3306, %v3320
    %v3322 = vcombine.high %v3314, %v3321
    %s3324 = scalar_lea.vmem [#allocation4], 3
    %3325 = vst.msk [vmem:[%s3324] ss:$8 sm:$0xf] %vm2634, %v3322
    %3326 = vst.msk [vmem:[%s3324] ss:$8 sm:$0x30] %vm2634, %v3322
    %v3327 = vld [vmem:[%s1737] sm:$0xff]
    %v3328 = vld [vmem:[%s1737 + $0x8] sm:$0xff]
    %v3329 = vld [vmem:[%s1737 + $0x10] sm:$0xff]
    %v3330 = vld [vmem:[%s1737 + $0x18] sm:$0xff]
    %v3331 = vld [vmem:[%s1737 + $0x20] sm:$0xff]
    %v3332 = vld [vmem:[%s1737 + $0x28] sm:$0xff]
    %v3333 = vlaneseq
    %v3334 = vshrl.u32 %v3333, 7
    %v3335 = vsub.s32 6, %v3334
    %v3336 = vrot.slane %v3271, %v3335
    %v3337 = vlaneseq
    %v3338 = vshrl.u32 %v3337, 7
    %v3339 = vsub.s32 6, %v3338
    %v3340 = vrot.slane %v3272, %v3339
    %v3341 = vlaneseq
    %v3342 = vshrl.u32 %v3341, 7
    %v3343 = vsub.s32 6, %v3342
    %v3344 = vrot.slane %v3273, %v3343
    %v3345 = vlaneseq
    %v3346 = vshrl.u32 %v3345, 7
    %v3347 = vsub.s32 6, %v3346
    %v3348 = vrot.slane %v3274, %v3347
    %v3349 = vlaneseq
    %v3350 = vshrl.u32 %v3349, 7
    %v3351 = vsub.s32 6, %v3350
    %v3352 = vrot.slane %v3275, %v3351
    %v3353 = vlaneseq
    %v3354 = vshrl.u32 %v3353, 7
    %v3355 = vsub.s32 6, %v3354
    %v3356 = vrot.slane %v3276, %v3355
    %v3357 = vmul.f32 %v2386, %v3336
    %v3358 = vmul.f32 %v2386, %v3340
    %v3359 = vmul.f32 %v2386, %v3344
    %v3360 = vmul.f32 %v2386, %v3348
    %v3361 = vmul.f32 %v2386, %v3352
    %v3362 = vmul.f32 %v2386, %v3356
    %v3363 = vadd.f32 %v3327, %v3357
    %v3364 = vadd.f32 %v3328, %v3358
    %v3365 = vadd.f32 %v3329, %v3359
    %v3366 = vadd.f32 %v3330, %v3360
    %v3367 = vadd.f32 %v3331, %v3361
    %v3368 = vadd.f32 %v3332, %v3362
    %v3369 = vlaneseq
    %v3370 = vshrl.u32 %v3369, 7
    %v3371 = vsub.s32 7, %v3370
    %v3372 = vrot.slane %v3271, %v3371
    %v3373 = vlaneseq
    %v3374 = vshrl.u32 %v3373, 7
    %v3375 = vsub.s32 7, %v3374
    %v3376 = vrot.slane %v3272, %v3375
    %v3377 = vlaneseq
    %v3378 = vshrl.u32 %v3377, 7
    %v3379 = vsub.s32 7, %v3378
    %v3380 = vrot.slane %v3273, %v3379
    %v3381 = vlaneseq
    %v3382 = vshrl.u32 %v3381, 7
    %v3383 = vsub.s32 7, %v3382
    %v3384 = vrot.slane %v3274, %v3383
    %v3385 = vlaneseq
    %v3386 = vshrl.u32 %v3385, 7
    %v3387 = vsub.s32 7, %v3386
    %v3388 = vrot.slane %v3275, %v3387
    %v3389 = vlaneseq
    %v3390 = vshrl.u32 %v3389, 7
    %v3391 = vsub.s32 7, %v3390
    %v3392 = vrot.slane %v3276, %v3391
    %v3393 = vmul.f32 %v2426, %v3372
    %v3394 = vmul.f32 %v2426, %v3376
    %v3395 = vmul.f32 %v2426, %v3380
    %v3396 = vmul.f32 %v2426, %v3384
    %v3397 = vmul.f32 %v2426, %v3388
    %v3398 = vmul.f32 %v2426, %v3392
    %v3399 = vadd.f32 %v3363, %v3393
    %v3400 = vadd.f32 %v3364, %v3394
    %v3401 = vadd.f32 %v3365, %v3395
    %v3402 = vadd.f32 %v3366, %v3396
    %v3403 = vadd.f32 %v3367, %v3397
    %v3404 = vadd.f32 %v3368, %v3398
    %v3405 = vtanh.pop %v3399
    %v3406 = vtanh.pop %v3400
    %v3407 = vtanh.pop %v3401
    %v3408 = vtanh.pop %v3402
    %v3409 = vtanh.pop %v3403
    %v3410 = vtanh.pop %v3404
    %v3411 = vmul.f32 %v3405, 0.5
    %v3412 = vmul.f32 %v3406, 0.5
    %v3413 = vmul.f32 %v3407, 0.5
    %v3414 = vmul.f32 %v3408, 0.5
    %v3415 = vmul.f32 %v3409, 0.5
    %v3416 = vmul.f32 %v3410, 0.5
    %v3417 = vadd.f32 %v3411, 0.5
    %v3418 = vadd.f32 %v3412, 0.5
    %v3419 = vadd.f32 %v3413, 0.5
    %v3420 = vadd.f32 %v3414, 0.5
    %v3421 = vadd.f32 %v3415, 0.5
    %v3422 = vadd.f32 %v3416, 0.5
    %v3423 = vmul.f32 %v3417, %v3241
    %v3424 = vmul.f32 %v3418, %v3242
    %v3425 = vmul.f32 %v3419, %v3243
    %v3426 = vmul.f32 %v3420, %v3244
    %v3427 = vmul.f32 %v3421, %v3245
    %v3428 = vmul.f32 %v3422, %v3246
    %v3435 = vrot.slane %v3405, 4
    %v3436 = vrot.slane %v3406, 4
    %v3437 = vrot.slane %v3407, 4
    %v3438 = vrot.slane %v3408, 4
    %v3439 = vrot.slane %v3409, 4
    %v3440 = vrot.slane %v3410, 4
    %v3447 = vmul.f32 %v3417, %v3435
    %v3448 = vmul.f32 %v3418, %v3436
    %v3449 = vmul.f32 %v3419, %v3437
    %v3450 = vmul.f32 %v3420, %v3438
    %v3451 = vmul.f32 %v3421, %v3439
    %v3452 = vmul.f32 %v3422, %v3440
    %v3459 = vrot.slane %v3447, 6
    %v3460 = vrot.slane %v3448, 6
    %v3461 = vrot.slane %v3449, 6
    %v3462 = vrot.slane %v3450, 6
    %v3463 = vrot.slane %v3451, 6
    %v3464 = vrot.slane %v3452, 6
    %v3471 = vadd.f32 %v3423, %v3459
    %v3472 = vadd.f32 %v3424, %v3460
    %v3473 = vadd.f32 %v3425, %v3461
    %v3474 = vadd.f32 %v3426, %v3462
    %v3475 = vadd.f32 %v3427, %v3463
    %v3476 = vadd.f32 %v3428, %v3464
    %v3477 = vtanh.pop %v3471
    %v3478 = vtanh.pop %v3472
    %v3479 = vtanh.pop %v3473
    %v3480 = vtanh.pop %v3474
    %v3481 = vtanh.pop %v3475
    %v3482 = vtanh.pop %v3476
    %v3489 = vrot.slane %v3477, 4
    %v3490 = vrot.slane %v3478, 4
    %v3491 = vrot.slane %v3479, 4
    %v3492 = vrot.slane %v3480, 4
    %v3493 = vrot.slane %v3481, 4
    %v3494 = vrot.slane %v3482, 4
    %v3501 = vmul.f32 %v3417, %v3489
    %v3502 = vmul.f32 %v3418, %v3490
    %v3503 = vmul.f32 %v3419, %v3491
    %v3504 = vmul.f32 %v3420, %v3492
    %v3505 = vmul.f32 %v3421, %v3493
    %v3506 = vmul.f32 %v3422, %v3494
    %v3513 = vcombine.high %v3501, %v3502
    %v3514 = vcombine.high %v3503, %v3504
    %v3515 = vcombine.high %v3505, %v3506
    %v3517 = vunpack.c.l.s4 1966171168
    %v3518 = vunpack.c.0.s8 %v3517
    %v3519 = vlaneseq
    %v3520 = vshrl.u32 %v3519, 7
    %v3521 = vsub.s32 %v3518, %v3520
    %v3522 = vrot.slane %v3513, %v3521
    %v3524 = vunpack.c.l.s4 1966171168
    %v3525 = vunpack.c.0.s8 %v3524
    %v3526 = vlaneseq
    %v3527 = vshrl.u32 %v3526, 7
    %v3528 = vsub.s32 %v3525, %v3527
    %v3529 = vrot.slane %v3514, %v3528
    %v3531 = vunpack.c.l.s4 1966171168
    %v3532 = vunpack.c.0.s8 %v3531
    %v3533 = vlaneseq
    %v3534 = vshrl.u32 %v3533, 7
    %v3535 = vsub.s32 %v3532, %v3534
    %v3536 = vrot.slane %v3515, %v3535
    %v3537 = vcombine.low %v3522, %v3529
    %v3539 = vunpack.c.l.s4 1966171168
    %v3540 = vunpack.c.0.s8 %v3539
    %v3541 = vlaneseq
    %v3542 = vshrl.u32 %v3541, 7
    %v3543 = vsub.s32 %v3540, %v3542
    %v3544 = vrot.slane %v3537, %v3543
    %v3546 = vunpack.c.l.s4 1966171168
    %v3547 = vunpack.c.0.s8 %v3546
    %v3548 = vlaneseq
    %v3549 = vshrl.u32 %v3548, 7
    %v3550 = vsub.s32 %v3547, %v3549
    %v3551 = vrot.slane %v3536, %v3550
    %v3552 = vcombine.high %v3544, %v3551
    %s3554 = scalar_lea.vmem [#allocation4], 4
    %3555 = vst.msk [vmem:[%s3554] ss:$8 sm:$0xf] %vm2634, %v3552
    %3556 = vst.msk [vmem:[%s3554] ss:$8 sm:$0x30] %vm2634, %v3552
    %v3557 = vld [vmem:[%s2015] sm:$0xff]
    %v3558 = vld [vmem:[%s2015 + $0x8] sm:$0xff]
    %v3559 = vld [vmem:[%s2015 + $0x10] sm:$0xff]
    %v3560 = vld [vmem:[%s2015 + $0x18] sm:$0xff]
    %v3561 = vld [vmem:[%s2015 + $0x20] sm:$0xff]
    %v3562 = vld [vmem:[%s2015 + $0x28] sm:$0xff]
    %v3563 = vlaneseq
    %v3564 = vshrl.u32 %v3563, 7
    %v3565 = vsub.s32 6, %v3564
    %v3566 = vrot.slane %v3501, %v3565
    %v3567 = vlaneseq
    %v3568 = vshrl.u32 %v3567, 7
    %v3569 = vsub.s32 6, %v3568
    %v3570 = vrot.slane %v3502, %v3569
    %v3571 = vlaneseq
    %v3572 = vshrl.u32 %v3571, 7
    %v3573 = vsub.s32 6, %v3572
    %v3574 = vrot.slane %v3503, %v3573
    %v3575 = vlaneseq
    %v3576 = vshrl.u32 %v3575, 7
    %v3577 = vsub.s32 6, %v3576
    %v3578 = vrot.slane %v3504, %v3577
    %v3579 = vlaneseq
    %v3580 = vshrl.u32 %v3579, 7
    %v3581 = vsub.s32 6, %v3580
    %v3582 = vrot.slane %v3505, %v3581
    %v3583 = vlaneseq
    %v3584 = vshrl.u32 %v3583, 7
    %v3585 = vsub.s32 6, %v3584
    %v3586 = vrot.slane %v3506, %v3585
    %v3587 = vmul.f32 %v2386, %v3566
    %v3588 = vmul.f32 %v2386, %v3570
    %v3589 = vmul.f32 %v2386, %v3574
    %v3590 = vmul.f32 %v2386, %v3578
    %v3591 = vmul.f32 %v2386, %v3582
    %v3592 = vmul.f32 %v2386, %v3586
    %v3593 = vadd.f32 %v3557, %v3587
    %v3594 = vadd.f32 %v3558, %v3588
    %v3595 = vadd.f32 %v3559, %v3589
    %v3596 = vadd.f32 %v3560, %v3590
    %v3597 = vadd.f32 %v3561, %v3591
    %v3598 = vadd.f32 %v3562, %v3592
    %v3599 = vlaneseq
    %v3600 = vshrl.u32 %v3599, 7
    %v3601 = vsub.s32 7, %v3600
    %v3602 = vrot.slane %v3501, %v3601
    %v3603 = vlaneseq
    %v3604 = vshrl.u32 %v3603, 7
    %v3605 = vsub.s32 7, %v3604
    %v3606 = vrot.slane %v3502, %v3605
    %v3607 = vlaneseq
    %v3608 = vshrl.u32 %v3607, 7
    %v3609 = vsub.s32 7, %v3608
    %v3610 = vrot.slane %v3503, %v3609
    %v3611 = vlaneseq
    %v3612 = vshrl.u32 %v3611, 7
    %v3613 = vsub.s32 7, %v3612
    %v3614 = vrot.slane %v3504, %v3613
    %v3615 = vlaneseq
    %v3616 = vshrl.u32 %v3615, 7
    %v3617 = vsub.s32 7, %v3616
    %v3618 = vrot.slane %v3505, %v3617
    %v3619 = vlaneseq
    %v3620 = vshrl.u32 %v3619, 7
    %v3621 = vsub.s32 7, %v3620
    %v3622 = vrot.slane %v3506, %v3621
    %v3623 = vmul.f32 %v2426, %v3602
    %v3624 = vmul.f32 %v2426, %v3606
    %v3625 = vmul.f32 %v2426, %v3610
    %v3626 = vmul.f32 %v2426, %v3614
    %v3627 = vmul.f32 %v2426, %v3618
    %v3628 = vmul.f32 %v2426, %v3622
    %v3629 = vadd.f32 %v3593, %v3623
    %v3630 = vadd.f32 %v3594, %v3624
    %v3631 = vadd.f32 %v3595, %v3625
    %v3632 = vadd.f32 %v3596, %v3626
    %v3633 = vadd.f32 %v3597, %v3627
    %v3634 = vadd.f32 %v3598, %v3628
    %v3635 = vtanh.pop %v3629
    %v3636 = vtanh.pop %v3630
    %v3637 = vtanh.pop %v3631
    %v3638 = vtanh.pop %v3632
    %v3639 = vtanh.pop %v3633
    %v3640 = vtanh.pop %v3634
    %v3641 = vmul.f32 %v3635, 0.5
    %v3642 = vmul.f32 %v3636, 0.5
    %v3643 = vmul.f32 %v3637, 0.5
    %v3644 = vmul.f32 %v3638, 0.5
    %v3645 = vmul.f32 %v3639, 0.5
    %v3646 = vmul.f32 %v3640, 0.5
    %v3647 = vadd.f32 %v3641, 0.5
    %v3648 = vadd.f32 %v3642, 0.5
    %v3649 = vadd.f32 %v3643, 0.5
    %v3650 = vadd.f32 %v3644, 0.5
    %v3651 = vadd.f32 %v3645, 0.5
    %v3652 = vadd.f32 %v3646, 0.5
    %v3653 = vmul.f32 %v3647, %v3471
    %v3654 = vmul.f32 %v3648, %v3472
    %v3655 = vmul.f32 %v3649, %v3473
    %v3656 = vmul.f32 %v3650, %v3474
    %v3657 = vmul.f32 %v3651, %v3475
    %v3658 = vmul.f32 %v3652, %v3476
    %v3665 = vrot.slane %v3635, 4
    %v3666 = vrot.slane %v3636, 4
    %v3667 = vrot.slane %v3637, 4
    %v3668 = vrot.slane %v3638, 4
    %v3669 = vrot.slane %v3639, 4
    %v3670 = vrot.slane %v3640, 4
    %v3677 = vmul.f32 %v3647, %v3665
    %v3678 = vmul.f32 %v3648, %v3666
    %v3679 = vmul.f32 %v3649, %v3667
    %v3680 = vmul.f32 %v3650, %v3668
    %v3681 = vmul.f32 %v3651, %v3669
    %v3682 = vmul.f32 %v3652, %v3670
    %v3689 = vrot.slane %v3677, 6
    %v3690 = vrot.slane %v3678, 6
    %v3691 = vrot.slane %v3679, 6
    %v3692 = vrot.slane %v3680, 6
    %v3693 = vrot.slane %v3681, 6
    %v3694 = vrot.slane %v3682, 6
    %v3701 = vadd.f32 %v3653, %v3689
    %v3702 = vadd.f32 %v3654, %v3690
    %v3703 = vadd.f32 %v3655, %v3691
    %v3704 = vadd.f32 %v3656, %v3692
    %v3705 = vadd.f32 %v3657, %v3693
    %v3706 = vadd.f32 %v3658, %v3694
    %v3707 = vtanh.pop %v3701
    %v3708 = vtanh.pop %v3702
    %v3709 = vtanh.pop %v3703
    %v3710 = vtanh.pop %v3704
    %v3711 = vtanh.pop %v3705
    %v3712 = vtanh.pop %v3706
    %v3719 = vrot.slane %v3707, 4
    %v3720 = vrot.slane %v3708, 4
    %v3721 = vrot.slane %v3709, 4
    %v3722 = vrot.slane %v3710, 4
    %v3723 = vrot.slane %v3711, 4
    %v3724 = vrot.slane %v3712, 4
    %v3731 = vmul.f32 %v3647, %v3719
    %v3732 = vmul.f32 %v3648, %v3720
    %v3733 = vmul.f32 %v3649, %v3721
    %v3734 = vmul.f32 %v3650, %v3722
    %v3735 = vmul.f32 %v3651, %v3723
    %v3736 = vmul.f32 %v3652, %v3724
    %v3743 = vcombine.high %v3731, %v3732
    %v3744 = vcombine.high %v3733, %v3734
    %v3745 = vcombine.high %v3735, %v3736
    %v3747 = vunpack.c.l.s4 1966171168
    %v3748 = vunpack.c.0.s8 %v3747
    %v3749 = vlaneseq
    %v3750 = vshrl.u32 %v3749, 7
    %v3751 = vsub.s32 %v3748, %v3750
    %v3752 = vrot.slane %v3743, %v3751
    %v3754 = vunpack.c.l.s4 1966171168
    %v3755 = vunpack.c.0.s8 %v3754
    %v3756 = vlaneseq
    %v3757 = vshrl.u32 %v3756, 7
    %v3758 = vsub.s32 %v3755, %v3757
    %v3759 = vrot.slane %v3744, %v3758
    %v3761 = vunpack.c.l.s4 1966171168
    %v3762 = vunpack.c.0.s8 %v3761
    %v3763 = vlaneseq
    %v3764 = vshrl.u32 %v3763, 7
    %v3765 = vsub.s32 %v3762, %v3764
    %v3766 = vrot.slane %v3745, %v3765
    %v3767 = vcombine.low %v3752, %v3759
    %v3769 = vunpack.c.l.s4 1966171168
    %v3770 = vunpack.c.0.s8 %v3769
    %v3771 = vlaneseq
    %v3772 = vshrl.u32 %v3771, 7
    %v3773 = vsub.s32 %v3770, %v3772
    %v3774 = vrot.slane %v3767, %v3773
    %v3776 = vunpack.c.l.s4 1966171168
    %v3777 = vunpack.c.0.s8 %v3776
    %v3778 = vlaneseq
    %v3779 = vshrl.u32 %v3778, 7
    %v3780 = vsub.s32 %v3777, %v3779
    %v3781 = vrot.slane %v3766, %v3780
    %v3782 = vcombine.high %v3774, %v3781
    %s3784 = scalar_lea.vmem [#allocation4], 5
    %3785 = vst.msk [vmem:[%s3784] ss:$8 sm:$0xf] %vm2634, %v3782
    %3786 = vst.msk [vmem:[%s3784] ss:$8 sm:$0x30] %vm2634, %v3782
    %v3787 = vld [vmem:[%s2293] sm:$0xff]
    %v3788 = vld [vmem:[%s2293 + $0x8] sm:$0xff]
    %v3789 = vld [vmem:[%s2293 + $0x10] sm:$0xff]
    %v3790 = vld [vmem:[%s2293 + $0x18] sm:$0xff]
    %v3791 = vld [vmem:[%s2293 + $0x20] sm:$0xff]
    %v3792 = vld [vmem:[%s2293 + $0x28] sm:$0xff]
    %v3793 = vlaneseq
    %v3794 = vshrl.u32 %v3793, 7
    %v3795 = vsub.s32 6, %v3794
    %v3796 = vrot.slane %v3731, %v3795
    %v3797 = vlaneseq
    %v3798 = vshrl.u32 %v3797, 7
    %v3799 = vsub.s32 6, %v3798
    %v3800 = vrot.slane %v3732, %v3799
    %v3801 = vlaneseq
    %v3802 = vshrl.u32 %v3801, 7
    %v3803 = vsub.s32 6, %v3802
    %v3804 = vrot.slane %v3733, %v3803
    %v3805 = vlaneseq
    %v3806 = vshrl.u32 %v3805, 7
    %v3807 = vsub.s32 6, %v3806
    %v3808 = vrot.slane %v3734, %v3807
    %v3809 = vlaneseq
    %v3810 = vshrl.u32 %v3809, 7
    %v3811 = vsub.s32 6, %v3810
    %v3812 = vrot.slane %v3735, %v3811
    %v3813 = vlaneseq
    %v3814 = vshrl.u32 %v3813, 7
    %v3815 = vsub.s32 6, %v3814
    %v3816 = vrot.slane %v3736, %v3815
    %v3817 = vmul.f32 %v2386, %v3796
    %v3818 = vmul.f32 %v2386, %v3800
    %v3819 = vmul.f32 %v2386, %v3804
    %v3820 = vmul.f32 %v2386, %v3808
    %v3821 = vmul.f32 %v2386, %v3812
    %v3822 = vmul.f32 %v2386, %v3816
    %v3823 = vadd.f32 %v3787, %v3817
    %v3824 = vadd.f32 %v3788, %v3818
    %v3825 = vadd.f32 %v3789, %v3819
    %v3826 = vadd.f32 %v3790, %v3820
    %v3827 = vadd.f32 %v3791, %v3821
    %v3828 = vadd.f32 %v3792, %v3822
    %v3829 = vlaneseq
    %v3830 = vshrl.u32 %v3829, 7
    %v3831 = vsub.s32 7, %v3830
    %v3832 = vrot.slane %v3731, %v3831
    %v3833 = vlaneseq
    %v3834 = vshrl.u32 %v3833, 7
    %v3835 = vsub.s32 7, %v3834
    %v3836 = vrot.slane %v3732, %v3835
    %v3837 = vlaneseq
    %v3838 = vshrl.u32 %v3837, 7
    %v3839 = vsub.s32 7, %v3838
    %v3840 = vrot.slane %v3733, %v3839
    %v3841 = vlaneseq
    %v3842 = vshrl.u32 %v3841, 7
    %v3843 = vsub.s32 7, %v3842
    %v3844 = vrot.slane %v3734, %v3843
    %v3845 = vlaneseq
    %v3846 = vshrl.u32 %v3845, 7
    %v3847 = vsub.s32 7, %v3846
    %v3848 = vrot.slane %v3735, %v3847
    %v3849 = vlaneseq
    %v3850 = vshrl.u32 %v3849, 7
    %v3851 = vsub.s32 7, %v3850
    %v3852 = vrot.slane %v3736, %v3851
    %v3853 = vmul.f32 %v2426, %v3832
    %v3854 = vmul.f32 %v2426, %v3836
    %v3855 = vmul.f32 %v2426, %v3840
    %v3856 = vmul.f32 %v2426, %v3844
    %v3857 = vmul.f32 %v2426, %v3848
    %v3858 = vmul.f32 %v2426, %v3852
    %v3859 = vadd.f32 %v3823, %v3853
    %v3860 = vadd.f32 %v3824, %v3854
    %v3861 = vadd.f32 %v3825, %v3855
    %v3862 = vadd.f32 %v3826, %v3856
    %v3863 = vadd.f32 %v3827, %v3857
    %v3864 = vadd.f32 %v3828, %v3858
    %v3865 = vtanh.pop %v3859
    %v3866 = vtanh.pop %v3860
    %v3867 = vtanh.pop %v3861
    %v3868 = vtanh.pop %v3862
    %v3869 = vtanh.pop %v3863
    %v3870 = vtanh.pop %v3864
    %v3871 = vmul.f32 %v3865, 0.5
    %v3872 = vmul.f32 %v3866, 0.5
    %v3873 = vmul.f32 %v3867, 0.5
    %v3874 = vmul.f32 %v3868, 0.5
    %v3875 = vmul.f32 %v3869, 0.5
    %v3876 = vmul.f32 %v3870, 0.5
    %v3877 = vadd.f32 %v3871, 0.5
    %v3878 = vadd.f32 %v3872, 0.5
    %v3879 = vadd.f32 %v3873, 0.5
    %v3880 = vadd.f32 %v3874, 0.5
    %v3881 = vadd.f32 %v3875, 0.5
    %v3882 = vadd.f32 %v3876, 0.5
    %v3883 = vmul.f32 %v3877, %v3701
    %v3884 = vmul.f32 %v3878, %v3702
    %v3885 = vmul.f32 %v3879, %v3703
    %v3886 = vmul.f32 %v3880, %v3704
    %v3887 = vmul.f32 %v3881, %v3705
    %v3888 = vmul.f32 %v3882, %v3706
    %v3895 = vrot.slane %v3865, 4
    %v3896 = vrot.slane %v3866, 4
    %v3897 = vrot.slane %v3867, 4
    %v3898 = vrot.slane %v3868, 4
    %v3899 = vrot.slane %v3869, 4
    %v3900 = vrot.slane %v3870, 4
    %v3907 = vmul.f32 %v3877, %v3895
    %v3908 = vmul.f32 %v3878, %v3896
    %v3909 = vmul.f32 %v3879, %v3897
    %v3910 = vmul.f32 %v3880, %v3898
    %v3911 = vmul.f32 %v3881, %v3899
    %v3912 = vmul.f32 %v3882, %v3900
    %v3919 = vrot.slane %v3907, 6
    %v3920 = vrot.slane %v3908, 6
    %v3921 = vrot.slane %v3909, 6
    %v3922 = vrot.slane %v3910, 6
    %v3923 = vrot.slane %v3911, 6
    %v3924 = vrot.slane %v3912, 6
    %v3931 = vadd.f32 %v3883, %v3919
    %v3932 = vadd.f32 %v3884, %v3920
    %v3933 = vadd.f32 %v3885, %v3921
    %v3934 = vadd.f32 %v3886, %v3922
    %v3935 = vadd.f32 %v3887, %v3923
    %v3936 = vadd.f32 %v3888, %v3924
    %v3937 = vtanh.pop %v3931
    %v3938 = vtanh.pop %v3932
    %v3939 = vtanh.pop %v3933
    %v3940 = vtanh.pop %v3934
    %v3941 = vtanh.pop %v3935
    %v3942 = vtanh.pop %v3936
    %v3949 = vrot.slane %v3937, 4
    %v3950 = vrot.slane %v3938, 4
    %v3951 = vrot.slane %v3939, 4
    %v3952 = vrot.slane %v3940, 4
    %v3953 = vrot.slane %v3941, 4
    %v3954 = vrot.slane %v3942, 4
    %v3961 = vmul.f32 %v3877, %v3949
    %v3962 = vmul.f32 %v3878, %v3950
    %v3963 = vmul.f32 %v3879, %v3951
    %v3964 = vmul.f32 %v3880, %v3952
    %v3965 = vmul.f32 %v3881, %v3953
    %v3966 = vmul.f32 %v3882, %v3954
    %v3973 = vcombine.high %v3961, %v3962
    %v3974 = vcombine.high %v3963, %v3964
    %v3975 = vcombine.high %v3965, %v3966
    %v3977 = vunpack.c.l.s4 1966171168
    %v3978 = vunpack.c.0.s8 %v3977
    %v3979 = vlaneseq
    %v3980 = vshrl.u32 %v3979, 7
    %v3981 = vsub.s32 %v3978, %v3980
    %v3982 = vrot.slane %v3973, %v3981
    %v3984 = vunpack.c.l.s4 1966171168
    %v3985 = vunpack.c.0.s8 %v3984
    %v3986 = vlaneseq
    %v3987 = vshrl.u32 %v3986, 7
    %v3988 = vsub.s32 %v3985, %v3987
    %v3989 = vrot.slane %v3974, %v3988
    %v3991 = vunpack.c.l.s4 1966171168
    %v3992 = vunpack.c.0.s8 %v3991
    %v3993 = vlaneseq
    %v3994 = vshrl.u32 %v3993, 7
    %v3995 = vsub.s32 %v3992, %v3994
    %v3996 = vrot.slane %v3975, %v3995
    %v3997 = vcombine.low %v3982, %v3989
    %v3999 = vunpack.c.l.s4 1966171168
    %v4000 = vunpack.c.0.s8 %v3999
    %v4001 = vlaneseq
    %v4002 = vshrl.u32 %v4001, 7
    %v4003 = vsub.s32 %v4000, %v4002
    %v4004 = vrot.slane %v3997, %v4003
    %v4006 = vunpack.c.l.s4 1966171168
    %v4007 = vunpack.c.0.s8 %v4006
    %v4008 = vlaneseq
    %v4009 = vshrl.u32 %v4008, 7
    %v4010 = vsub.s32 %v4007, %v4009
    %v4011 = vrot.slane %v3996, %v4010
    %v4012 = vcombine.high %v4004, %v4011
    %s4014 = scalar_lea.vmem [#allocation4], 6
    %4015 = vst.msk [vmem:[%s4014] ss:$8 sm:$0xf] %vm2634, %v4012
    %4016 = vst.msk [vmem:[%s4014] ss:$8 sm:$0x30] %vm2634, %v4012
    %4017 = vset.pattern.permute.xlu0 7
    %4018 = vperm.xlu0 %4017, %v52
    %v4019 = vpop.permute.xlu0 %4018
    %v4021 = vlaneseq
    %v4022 = vshrl.u32 %v4021, 7
    %v4023 = vsub.s32 7, %v4022
    %v4024 = vrot.slane %v3961, %v4023
    %v4025 = vlaneseq
    %v4026 = vshrl.u32 %v4025, 7
    %v4027 = vsub.s32 7, %v4026
    %v4028 = vrot.slane %v3962, %v4027
    %v4029 = vlaneseq
    %v4030 = vshrl.u32 %v4029, 7
    %v4031 = vsub.s32 7, %v4030
    %v4032 = vrot.slane %v3963, %v4031
    %v4033 = vlaneseq
    %v4034 = vshrl.u32 %v4033, 7
    %v4035 = vsub.s32 7, %v4034
    %v4036 = vrot.slane %v3964, %v4035
    %v4037 = vlaneseq
    %v4038 = vshrl.u32 %v4037, 7
    %v4039 = vsub.s32 7, %v4038
    %v4040 = vrot.slane %v3965, %v4039
    %v4041 = vlaneseq
    %v4042 = vshrl.u32 %v4041, 7
    %v4043 = vsub.s32 7, %v4042
    %v4044 = vrot.slane %v3966, %v4043
    %v4045 = vmul.f32 %v4019, %v4024
    %v4046 = vmul.f32 %v4019, %v4028
    %v4047 = vmul.f32 %v4019, %v4032
    %v4048 = vmul.f32 %v4019, %v4036
    %v4049 = vmul.f32 %v4019, %v4040
    %v4050 = vmul.f32 %v4019, %v4044
    %4051 = vset.pattern.permute.xlu0 9
    %4052 = vperm.xlu0 %4051, %v52
    %v4053 = vpop.permute.xlu0 %4052
    %v4055 = vadd.f32 %v4053, %v4045
    %v4056 = vadd.f32 %v4053, %v4046
    %v4057 = vadd.f32 %v4053, %v4047
    %v4058 = vadd.f32 %v4053, %v4048
    %v4059 = vadd.f32 %v4053, %v4049
    %v4060 = vadd.f32 %v4053, %v4050
    %4061 = vset.pattern.permute.xlu0 8
    %4062 = vperm.xlu0 %4061, %v52
    %v4063 = vpop.permute.xlu0 %4062
    %v4065 = vlaneseq
    %v4066 = vshrl.u32 %v4065, 7
    %v4067 = vsub.s32 6, %v4066
    %v4068 = vrot.slane %v3961, %v4067
    %v4069 = vlaneseq
    %v4070 = vshrl.u32 %v4069, 7
    %v4071 = vsub.s32 6, %v4070
    %v4072 = vrot.slane %v3962, %v4071
    %v4073 = vlaneseq
    %v4074 = vshrl.u32 %v4073, 7
    %v4075 = vsub.s32 6, %v4074
    %v4076 = vrot.slane %v3963, %v4075
    %v4077 = vlaneseq
    %v4078 = vshrl.u32 %v4077, 7
    %v4079 = vsub.s32 6, %v4078
    %v4080 = vrot.slane %v3964, %v4079
    %v4081 = vlaneseq
    %v4082 = vshrl.u32 %v4081, 7
    %v4083 = vsub.s32 6, %v4082
    %v4084 = vrot.slane %v3965, %v4083
    %v4085 = vlaneseq
    %v4086 = vshrl.u32 %v4085, 7
    %v4087 = vsub.s32 6, %v4086
    %v4088 = vrot.slane %v3966, %v4087
    %v4089 = vmul.f32 %v4063, %v4068
    %v4090 = vmul.f32 %v4063, %v4072
    %v4091 = vmul.f32 %v4063, %v4076
    %v4092 = vmul.f32 %v4063, %v4080
    %v4093 = vmul.f32 %v4063, %v4084
    %v4094 = vmul.f32 %v4063, %v4088
    %v4095 = vadd.f32 %v4055, %v4089
    %v4096 = vadd.f32 %v4056, %v4090
    %v4097 = vadd.f32 %v4057, %v4091
    %v4098 = vadd.f32 %v4058, %v4092
    %v4099 = vadd.f32 %v4059, %v4093
    %v4100 = vadd.f32 %v4060, %v4094
    %v4101 = vtanh.pop %v4095
    %v4102 = vtanh.pop %v4096
    %v4103 = vtanh.pop %v4097
    %v4104 = vtanh.pop %v4098
    %v4105 = vtanh.pop %v4099
    %v4106 = vtanh.pop %v4100
    %v4107 = vmul.f32 %v4101, 0.5
    %v4108 = vmul.f32 %v4102, 0.5
    %v4109 = vmul.f32 %v4103, 0.5
    %v4110 = vmul.f32 %v4104, 0.5
    %v4111 = vmul.f32 %v4105, 0.5
    %v4112 = vmul.f32 %v4106, 0.5
    %v4113 = vadd.f32 %v4107, 0.5
    %v4114 = vadd.f32 %v4108, 0.5
    %v4115 = vadd.f32 %v4109, 0.5
    %v4116 = vadd.f32 %v4110, 0.5
    %v4117 = vadd.f32 %v4111, 0.5
    %v4118 = vadd.f32 %v4112, 0.5
    %v4125 = vrot.slane %v3931, 1
    %v4126 = vrot.slane %v3932, 1
    %v4127 = vrot.slane %v3933, 1
    %v4128 = vrot.slane %v3934, 1
    %v4129 = vrot.slane %v3935, 1
    %v4130 = vrot.slane %v3936, 1
    %v4137 = vmul.f32 %v4113, %v4125
    %v4138 = vmul.f32 %v4114, %v4126
    %v4139 = vmul.f32 %v4115, %v4127
    %v4140 = vmul.f32 %v4116, %v4128
    %v4141 = vmul.f32 %v4117, %v4129
    %v4142 = vmul.f32 %v4118, %v4130
    %v4149 = vrot.slane %v4101, 2
    %v4150 = vrot.slane %v4102, 2
    %v4151 = vrot.slane %v4103, 2
    %v4152 = vrot.slane %v4104, 2
    %v4153 = vrot.slane %v4105, 2
    %v4154 = vrot.slane %v4106, 2
    %v4161 = vmul.f32 %v4113, %v4149
    %v4162 = vmul.f32 %v4114, %v4150
    %v4163 = vmul.f32 %v4115, %v4151
    %v4164 = vmul.f32 %v4116, %v4152
    %v4165 = vmul.f32 %v4117, %v4153
    %v4166 = vmul.f32 %v4118, %v4154
    %v4173 = vrot.slane %v4161, 7
    %v4174 = vrot.slane %v4162, 7
    %v4175 = vrot.slane %v4163, 7
    %v4176 = vrot.slane %v4164, 7
    %v4177 = vrot.slane %v4165, 7
    %v4178 = vrot.slane %v4166, 7
    %v4185 = vadd.f32 %v4137, %v4173
    %v4186 = vadd.f32 %v4138, %v4174
    %v4187 = vadd.f32 %v4139, %v4175
    %v4188 = vadd.f32 %v4140, %v4176
    %v4189 = vadd.f32 %v4141, %v4177
    %v4190 = vadd.f32 %v4142, %v4178
    %v4191 = vtanh.pop %v4185
    %v4192 = vtanh.pop %v4186
    %v4193 = vtanh.pop %v4187
    %v4194 = vtanh.pop %v4188
    %v4195 = vtanh.pop %v4189
    %v4196 = vtanh.pop %v4190
    %v4203 = vrot.slane %v4191, 6
    %v4204 = vrot.slane %v4192, 6
    %v4205 = vrot.slane %v4193, 6
    %v4206 = vrot.slane %v4194, 6
    %v4207 = vrot.slane %v4195, 6
    %v4208 = vrot.slane %v4196, 6
    %v4215 = vmul.f32 %v4113, %v4203
    %v4216 = vmul.f32 %v4114, %v4204
    %v4217 = vmul.f32 %v4115, %v4205
    %v4218 = vmul.f32 %v4116, %v4206
    %v4219 = vmul.f32 %v4117, %v4207
    %v4220 = vmul.f32 %v4118, %v4208
    %v4227 = vcombine.low %v4215, %v4216
    %v4228 = vcombine.low %v4217, %v4218
    %v4229 = vcombine.low %v4219, %v4220
    %v4231 = vunpack.c.l.s4 1966171168
    %v4232 = vunpack.c.0.s8 %v4231
    %v4233 = vlaneseq
    %v4234 = vshrl.u32 %v4233, 7
    %v4235 = vsub.s32 %v4232, %v4234
    %v4236 = vrot.slane %v4227, %v4235
    %v4238 = vunpack.c.l.s4 1966171168
    %v4239 = vunpack.c.0.s8 %v4238
    %v4240 = vlaneseq
    %v4241 = vshrl.u32 %v4240, 7
    %v4242 = vsub.s32 %v4239, %v4241
    %v4243 = vrot.slane %v4228, %v4242
    %v4245 = vunpack.c.l.s4 1966171168
    %v4246 = vunpack.c.0.s8 %v4245
    %v4247 = vlaneseq
    %v4248 = vshrl.u32 %v4247, 7
    %v4249 = vsub.s32 %v4246, %v4248
    %v4250 = vrot.slane %v4229, %v4249
    %v4251 = vcombine.high %v4236, %v4243
    %v4252 = vcombine.high %v4250, %v4250
    %v4254 = vunpack.c.l.s4 1966171168
    %v4255 = vunpack.c.0.s8 %v4254
    %v4256 = vlaneseq
    %v4257 = vshrl.u32 %v4256, 7
    %v4258 = vsub.s32 %v4255, %v4257
    %v4259 = vrot.slane %v4251, %v4258
    %v4261 = vunpack.c.l.s4 1966171168
    %v4262 = vunpack.c.0.s8 %v4261
    %v4263 = vlaneseq
    %v4264 = vshrl.u32 %v4263, 7
    %v4265 = vsub.s32 %v4262, %v4264
    %v4266 = vrot.slane %v4252, %v4265
    %v4267 = vcombine.high %v4259, %v4266
    %s4269 = scalar_lea.vmem [#allocation4], 7
    %4270 = vst.msk [vmem:[%s4269] ss:$8 sm:$0xf] %vm2634, %v4267
    %4271 = vst.msk [vmem:[%s4269] ss:$8 sm:$0x30] %vm2634, %v4267
    %s4272 = smul.u32 768, 1
    %s4273 = sshll.u32 %s4272, 4
    %4274 = dma.done [#allocation3], %s4273
    %v4275 = vld [vmem:[#allocation4] sm:$0xff]
    %v4276 = vld [vmem:[#allocation4 + $0x8] sm:$0xff]
    %v4277 = vld [vmem:[#allocation4 + $0x10] sm:$0xff]
    %v4278 = vld [vmem:[#allocation4 + $0x18] sm:$0xff]
    %v4279 = vld [vmem:[#allocation4 + $0x20] sm:$0xff]
    %v4280 = vld [vmem:[#allocation4 + $0x28] sm:$0xff]
    %v4281 = vld [vmem:[#allocation2] sm:$0xff]
    %v4282 = vld [vmem:[#allocation2 + $0x8] sm:$0xff]
    %v4283 = vld [vmem:[#allocation2 + $0x10] sm:$0xff]
    %v4284 = vld [vmem:[#allocation2 + $0x18] sm:$0xff]
    %v4285 = vld [vmem:[#allocation2 + $0x20] sm:$0xff]
    %v4286 = vld [vmem:[#allocation2 + $0x28] sm:$0xff]
    %v4287 = vld [vmem:[#allocation2 + $0x30] sm:$0xff]
    %v4288 = vld [vmem:[#allocation2 + $0x38] sm:$0xff]
    %v4289 = vld [vmem:[#allocation2 + $0x40] sm:$0xff]
    %v4290 = vld [vmem:[#allocation2 + $0x48] sm:$0xff]
    %v4291 = vld [vmem:[#allocation2 + $0x50] sm:$0xff]
    %v4292 = vld [vmem:[#allocation2 + $0x58] sm:$0xff]
    %v4293 = vld [vmem:[#allocation2 + $0x60] sm:$0xff]
    %v4294 = vld [vmem:[#allocation2 + $0x68] sm:$0xff]
    %v4295 = vld [vmem:[#allocation2 + $0x70] sm:$0xff]
    %v4296 = vld [vmem:[#allocation2 + $0x78] sm:$0xff]
    %v4297 = vld [vmem:[#allocation2 + $0x80] sm:$0xff]
    %v4298 = vld [vmem:[#allocation2 + $0x88] sm:$0xff]
    %v4299 = vld [vmem:[#allocation2 + $0x90] sm:$0xff]
    %v4300 = vld [vmem:[#allocation2 + $0x98] sm:$0xff]
    %v4301 = vld [vmem:[#allocation2 + $0xa0] sm:$0xff]
    %v4302 = vld [vmem:[#allocation2 + $0xa8] sm:$0xff]
    %v4303 = vld [vmem:[#allocation2 + $0xb0] sm:$0xff]
    %v4304 = vld [vmem:[#allocation2 + $0xb8] sm:$0xff]
    %v4305 = vld [vmem:[#allocation2 + $0xc0] sm:$0xff]
    %v4306 = vld [vmem:[#allocation2 + $0xc8] sm:$0xff]
    %v4307 = vld [vmem:[#allocation2 + $0xd0] sm:$0xff]
    %v4308 = vld [vmem:[#allocation2 + $0xd8] sm:$0xff]
    %v4309 = vld [vmem:[#allocation2 + $0xe0] sm:$0xff]
    %v4310 = vld [vmem:[#allocation2 + $0xe8] sm:$0xff]
    %v4311 = vld [vmem:[#allocation2 + $0xf0] sm:$0xff]
    %v4312 = vld [vmem:[#allocation2 + $0xf8] sm:$0xff]
    %v4313 = vld [vmem:[#allocation2 + $0x100] sm:$0xff]
    %v4314 = vld [vmem:[#allocation2 + $0x108] sm:$0xff]
    %v4315 = vld [vmem:[#allocation2 + $0x110] sm:$0xff]
    %v4316 = vld [vmem:[#allocation2 + $0x118] sm:$0xff]
    %v4317 = vld [vmem:[#allocation2 + $0x120] sm:$0xff]
    %v4318 = vld [vmem:[#allocation2 + $0x128] sm:$0xff]
    %v4319 = vld [vmem:[#allocation2 + $0x130] sm:$0xff]
    %v4320 = vld [vmem:[#allocation2 + $0x138] sm:$0xff]
    %v4321 = vld [vmem:[#allocation2 + $0x140] sm:$0xff]
    %v4322 = vld [vmem:[#allocation2 + $0x148] sm:$0xff]
    %v4323 = vld [vmem:[#allocation2 + $0x150] sm:$0xff]
    %v4324 = vld [vmem:[#allocation2 + $0x158] sm:$0xff]
    %v4325 = vld [vmem:[#allocation2 + $0x160] sm:$0xff]
    %v4326 = vld [vmem:[#allocation2 + $0x168] sm:$0xff]
    %v4327 = vld [vmem:[#allocation2 + $0x170] sm:$0xff]
    %v4328 = vld [vmem:[#allocation2 + $0x178] sm:$0xff]
    %v4329 = vld [vmem:[#allocation2 + $0x180] sm:$0xff]
    %v4330 = vld [vmem:[#allocation2 + $0x188] sm:$0xff]
    %v4331 = vld [vmem:[#allocation2 + $0x190] sm:$0xff]
    %v4332 = vld [vmem:[#allocation2 + $0x198] sm:$0xff]
    %v4333 = vld [vmem:[#allocation2 + $0x1a0] sm:$0xff]
    %v4334 = vld [vmem:[#allocation2 + $0x1a8] sm:$0xff]
    %v4335 = vld [vmem:[#allocation2 + $0x1b0] sm:$0xff]
    %v4336 = vld [vmem:[#allocation2 + $0x1b8] sm:$0xff]
    %v4337 = vld [vmem:[#allocation2 + $0x1c0] sm:$0xff]
    %v4338 = vld [vmem:[#allocation2 + $0x1c8] sm:$0xff]
    %v4339 = vld [vmem:[#allocation2 + $0x1d0] sm:$0xff]
    %v4340 = vld [vmem:[#allocation2 + $0x1d8] sm:$0xff]
    %v4341 = vld [vmem:[#allocation2 + $0x1e0] sm:$0xff]
    %v4342 = vld [vmem:[#allocation2 + $0x1e8] sm:$0xff]
    %v4343 = vld [vmem:[#allocation2 + $0x1f0] sm:$0xff]
    %v4344 = vld [vmem:[#allocation2 + $0x1f8] sm:$0xff]
    %v4345 = vld [vmem:[#allocation2 + $0x200] sm:$0xff]
    %v4346 = vld [vmem:[#allocation2 + $0x208] sm:$0xff]
    %v4347 = vld [vmem:[#allocation2 + $0x210] sm:$0xff]
    %v4348 = vld [vmem:[#allocation2 + $0x218] sm:$0xff]
    %v4349 = vld [vmem:[#allocation2 + $0x220] sm:$0xff]
    %v4350 = vld [vmem:[#allocation2 + $0x228] sm:$0xff]
    %v4351 = vld [vmem:[#allocation2 + $0x230] sm:$0xff]
    %v4352 = vld [vmem:[#allocation2 + $0x238] sm:$0xff]
    %v4353 = vld [vmem:[#allocation2 + $0x240] sm:$0xff]
    %v4354 = vld [vmem:[#allocation2 + $0x248] sm:$0xff]
    %v4355 = vld [vmem:[#allocation2 + $0x250] sm:$0xff]
    %v4356 = vld [vmem:[#allocation2 + $0x258] sm:$0xff]
    %v4357 = vld [vmem:[#allocation2 + $0x260] sm:$0xff]
    %v4358 = vld [vmem:[#allocation2 + $0x268] sm:$0xff]
    %v4359 = vld [vmem:[#allocation2 + $0x270] sm:$0xff]
    %v4360 = vld [vmem:[#allocation2 + $0x278] sm:$0xff]
    %v4361 = vld [vmem:[#allocation2 + $0x280] sm:$0xff]
    %v4362 = vld [vmem:[#allocation2 + $0x288] sm:$0xff]
    %v4363 = vld [vmem:[#allocation2 + $0x290] sm:$0xff]
    %v4364 = vld [vmem:[#allocation2 + $0x298] sm:$0xff]
    %v4365 = vld [vmem:[#allocation2 + $0x2a0] sm:$0xff]
    %v4366 = vld [vmem:[#allocation2 + $0x2a8] sm:$0xff]
    %v4367 = vld [vmem:[#allocation2 + $0x2b0] sm:$0xff]
    %v4368 = vld [vmem:[#allocation2 + $0x2b8] sm:$0xff]
    %v4369 = vld [vmem:[#allocation2 + $0x2c0] sm:$0xff]
    %v4370 = vld [vmem:[#allocation2 + $0x2c8] sm:$0xff]
    %v4371 = vld [vmem:[#allocation2 + $0x2d0] sm:$0xff]
    %v4372 = vld [vmem:[#allocation2 + $0x2d8] sm:$0xff]
    %v4373 = vld [vmem:[#allocation2 + $0x2e0] sm:$0xff]
    %v4374 = vld [vmem:[#allocation2 + $0x2e8] sm:$0xff]
    %v4375 = vld [vmem:[#allocation2 + $0x2f0] sm:$0xff]
    %v4376 = vld [vmem:[#allocation2 + $0x2f8] sm:$0xff]
    %v4377 = vld [vmem:[%s3] sm:$0x1]
    %v4378 = vlaneseq
    %v4379 = vshrl.u32 %v4378, 7
    %v4380 = vsub.s32 0, %v4379
    %v4381 = vrot.slane %v4377, %v4380
    %4382 = vmatprep.subr.mxu0 0.0
    %4383 = vmatpush1.msra.mxu0 %v4296
    %4384 = vmatprep.subr.mxu0 0.0
    %4385 = vmatpush1.msra.mxu0 %v4295
    %4386 = vmatprep.subr.mxu0 0.0
    %4387 = vmatpush1.msra.mxu0 %v4294
    %4388 = vmatprep.subr.mxu0 0.0
    %4389 = vmatpush1.msra.mxu0 %v4293
    %4390 = vmatprep.subr.mxu0 0.0
    %4391 = vmatpush1.msra.mxu0 %v4292
    %4392 = vmatprep.subr.mxu0 0.0
    %4393 = vmatpush1.msra.mxu0 %v4291
    %4394 = vmatprep.subr.mxu0 0.0
    %4395 = vmatpush1.msra.mxu0 %v4290
    %4396 = vmatprep.subr.mxu0 0.0
    %4397 = vmatpush1.msra.mxu0 %v4289
    %4398 = vmatprep.subr.mxu0 0.0
    %4399 = vmatpush1.msra.mxu0 %v4288
    %4400 = vmatprep.subr.mxu0 0.0
    %4401 = vmatpush1.msra.mxu0 %v4287
    %4402 = vmatprep.subr.mxu0 0.0
    %4403 = vmatpush1.msra.mxu0 %v4286
    %4404 = vmatprep.subr.mxu0 0.0
    %4405 = vmatpush1.msra.mxu0 %v4285
    %4406 = vmatprep.subr.mxu0 0.0
    %4407 = vmatpush1.msra.mxu0 %v4284
    %4408 = vmatprep.subr.mxu0 0.0
    %4409 = vmatpush1.msra.mxu0 %v4283
    %4410 = vmatprep.subr.mxu0 0.0
    %4411 = vmatpush1.msra.mxu0 %v4282
    %4412 = vmatprep.subr.mxu0 0.0
    %4413 = vmatpush1.msra.mxu0 %v4281
    %4414 = vmatprep.subr.mxu0 0.0
    %4415 = vmatpush2.msra.mxu0 %v4312
    %4416 = vmatprep.subr.mxu0 0.0
    %4417 = vmatpush2.msra.mxu0 %v4311
    %4418 = vmatprep.subr.mxu0 0.0
    %4419 = vmatpush2.msra.mxu0 %v4310
    %4420 = vmatprep.subr.mxu0 0.0
    %4421 = vmatpush2.msra.mxu0 %v4309
    %4422 = vmatprep.subr.mxu0 0.0
    %4423 = vmatpush2.msra.mxu0 %v4308
    %4424 = vmatprep.subr.mxu0 0.0
    %4425 = vmatpush2.msra.mxu0 %v4307
    %4426 = vmatprep.subr.mxu0 0.0
    %4427 = vmatpush2.msra.mxu0 %v4306
    %4428 = vmatprep.subr.mxu0 0.0
    %4429 = vmatpush2.msra.mxu0 %v4305
    %4430 = vmatprep.subr.mxu0 0.0
    %4431 = vmatpush2.msra.mxu0 %v4304
    %4432 = vmatprep.subr.mxu0 0.0
    %4433 = vmatpush2.msra.mxu0 %v4303
    %4434 = vmatprep.subr.mxu0 0.0
    %4435 = vmatpush2.msra.mxu0 %v4302
    %4436 = vmatprep.subr.mxu0 0.0
    %4437 = vmatpush2.msra.mxu0 %v4301
    %4438 = vmatprep.subr.mxu0 0.0
    %4439 = vmatpush2.msra.mxu0 %v4300
    %4440 = vmatprep.subr.mxu0 0.0
    %4441 = vmatpush2.msra.mxu0 %v4299
    %4442 = vmatprep.subr.mxu0 0.0
    %4443 = vmatpush2.msra.mxu0 %v4298
    %4444 = vmatprep.subr.mxu0 0.0
    %4445 = vmatpush2.msra.mxu0 %v4297
    %4446 = vmatprep.mubr.f32.mxu0 %v4276
    %4447 = vmatmul.mubr.f32.gmra.mxu0 %v4275
    %v4448 = vpop.f32.mrf.mxu0
    %v4449 = vadd.f32 %v4381, %v4448
    %v4450 = vpop.f32.mrf.mxu0
    %4451 = vdwg.mxu0
    %4452 = vmatprep.subr.mxu0 0.0
    %4453 = vmatpush1.msra.mxu0 %v4328
    %4454 = vmatprep.subr.mxu0 0.0
    %4455 = vmatpush1.msra.mxu0 %v4327
    %4456 = vmatprep.subr.mxu0 0.0
    %4457 = vmatpush1.msra.mxu0 %v4326
    %4458 = vmatprep.subr.mxu0 0.0
    %4459 = vmatpush1.msra.mxu0 %v4325
    %4460 = vmatprep.subr.mxu0 0.0
    %4461 = vmatpush1.msra.mxu0 %v4324
    %4462 = vmatprep.subr.mxu0 0.0
    %4463 = vmatpush1.msra.mxu0 %v4323
    %4464 = vmatprep.subr.mxu0 0.0
    %4465 = vmatpush1.msra.mxu0 %v4322
    %4466 = vmatprep.subr.mxu0 0.0
    %4467 = vmatpush1.msra.mxu0 %v4321
    %4468 = vmatprep.subr.mxu0 0.0
    %4469 = vmatpush1.msra.mxu0 %v4320
    %4470 = vmatprep.subr.mxu0 0.0
    %4471 = vmatpush1.msra.mxu0 %v4319
    %4472 = vmatprep.subr.mxu0 0.0
    %4473 = vmatpush1.msra.mxu0 %v4318
    %4474 = vmatprep.subr.mxu0 0.0
    %4475 = vmatpush1.msra.mxu0 %v4317
    %4476 = vmatprep.subr.mxu0 0.0
    %4477 = vmatpush1.msra.mxu0 %v4316
    %4478 = vmatprep.subr.mxu0 0.0
    %4479 = vmatpush1.msra.mxu0 %v4315
    %4480 = vmatprep.subr.mxu0 0.0
    %4481 = vmatpush1.msra.mxu0 %v4314
    %4482 = vmatprep.subr.mxu0 0.0
    %4483 = vmatpush1.msra.mxu0 %v4313
    %4484 = vmatprep.subr.mxu0 0.0
    %4485 = vmatpush2.msra.mxu0 %v4344
    %4486 = vmatprep.subr.mxu0 0.0
    %4487 = vmatpush2.msra.mxu0 %v4343
    %4488 = vmatprep.subr.mxu0 0.0
    %4489 = vmatpush2.msra.mxu0 %v4342
    %4490 = vmatprep.subr.mxu0 0.0
    %4491 = vmatpush2.msra.mxu0 %v4341
    %4492 = vmatprep.subr.mxu0 0.0
    %4493 = vmatpush2.msra.mxu0 %v4340
    %4494 = vmatprep.subr.mxu0 0.0
    %4495 = vmatpush2.msra.mxu0 %v4339
    %4496 = vmatprep.subr.mxu0 0.0
    %4497 = vmatpush2.msra.mxu0 %v4338
    %4498 = vmatprep.subr.mxu0 0.0
    %4499 = vmatpush2.msra.mxu0 %v4337
    %4500 = vmatprep.subr.mxu0 0.0
    %4501 = vmatpush2.msra.mxu0 %v4336
    %4502 = vmatprep.subr.mxu0 0.0
    %4503 = vmatpush2.msra.mxu0 %v4335
    %4504 = vmatprep.subr.mxu0 0.0
    %4505 = vmatpush2.msra.mxu0 %v4334
    %4506 = vmatprep.subr.mxu0 0.0
    %4507 = vmatpush2.msra.mxu0 %v4333
    %4508 = vmatprep.subr.mxu0 0.0
    %4509 = vmatpush2.msra.mxu0 %v4332
    %4510 = vmatprep.subr.mxu0 0.0
    %4511 = vmatpush2.msra.mxu0 %v4331
    %4512 = vmatprep.subr.mxu0 0.0
    %4513 = vmatpush2.msra.mxu0 %v4330
    %4514 = vmatprep.subr.mxu0 0.0
    %4515 = vmatpush2.msra.mxu0 %v4329
    %4516 = vmatprep.mubr.f32.mxu0 %v4278
    %4517 = vmatmul.mubr.f32.gmra.mxu0 %v4277
    %v4518 = vpop.f32.mrf.mxu0
    %v4519 = vadd.f32 %v4449, %v4518
    %v4520 = vpop.f32.mrf.mxu0
    %4521 = vdwg.mxu0
    %4522 = vmatprep.subr.mxu0 0.0
    %4523 = vmatpush1.msra.mxu0 %v4360
    %4524 = vmatprep.subr.mxu0 0.0
    %4525 = vmatpush1.msra.mxu0 %v4359
    %4526 = vmatprep.subr.mxu0 0.0
    %4527 = vmatpush1.msra.mxu0 %v4358
    %4528 = vmatprep.subr.mxu0 0.0
    %4529 = vmatpush1.msra.mxu0 %v4357
    %4530 = vmatprep.subr.mxu0 0.0
    %4531 = vmatpush1.msra.mxu0 %v4356
    %4532 = vmatprep.subr.mxu0 0.0
    %4533 = vmatpush1.msra.mxu0 %v4355
    %4534 = vmatprep.subr.mxu0 0.0
    %4535 = vmatpush1.msra.mxu0 %v4354
    %4536 = vmatprep.subr.mxu0 0.0
    %4537 = vmatpush1.msra.mxu0 %v4353
    %4538 = vmatprep.subr.mxu0 0.0
    %4539 = vmatpush1.msra.mxu0 %v4352
    %4540 = vmatprep.subr.mxu0 0.0
    %4541 = vmatpush1.msra.mxu0 %v4351
    %4542 = vmatprep.subr.mxu0 0.0
    %4543 = vmatpush1.msra.mxu0 %v4350
    %4544 = vmatprep.subr.mxu0 0.0
    %4545 = vmatpush1.msra.mxu0 %v4349
    %4546 = vmatprep.subr.mxu0 0.0
    %4547 = vmatpush1.msra.mxu0 %v4348
    %4548 = vmatprep.subr.mxu0 0.0
    %4549 = vmatpush1.msra.mxu0 %v4347
    %4550 = vmatprep.subr.mxu0 0.0
    %4551 = vmatpush1.msra.mxu0 %v4346
    %4552 = vmatprep.subr.mxu0 0.0
    %4553 = vmatpush1.msra.mxu0 %v4345
    %4554 = vmatprep.subr.mxu0 0.0
    %4555 = vmatpush2.msra.mxu0 %v4376
    %4556 = vmatprep.subr.mxu0 0.0
    %4557 = vmatpush2.msra.mxu0 %v4375
    %4558 = vmatprep.subr.mxu0 0.0
    %4559 = vmatpush2.msra.mxu0 %v4374
    %4560 = vmatprep.subr.mxu0 0.0
    %4561 = vmatpush2.msra.mxu0 %v4373
    %4562 = vmatprep.subr.mxu0 0.0
    %4563 = vmatpush2.msra.mxu0 %v4372
    %4564 = vmatprep.subr.mxu0 0.0
    %4565 = vmatpush2.msra.mxu0 %v4371
    %4566 = vmatprep.subr.mxu0 0.0
    %4567 = vmatpush2.msra.mxu0 %v4370
    %4568 = vmatprep.subr.mxu0 0.0
    %4569 = vmatpush2.msra.mxu0 %v4369
    %4570 = vmatprep.subr.mxu0 0.0
    %4571 = vmatpush2.msra.mxu0 %v4368
    %4572 = vmatprep.subr.mxu0 0.0
    %4573 = vmatpush2.msra.mxu0 %v4367
    %4574 = vmatprep.subr.mxu0 0.0
    %4575 = vmatpush2.msra.mxu0 %v4366
    %4576 = vmatprep.subr.mxu0 0.0
    %4577 = vmatpush2.msra.mxu0 %v4365
    %4578 = vmatprep.subr.mxu0 0.0
    %4579 = vmatpush2.msra.mxu0 %v4364
    %4580 = vmatprep.subr.mxu0 0.0
    %4581 = vmatpush2.msra.mxu0 %v4363
    %4582 = vmatprep.subr.mxu0 0.0
    %4583 = vmatpush2.msra.mxu0 %v4362
    %4584 = vmatprep.subr.mxu0 0.0
    %4585 = vmatpush2.msra.mxu0 %v4361
    %4586 = vmatprep.mubr.f32.mxu0 %v4280
    %4587 = vmatmul.mubr.f32.gmra.mxu0 %v4279
    %v4588 = vpop.f32.mrf.mxu0
    %v4589 = vadd.f32 %v4519, %v4588
    %v4590 = vpop.f32.mrf.mxu0
    %4591 = vdwg.mxu0
    %v4592 = vmax.f32 %v4589, 0.0
    %v4593 = vld [vmem:[%s3 + $0x1] sm:$0x1]
    %v4594 = vlaneseq
    %v4595 = vshrl.u32 %v4594, 7
    %v4596 = vsub.s32 0, %v4595
    %v4597 = vrot.slane %v4593, %v4596
    %v4598 = vmul.f32 %v4592, %v4597
    %4599 = vadd.xlane.f32.xlu0 %v4598
    %v4600 = vpop.xlane.xlu0 %4599
    %v4601 = vld [vmem:[%s3 + $0x2] sm:$0x1]
    %v4602 = vlaneseq
    %v4603 = vshrl.u32 %v4602, 7
    %v4604 = vsub.s32 0, %v4603
    %v4605 = vrot.slane %v4601, %v4604
    %v4606 = vadd.f32 %v4600, %v4605
    %vm4607 = vcmask 7168
    %4608 = vst.msk [vmem:[%s4] sm:$0xff] %vm4607, %v4606
    // Predicated region
    $region26: #{tpu_custom_call.1} parent=1 // pred_check
      _
    $region27: #{tpu_custom_call.1} parent=1 // pred_check_branch
      %4610 = sbr.rel (0) target = $region29
    $region28: #{tpu_custom_call.1} parent=1 // pred_region
      _
    $region29: #{tpu_custom_call.1} parent=1 // pred_fallthru
      _
    // Predicated region
    $region30: #{tpu_custom_call.1} parent=1 // pred_check
      _
    $region31: #{tpu_custom_call.1} parent=1 // pred_check_branch
      %4612 = sbr.rel (0) target = $region33
    $region32: #{tpu_custom_call.1} parent=1 // pred_region
      _
    $region33: #{tpu_custom_call.1} parent=1 // pred_fallthru
      _
    %4613 = vsyncpa [#allocation7], 1
    %4614 = vsyncpa [#allocation9], 1
  %4615 = vsyncmov [#allocation3]
  %s4616 = vpop.sfrf %4615
  %p4617 = scmp.eq.s32.totalorder %s4616, 0
  %p4618 = pneg %p4617
  %4620 = shalt.err (%p4618)

</llo_original>
